<compile_context>
chip_gen: v5e
topology: v5e:2x2
jax: 0.10.0
libtpu: 0.0.40
codegen_flags: <defaults>
</compile_context>

<pallas_src>
import numpy as np
import jax
import jax.numpy as jnp
from jax.experimental import pallas as pl

# ----------------------------- configuration -------------------------------
INPUT_CHANNEL = 4
OUTPUT_CHANNEL = 32      # FeatureExtraction_output
HIDDEN_SIZE = 32
IMG_HEIGHT = 16
IMG_WIDTH = 32
NUM_CLASS = 10
BATCH = 2

# ----------------------------- static geometry ------------------------------
C_IN = INPUT_CHANNEL
C_INP = 8                        # image channels padded to one f32 sublane group
C0 = 16                          # conv-stem channels
C1 = OUTPUT_CHANNEL
B = BATCH
H0, W0 = IMG_HEIGHT, IMG_WIDTH   # (16, 32)
H1, W1 = H0 // 2, W0 // 2        # after maxpool #1  (8, 16)
H1P, W1P = H1 + 2, W1 + 2        # zero-padded per-image grid (10, 18)
L1 = B * H1P * W1P               # flattened padded grid width (360)
G = W1P + 1                      # guard lanes for the +-(W1P+1) conv shifts (19)
T = W1 // 2                      # sequence length after maxpool #2 (8)
HID = HIDDEN_SIZE
NCP = 128                        # prediction lanes padded for a dense store
LRW = L1 - 1                     # after w-direction pool shift (359)
LRH = LRW - W1P                  # after h-direction pool shift (341)

OFFS = [(kh - 1) * W1P + (kw - 1) for kh in range(3) for kw in range(3)]

# packed conv-weight blob column offsets
A0 = 9 * C_INP                   # 72   end of conv0 weights
A1 = A0 + 9 * C0                 # 216  end of conv1 weights
A2 = A1 + 9 * C1 + C0            # 520  end of conv2+shortcut weights

# packed LSTM/pred weight blob layout (128-lane aligned per-layer segments)
SEG = 512
WIH_OFF, WHH_OFF, LW_OFF = 0, 256, 384
PW_OFF = 2 * SEG                 # 1024
LSTMW_COLS = PW_OFF + NCP        # 1152


def _pool_constants():
    """Valid-cell mask for the padded grid + pool2/avgpool selection matrix.

    The selection matrix has 4 nonzeros (0.25 each) per column so the
    AdaptiveAvgPool height sum is folded into the selection GEMM.
    """
    q = np.arange(L1)
    hp = (q // W1P) % H1P
    wp = q % W1P
    mask = ((hp >= 1) & (hp <= H1) & (wp >= 1) & (wp <= W1)).astype(np.float32)
    sel = np.zeros((LRH, T * B), np.float32)
    for b in range(B):
        for t in range(T):
            for ho in range(H1 // 2):
                row = b * H1P * W1P + (2 * ho + 1) * W1P + (2 * t + 1)
                sel[row, t * B + b] = 0.25
    return jnp.asarray(mask.reshape(1, L1)), jnp.asarray(sel)


# ------------------------------ fused kernel --------------------------------
def _ocr_fused_kernel(img_ref, cw_ref, cb_ref, mask_ref, sel_ref,
                      lstmw_ref, lstmb_ref, out_ref):
    f32 = jnp.float32
    bf16 = jnp.bfloat16
    mask = mask_ref[...]                                   # (1, L1)

    # ---- conv0 (3x3, C_IN->C0) + ReLU + maxpool 2x2 #1 ---------------------
    # The image arrives as its 4 pool-phase subgrids, each in the zero-padded
    # (B, H1P, W1P) flat layout.  Each phase output is ONE K=72 GEMM over the
    # 9 shifted tap slices; the 2x2 maxpool is an elementwise max of the four
    # phase accumulators (shared bias + ReLU applied once after the max).
    w0 = cw_ref[0:C0, 0:A0].astype(f32)                    # (16, 72)
    b0 = cb_ref[0:C0, 0:1]
    phase_acc = []
    for dh in range(2):
        for dw in range(2):
            taps = []
            for di in (-1, 0, 1):
                for dj in (-1, 0, 1):
                    sh, oh = (dh + di) % 2, (dh + di) // 2
                    sw, ow = (dw + dj) % 2, (dw + dj) // 2
                    start = (2 * sh + sw) * L1 + oh * W1P + ow
                    taps.append(img_ref[:, start:start + L1])
            op = jnp.concatenate(taps, axis=0)             # (72, L1) f32
            phase_acc.append(jnp.dot(w0, op, preferred_element_type=f32))
    v1 = jnp.maximum(jnp.maximum(phase_acc[0], phase_acc[1]),
                     jnp.maximum(phase_acc[2], phase_acc[3]))
    v1 = jnp.maximum(v1 + b0, 0.0) * mask                  # (C0, L1), zero pad cells
    v1b = v1.astype(bf16)

    # guarded padded feature map (pure value, no scratch round-trip)
    zg0 = jnp.zeros((C0, G), bf16)
    fp0 = jnp.concatenate([zg0, v1b, zg0], axis=1)         # (C0, G+L1+G)

    # ---- residual block conv1 (3x3, C0->C1) + ReLU: ONE long-K GEMM --------
    w1 = cw_ref[:, A0:A1]                                  # (C1, 144) bf16
    b1 = cb_ref[:, 1:2]
    op1 = jnp.concatenate([fp0[:, G + o:G + o + L1] for o in OFFS], axis=0)
    o1 = jnp.maximum(jnp.dot(w1, op1, preferred_element_type=f32) + b1,
                     0.0) * mask                           # re-zero pad cells
    zg1 = jnp.zeros((C1, G), bf16)
    fp1 = jnp.concatenate([zg1, o1.astype(bf16), zg1], axis=1)

    # ---- conv2 (3x3, C1->C1) + 1x1 shortcut folded into the SAME GEMM ------
    w2s = cw_ref[:, A1:A2]                                 # (C1, 288+16) bf16
    b2s = cb_ref[:, 2:3]                                   # conv2 + shortcut bias
    op2 = jnp.concatenate(
        [fp1[:, G + o:G + o + L1] for o in OFFS] + [v1b], axis=0)   # (304, L1)
    r = jnp.maximum(jnp.dot(w2s, op2, preferred_element_type=f32) + b2s, 0.0)

    # ---- fused maxpool 2x2 #2 + AdaptiveAvgPool2d((None, 1)) ---------------
    rw = jnp.maximum(r[:, 0:LRW], r[:, 1:L1])              # w-direction max
    rh = jnp.maximum(rw[:, 0:LRH], rw[:, W1P:W1P + LRH])   # h-direction max
    # selection GEMM picks the 4 pooled rows per (t, b) and averages them
    x = jnp.dot(rh, sel_ref[...], preferred_element_type=f32).T   # (T*B, C1)

    # ---- two stacked BidirectionalLSTMs ------------------------------------
    # Both directions share one recurrent dot per step: block hidden state
    # h = [[h_f, 0], [0, h_b]] (2B, 2H) against stacked whh (2H, 4H).
    ones = jnp.ones((B, HID), f32)
    zeros = jnp.zeros((B, HID), f32)
    dmask = jnp.concatenate(
        [jnp.concatenate([ones, zeros], axis=1),
         jnp.concatenate([zeros, ones], axis=1)], axis=0)  # (2B, 2H)

    def bilstm(x_in, layer):
        in_dim = x_in.shape[1]
        base = layer * SEG
        wih = lstmw_ref[0:in_dim, base + WIH_OFF:base + WIH_OFF + 8 * HID]
        whh = lstmw_ref[:, base + WHH_OFF:base + WHH_OFF + 4 * HID]
        lwp = lstmw_ref[:, base + LW_OFF:base + LW_OFF + HID]
        bg = lstmb_ref[layer:layer + 1, 0:8 * HID]
        lbp = lstmb_ref[2:3, layer * HID:(layer + 1) * HID]

        # input gates for both directions in one lane-dense dot
        xg = jnp.dot(x_in.astype(jnp.bfloat16), wih,
                     preferred_element_type=f32) + bg      # (T*B, 8H)

        h = jnp.zeros((2 * B, 2 * HID), f32)
        c = jnp.zeros((2 * B, HID), f32)
        outs = []
        for s in range(T):                                 # fully unrolled
            tf, tb = s, T - 1 - s
            gx = jnp.concatenate(
                [xg[tf * B:(tf + 1) * B, 0:4 * HID],
                 xg[tb * B:(tb + 1) * B, 4 * HID:8 * HID]], axis=0)  # (2B, 4H)
            g = gx + jnp.dot(h.astype(jnp.bfloat16), whh,
                             preferred_element_type=f32)
            sg = jax.nn.sigmoid(g)                         # full-width EUP work
            th = jnp.tanh(g)
            c = sg[:, HID:2 * HID] * c + sg[:, 0:HID] * th[:, 2 * HID:3 * HID]
            hn = sg[:, 3 * HID:4 * HID] * jnp.tanh(c)      # (2B, H)
            outs.append(hn)
            h = jnp.concatenate([hn, hn], axis=1) * dmask  # re-block for next dot

        # assemble per-time outputs in registers (no VMEM round-trip)
        rec_f = jnp.concatenate([outs[t][0:B] for t in range(T)], axis=0)
        rec_b = jnp.concatenate([outs[T - 1 - t][B:2 * B] for t in range(T)],
                                axis=0)
        rec = jnp.concatenate([rec_f, rec_b], axis=1)      # (T*B, 2H)
        return jnp.dot(rec.astype(jnp.bfloat16), lwp,
                       preferred_element_type=f32) + lbp   # (T*B, H)

    y = bilstm(bilstm(x, 0), 1)

    # ---- CTC prediction linear, padded to 128 lanes (dense store) ----------
    pw = lstmw_ref[0:HID, PW_OFF:PW_OFF + NCP]
    pb = lstmb_ref[3:4, 0:NCP]
    out_ref[...] = jnp.dot(y.astype(jnp.bfloat16), pw,
                           preferred_element_type=f32) + pb


# ------------------------------ wrapper glue ---------------------------------
def _prep_image(image):
    """Split the padded image into its 4 pool phases, channel-major flat."""
    x = image.reshape(B, C_IN, H1, 2, W1, 2)
    x = x.transpose(1, 3, 5, 0, 2, 4)                      # (C, dh, dw, B, H1, W1)
    x = jnp.pad(x, ((0, C_INP - C_IN), (0, 0), (0, 0), (0, 0), (1, 1), (1, 1)))
    return x.reshape(C_INP, 4 * L1)                        # (8, 1440) f32


def _pack_params(params):
    """Pack the ~23 weight/bias tensors into 4 blobs (2 bf16, 2 f32)."""
    feat = params["feat"]
    bf16 = jnp.bfloat16
    f32 = jnp.float32

    # conv weights: input channels of conv0 zero-padded 4 -> 8
    w0 = jnp.pad(feat["conv0_w"], ((0, 0), (0, C_INP - C_IN), (0, 0), (0, 0)))
    w0 = w0.transpose(0, 2, 3, 1).reshape(C0, 9 * C_INP)
    w0 = jnp.pad(w0, ((0, C1 - C0), (0, 0)))
    w1 = feat["blk_conv1_w"].transpose(0, 2, 3, 1).reshape(C1, 9 * C0)
    w2 = feat["blk_conv2_w"].transpose(0, 2, 3, 1).reshape(C1, 9 * C1)
    ws = feat["blk_short_w"].reshape(C1, C0)
    cw = jnp.concatenate([w0, w1, jnp.concatenate([w2, ws], axis=1)],
                         axis=1).astype(bf16)              # (32, 520)

    b0 = jnp.pad(feat["conv0_b"], (0, C1 - C0)).reshape(C1, 1)
    b1 = feat["blk_conv1_b"].reshape(C1, 1)
    b2s = (feat["blk_conv2_b"] + feat["blk_short_b"]).reshape(C1, 1)
    cb = jnp.concatenate([b0, b1, b2s, jnp.zeros((C1, 1), f32)], axis=1)

    def lstm_pack(p, in_dim):
        wih = jnp.concatenate([p["w_ih_f"].T, p["w_ih_b"].T], axis=1)   # (in, 8H)
        wih = jnp.pad(wih, ((0, 2 * HID - in_dim), (0, 0)))
        whh = jnp.concatenate([p["w_hh_f"].T, p["w_hh_b"].T], axis=0)   # (2H, 4H)
        lwm = p["lin_w"].T                                              # (2H, H)
        seg = jnp.concatenate([wih, whh, lwm], axis=1)
        seg = jnp.pad(seg, ((0, 0), (0, SEG - seg.shape[1])))           # (64, 512)
        bg = jnp.concatenate([p["b_ih_f"] + p["b_hh_f"],
                              p["b_ih_b"] + p["b_hh_b"]])               # (8H,)
        return seg, bg, p["lin_b"]

    seg1, bg1, lb1 = lstm_pack(params["bilstm1"], C1)
    seg2, bg2, lb2 = lstm_pack(params["bilstm2"], HID)
    pw = jnp.pad(params["pred_w"].T, ((0, 2 * HID - HID), (0, NCP - NUM_CLASS)))
    lstm_w = jnp.concatenate([seg1, seg2, pw], axis=1).astype(bf16)     # (64, 1152)

    pb = jnp.pad(params["pred_b"], (0, NCP - NUM_CLASS))
    row2 = jnp.concatenate([lb1, lb2, jnp.zeros((8 * HID - 2 * HID,), f32)])
    row3 = jnp.concatenate([pb, jnp.zeros((8 * HID - NCP,), f32)])
    lstm_b = jnp.stack([bg1, bg2, row2, row3], axis=0)                  # (4, 256)
    return cw, cb, lstm_w, lstm_b


def model_forward(params, image, text=None, is_train=True):
    """Mirror of Model.forward (Trans='None', ResNet stand-in, BiLSTM, CTC)."""
    cw, cb, lstm_w, lstm_b = _pack_params(params)
    mask, sel = _pool_constants()
    img = _prep_image(image)

    out = pl.pallas_call(
        _ocr_fused_kernel,
        out_shape=jax.ShapeDtypeStruct((T * B, NCP), jnp.float32),
        cost_estimate=pl.CostEstimate(flops=15_000_000,
                                      transcendentals=20_000,
                                      bytes_accessed=260_000),
    )(img, cw, cb, mask, sel, lstm_w, lstm_b)

    # rows are (t, b); drop the lane padding and return (B, T, num_class)
    return out.reshape(T, B, NCP)[:, :, :NUM_CLASS].transpose(1, 0, 2)


# --------------------------- deterministic params ---------------------------
def _init(key, shape, scale=0.1):
    return scale * jax.random.normal(key, shape, dtype=jnp.float32)


def make_params(key):
    ks = iter(jax.random.split(key, 64))
    feat = {
        "conv0_w": _init(next(ks), (C0, INPUT_CHANNEL, 3, 3)),
        "conv0_b": _init(next(ks), (C0,)),
        "blk_conv1_w": _init(next(ks), (OUTPUT_CHANNEL, C0, 3, 3)),
        "blk_conv1_b": _init(next(ks), (OUTPUT_CHANNEL,)),
        "blk_conv2_w": _init(next(ks), (OUTPUT_CHANNEL, OUTPUT_CHANNEL, 3, 3)),
        "blk_conv2_b": _init(next(ks), (OUTPUT_CHANNEL,)),
        "blk_short_w": _init(next(ks), (OUTPUT_CHANNEL, C0, 1, 1)),
        "blk_short_b": _init(next(ks), (OUTPUT_CHANNEL,)),
    }

    def bilstm_params(in_dim, hidden, out_dim):
        return {
            "w_ih_f": _init(next(ks), (4 * hidden, in_dim)),
            "w_hh_f": _init(next(ks), (4 * hidden, hidden)),
            "b_ih_f": _init(next(ks), (4 * hidden,)),
            "b_hh_f": _init(next(ks), (4 * hidden,)),
            "w_ih_b": _init(next(ks), (4 * hidden, in_dim)),
            "w_hh_b": _init(next(ks), (4 * hidden, hidden)),
            "b_ih_b": _init(next(ks), (4 * hidden,)),
            "b_hh_b": _init(next(ks), (4 * hidden,)),
            "lin_w": _init(next(ks), (out_dim, 2 * hidden)),
            "lin_b": _init(next(ks), (out_dim,)),
        }

    return {
        "feat": feat,
        "bilstm1": bilstm_params(OUTPUT_CHANNEL, HIDDEN_SIZE, HIDDEN_SIZE),
        "bilstm2": bilstm_params(HIDDEN_SIZE, HIDDEN_SIZE, HIDDEN_SIZE),
        "pred_w": _init(next(ks), (NUM_CLASS, HIDDEN_SIZE)),
        "pred_b": _init(next(ks), (NUM_CLASS,)),
    }


# ---------------------------------- main -------------------------------------
if __name__ == "__main__":
    key = jax.random.PRNGKey(0)
    k_img, k_prm = jax.random.split(key)

    image = jax.random.normal(
        k_img, (BATCH, INPUT_CHANNEL, IMG_HEIGHT, IMG_WIDTH), dtype=jnp.float32
    )
    # `text` is unused by the CTC prediction branch (kept for interface parity).
    text = jnp.zeros((BATCH, 8), dtype=jnp.int32)
    params = make_params(k_prm)

    out = jax.jit(model_forward)(params, image, text)
    out = jax.block_until_ready(out)

    expected_T = (IMG_WIDTH // 2) // 2  # two 2x2 maxpools -> sequence length
    assert out.shape == (BATCH, expected_T, NUM_CLASS), out.shape
    assert bool(jnp.all(jnp.isfinite(out)))
    print("KERNEL_OK")
</pallas_src>

<mosaic_0001>
module attributes {stable_mosaic.version = 11 : i64} {
  func.func @_ocr_fused_kernel(%arg0: memref<8x1440xf32, #tpu.memory_space<vmem>>, %arg1: memref<32x520xbf16, #tpu.memory_space<vmem>>, %arg2: memref<32x4xf32, #tpu.memory_space<vmem>>, %arg3: memref<1x360xf32, #tpu.memory_space<vmem>>, %arg4: memref<341x16xf32, #tpu.memory_space<vmem>>, %arg5: memref<64x1152xbf16, #tpu.memory_space<vmem>>, %arg6: memref<4x256xf32, #tpu.memory_space<vmem>>, %arg7: memref<16x128xf32, #tpu.memory_space<vmem>>) attributes {dimension_semantics = [], scalar_prefetch = 0 : i64, scratch_operands = 0 : i64, tpu.core_type = #tpu.core_type<tc>} {
    %c0 = arith.constant 0 : index
    %c0_0 = arith.constant 0 : index
    %0 = vector.load %arg3[%c0, %c0_0] : memref<1x360xf32, #tpu.memory_space<vmem>>, vector<1x360xf32>
    %c0_1 = arith.constant 0 : index
    %c0_2 = arith.constant 0 : index
    %1 = vector.load %arg1[%c0_1, %c0_2] : memref<32x520xbf16, #tpu.memory_space<vmem>>, vector<16x72xbf16>
    %2 = arith.extf %1 : vector<16x72xbf16> to vector<16x72xf32>
    %c0_3 = arith.constant 0 : index
    %c0_4 = arith.constant 0 : index
    %3 = vector.load %arg2[%c0_3, %c0_4] : memref<32x4xf32, #tpu.memory_space<vmem>>, vector<16x1xf32>
    %c0_5 = arith.constant 0 : index
    %c1061 = arith.constant 1061 : index
    %4 = vector.load %arg0[%c0_5, %c1061] : memref<8x1440xf32, #tpu.memory_space<vmem>>, vector<8x360xf32>
    %c0_6 = arith.constant 0 : index
    %c702 = arith.constant 702 : index
    %5 = vector.load %arg0[%c0_6, %c702] : memref<8x1440xf32, #tpu.memory_space<vmem>>, vector<8x360xf32>
    %c0_7 = arith.constant 0 : index
    %c1062 = arith.constant 1062 : index
    %6 = vector.load %arg0[%c0_7, %c1062] : memref<8x1440xf32, #tpu.memory_space<vmem>>, vector<8x360xf32>
    %c0_8 = arith.constant 0 : index
    %c359 = arith.constant 359 : index
    %7 = vector.load %arg0[%c0_8, %c359] : memref<8x1440xf32, #tpu.memory_space<vmem>>, vector<8x360xf32>
    %c0_9 = arith.constant 0 : index
    %c0_10 = arith.constant 0 : index
    %8 = vector.load %arg0[%c0_9, %c0_10] : memref<8x1440xf32, #tpu.memory_space<vmem>>, vector<8x360xf32>
    %c0_11 = arith.constant 0 : index
    %c360 = arith.constant 360 : index
    %9 = vector.load %arg0[%c0_11, %c360] : memref<8x1440xf32, #tpu.memory_space<vmem>>, vector<8x360xf32>
    %c0_12 = arith.constant 0 : index
    %c1079 = arith.constant 1079 : index
    %10 = vector.load %arg0[%c0_12, %c1079] : memref<8x1440xf32, #tpu.memory_space<vmem>>, vector<8x360xf32>
    %c0_13 = arith.constant 0 : index
    %c720 = arith.constant 720 : index
    %11 = vector.load %arg0[%c0_13, %c720] : memref<8x1440xf32, #tpu.memory_space<vmem>>, vector<8x360xf32>
    %c0_14 = arith.constant 0 : index
    %c1080 = arith.constant 1080 : index
    %12 = vector.load %arg0[%c0_14, %c1080] : memref<8x1440xf32, #tpu.memory_space<vmem>>, vector<8x360xf32>
    %13 = tpu.concatenate %4, %5, %6, %7, %8, %9, %10, %11, %12 in 0 : vector<8x360xf32>, vector<8x360xf32>, vector<8x360xf32>, vector<8x360xf32>, vector<8x360xf32>, vector<8x360xf32>, vector<8x360xf32>, vector<8x360xf32>, vector<8x360xf32> -> vector<72x360xf32>
    %cst = arith.constant dense<0.000000e+00> : vector<16x360xf32>
    %14 = tpu.matmul %2, %13, %cst {dimension_numbers = #tpu.dot_dimension_numbers<[1], [0], [0], [1], [0, 0, 1, 1], [], []>} : vector<16x72xf32>, vector<72x360xf32>, vector<16x360xf32> -> vector<16x360xf32>
    %c0_15 = arith.constant 0 : index
    %c702_16 = arith.constant 702 : index
    %15 = vector.load %arg0[%c0_15, %c702_16] : memref<8x1440xf32, #tpu.memory_space<vmem>>, vector<8x360xf32>
    %c0_17 = arith.constant 0 : index
    %c1062_18 = arith.constant 1062 : index
    %16 = vector.load %arg0[%c0_17, %c1062_18] : memref<8x1440xf32, #tpu.memory_space<vmem>>, vector<8x360xf32>
    %c0_19 = arith.constant 0 : index
    %c703 = arith.constant 703 : index
    %17 = vector.load %arg0[%c0_19, %c703] : memref<8x1440xf32, #tpu.memory_space<vmem>>, vector<8x360xf32>
    %c0_20 = arith.constant 0 : index
    %c0_21 = arith.constant 0 : index
    %18 = vector.load %arg0[%c0_20, %c0_21] : memref<8x1440xf32, #tpu.memory_space<vmem>>, vector<8x360xf32>
    %c0_22 = arith.constant 0 : index
    %c360_23 = arith.constant 360 : index
    %19 = vector.load %arg0[%c0_22, %c360_23] : memref<8x1440xf32, #tpu.memory_space<vmem>>, vector<8x360xf32>
    %c0_24 = arith.constant 0 : index
    %c1 = arith.constant 1 : index
    %20 = vector.load %arg0[%c0_24, %c1] : memref<8x1440xf32, #tpu.memory_space<vmem>>, vector<8x360xf32>
    %c0_25 = arith.constant 0 : index
    %c720_26 = arith.constant 720 : index
    %21 = vector.load %arg0[%c0_25, %c720_26] : memref<8x1440xf32, #tpu.memory_space<vmem>>, vector<8x360xf32>
    %c0_27 = arith.constant 0 : index
    %c1080_28 = arith.constant 1080 : index
    %22 = vector.load %arg0[%c0_27, %c1080_28] : memref<8x1440xf32, #tpu.memory_space<vmem>>, vector<8x360xf32>
    %c0_29 = arith.constant 0 : index
    %c721 = arith.constant 721 : index
    %23 = vector.load %arg0[%c0_29, %c721] : memref<8x1440xf32, #tpu.memory_space<vmem>>, vector<8x360xf32>
    %24 = tpu.concatenate %15, %16, %17, %18, %19, %20, %21, %22, %23 in 0 : vector<8x360xf32>, vector<8x360xf32>, vector<8x360xf32>, vector<8x360xf32>, vector<8x360xf32>, vector<8x360xf32>, vector<8x360xf32>, vector<8x360xf32>, vector<8x360xf32> -> vector<72x360xf32>
    %cst_30 = arith.constant dense<0.000000e+00> : vector<16x360xf32>
    %25 = tpu.matmul %2, %24, %cst_30 {dimension_numbers = #tpu.dot_dimension_numbers<[1], [0], [0], [1], [0, 0, 1, 1], [], []>} : vector<16x72xf32>, vector<72x360xf32>, vector<16x360xf32> -> vector<16x360xf32>
    %c0_31 = arith.constant 0 : index
    %c359_32 = arith.constant 359 : index
    %26 = vector.load %arg0[%c0_31, %c359_32] : memref<8x1440xf32, #tpu.memory_space<vmem>>, vector<8x360xf32>
    %c0_33 = arith.constant 0 : index
    %c0_34 = arith.constant 0 : index
    %27 = vector.load %arg0[%c0_33, %c0_34] : memref<8x1440xf32, #tpu.memory_space<vmem>>, vector<8x360xf32>
    %c0_35 = arith.constant 0 : index
    %c360_36 = arith.constant 360 : index
    %28 = vector.load %arg0[%c0_35, %c360_36] : memref<8x1440xf32, #tpu.memory_space<vmem>>, vector<8x360xf32>
    %c0_37 = arith.constant 0 : index
    %c1079_38 = arith.constant 1079 : index
    %29 = vector.load %arg0[%c0_37, %c1079_38] : memref<8x1440xf32, #tpu.memory_space<vmem>>, vector<8x360xf32>
    %c0_39 = arith.constant 0 : index
    %c720_40 = arith.constant 720 : index
    %30 = vector.load %arg0[%c0_39, %c720_40] : memref<8x1440xf32, #tpu.memory_space<vmem>>, vector<8x360xf32>
    %c0_41 = arith.constant 0 : index
    %c1080_42 = arith.constant 1080 : index
    %31 = vector.load %arg0[%c0_41, %c1080_42] : memref<8x1440xf32, #tpu.memory_space<vmem>>, vector<8x360xf32>
    %c0_43 = arith.constant 0 : index
    %c377 = arith.constant 377 : index
    %32 = vector.load %arg0[%c0_43, %c377] : memref<8x1440xf32, #tpu.memory_space<vmem>>, vector<8x360xf32>
    %c0_44 = arith.constant 0 : index
    %c18 = arith.constant 18 : index
    %33 = vector.load %arg0[%c0_44, %c18] : memref<8x1440xf32, #tpu.memory_space<vmem>>, vector<8x360xf32>
    %c0_45 = arith.constant 0 : index
    %c378 = arith.constant 378 : index
    %34 = vector.load %arg0[%c0_45, %c378] : memref<8x1440xf32, #tpu.memory_space<vmem>>, vector<8x360xf32>
    %35 = tpu.concatenate %26, %27, %28, %29, %30, %31, %32, %33, %34 in 0 : vector<8x360xf32>, vector<8x360xf32>, vector<8x360xf32>, vector<8x360xf32>, vector<8x360xf32>, vector<8x360xf32>, vector<8x360xf32>, vector<8x360xf32>, vector<8x360xf32> -> vector<72x360xf32>
    %cst_46 = arith.constant dense<0.000000e+00> : vector<16x360xf32>
    %36 = tpu.matmul %2, %35, %cst_46 {dimension_numbers = #tpu.dot_dimension_numbers<[1], [0], [0], [1], [0, 0, 1, 1], [], []>} : vector<16x72xf32>, vector<72x360xf32>, vector<16x360xf32> -> vector<16x360xf32>
    %c0_47 = arith.constant 0 : index
    %c0_48 = arith.constant 0 : index
    %37 = vector.load %arg0[%c0_47, %c0_48] : memref<8x1440xf32, #tpu.memory_space<vmem>>, vector<8x360xf32>
    %c0_49 = arith.constant 0 : index
    %c360_50 = arith.constant 360 : index
    %38 = vector.load %arg0[%c0_49, %c360_50] : memref<8x1440xf32, #tpu.memory_space<vmem>>, vector<8x360xf32>
    %c0_51 = arith.constant 0 : index
    %c1_52 = arith.constant 1 : index
    %39 = vector.load %arg0[%c0_51, %c1_52] : memref<8x1440xf32, #tpu.memory_space<vmem>>, vector<8x360xf32>
    %c0_53 = arith.constant 0 : index
    %c720_54 = arith.constant 720 : index
    %40 = vector.load %arg0[%c0_53, %c720_54] : memref<8x1440xf32, #tpu.memory_space<vmem>>, vector<8x360xf32>
    %c0_55 = arith.constant 0 : index
    %c1080_56 = arith.constant 1080 : index
    %41 = vector.load %arg0[%c0_55, %c1080_56] : memref<8x1440xf32, #tpu.memory_space<vmem>>, vector<8x360xf32>
    %c0_57 = arith.constant 0 : index
    %c721_58 = arith.constant 721 : index
    %42 = vector.load %arg0[%c0_57, %c721_58] : memref<8x1440xf32, #tpu.memory_space<vmem>>, vector<8x360xf32>
    %c0_59 = arith.constant 0 : index
    %c18_60 = arith.constant 18 : index
    %43 = vector.load %arg0[%c0_59, %c18_60] : memref<8x1440xf32, #tpu.memory_space<vmem>>, vector<8x360xf32>
    %c0_61 = arith.constant 0 : index
    %c378_62 = arith.constant 378 : index
    %44 = vector.load %arg0[%c0_61, %c378_62] : memref<8x1440xf32, #tpu.memory_space<vmem>>, vector<8x360xf32>
    %c0_63 = arith.constant 0 : index
    %c19 = arith.constant 19 : index
    %45 = vector.load %arg0[%c0_63, %c19] : memref<8x1440xf32, #tpu.memory_space<vmem>>, vector<8x360xf32>
    %46 = tpu.concatenate %37, %38, %39, %40, %41, %42, %43, %44, %45 in 0 : vector<8x360xf32>, vector<8x360xf32>, vector<8x360xf32>, vector<8x360xf32>, vector<8x360xf32>, vector<8x360xf32>, vector<8x360xf32>, vector<8x360xf32>, vector<8x360xf32> -> vector<72x360xf32>
    %cst_64 = arith.constant dense<0.000000e+00> : vector<16x360xf32>
    %47 = tpu.matmul %2, %46, %cst_64 {dimension_numbers = #tpu.dot_dimension_numbers<[1], [0], [0], [1], [0, 0, 1, 1], [], []>} : vector<16x72xf32>, vector<72x360xf32>, vector<16x360xf32> -> vector<16x360xf32>
    %48 = arith.maximumf %14, %25 : vector<16x360xf32>
    %49 = arith.maximumf %36, %47 : vector<16x360xf32>
    %50 = arith.maximumf %48, %49 : vector<16x360xf32>
    %51 = vector.broadcast %3 : vector<16x1xf32> to vector<16x360xf32>
    %52 = arith.addf %50, %51 : vector<16x360xf32>
    %cst_65 = arith.constant 0.000000e+00 : f32
    %53 = vector.broadcast %cst_65 : f32 to vector<16x360xf32>
    %54 = arith.maximumf %52, %53 : vector<16x360xf32>
    %55 = vector.broadcast %0 : vector<1x360xf32> to vector<16x360xf32>
    %56 = arith.mulf %54, %55 : vector<16x360xf32>
    %57 = arith.truncf %56 : vector<16x360xf32> to vector<16x360xbf16>
    %cst_66 = arith.constant 0.000000e+00 : bf16
    %58 = vector.broadcast %cst_66 : bf16 to vector<16x19xbf16>
    %59 = tpu.concatenate %58, %57, %58 in 1 : vector<16x19xbf16>, vector<16x360xbf16>, vector<16x19xbf16> -> vector<16x398xbf16>
    %c0_67 = arith.constant 0 : index
    %c72 = arith.constant 72 : index
    %60 = vector.load %arg1[%c0_67, %c72] : memref<32x520xbf16, #tpu.memory_space<vmem>>, vector<32x144xbf16>
    %c0_68 = arith.constant 0 : index
    %c1_69 = arith.constant 1 : index
    %61 = vector.load %arg2[%c0_68, %c1_69] : memref<32x4xf32, #tpu.memory_space<vmem>>, vector<32x1xf32>
    %62 = vector.extract_strided_slice %59 {offsets = [0, 0], sizes = [16, 360], strides = [1, 1]} : vector<16x398xbf16> to vector<16x360xbf16>
    %63 = vector.extract_strided_slice %59 {offsets = [0, 1], sizes = [16, 360], strides = [1, 1]} : vector<16x398xbf16> to vector<16x360xbf16>
    %64 = vector.extract_strided_slice %59 {offsets = [0, 2], sizes = [16, 360], strides = [1, 1]} : vector<16x398xbf16> to vector<16x360xbf16>
    %65 = vector.extract_strided_slice %59 {offsets = [0, 18], sizes = [16, 360], strides = [1, 1]} : vector<16x398xbf16> to vector<16x360xbf16>
    %66 = vector.extract_strided_slice %59 {offsets = [0, 19], sizes = [16, 360], strides = [1, 1]} : vector<16x398xbf16> to vector<16x360xbf16>
    %67 = vector.extract_strided_slice %59 {offsets = [0, 20], sizes = [16, 360], strides = [1, 1]} : vector<16x398xbf16> to vector<16x360xbf16>
    %68 = vector.extract_strided_slice %59 {offsets = [0, 36], sizes = [16, 360], strides = [1, 1]} : vector<16x398xbf16> to vector<16x360xbf16>
    %69 = vector.extract_strided_slice %59 {offsets = [0, 37], sizes = [16, 360], strides = [1, 1]} : vector<16x398xbf16> to vector<16x360xbf16>
    %70 = vector.extract_strided_slice %59 {offsets = [0, 38], sizes = [16, 360], strides = [1, 1]} : vector<16x398xbf16> to vector<16x360xbf16>
    %71 = tpu.concatenate %62, %63, %64, %65, %66, %67, %68, %69, %70 in 0 : vector<16x360xbf16>, vector<16x360xbf16>, vector<16x360xbf16>, vector<16x360xbf16>, vector<16x360xbf16>, vector<16x360xbf16>, vector<16x360xbf16>, vector<16x360xbf16>, vector<16x360xbf16> -> vector<144x360xbf16>
    %cst_70 = arith.constant dense<0.000000e+00> : vector<32x360xf32>
    %72 = tpu.matmul %60, %71, %cst_70 {dimension_numbers = #tpu.dot_dimension_numbers<[1], [0], [0], [1], [0, 0, 1, 1], [], []>} : vector<32x144xbf16>, vector<144x360xbf16>, vector<32x360xf32> -> vector<32x360xf32>
    %73 = vector.broadcast %61 : vector<32x1xf32> to vector<32x360xf32>
    %74 = arith.addf %72, %73 : vector<32x360xf32>
    %cst_71 = arith.constant 0.000000e+00 : f32
    %75 = vector.broadcast %cst_71 : f32 to vector<32x360xf32>
    %76 = arith.maximumf %74, %75 : vector<32x360xf32>
    %77 = vector.broadcast %0 : vector<1x360xf32> to vector<32x360xf32>
    %78 = arith.mulf %76, %77 : vector<32x360xf32>
    %cst_72 = arith.constant 0.000000e+00 : bf16
    %79 = vector.broadcast %cst_72 : bf16 to vector<32x19xbf16>
    %80 = arith.truncf %78 : vector<32x360xf32> to vector<32x360xbf16>
    %81 = tpu.concatenate %79, %80, %79 in 1 : vector<32x19xbf16>, vector<32x360xbf16>, vector<32x19xbf16> -> vector<32x398xbf16>
    %c0_73 = arith.constant 0 : index
    %c216 = arith.constant 216 : index
    %82 = vector.load %arg1[%c0_73, %c216] : memref<32x520xbf16, #tpu.memory_space<vmem>>, vector<32x304xbf16>
    %c0_74 = arith.constant 0 : index
    %c2 = arith.constant 2 : index
    %83 = vector.load %arg2[%c0_74, %c2] : memref<32x4xf32, #tpu.memory_space<vmem>>, vector<32x1xf32>
    %84 = vector.extract_strided_slice %81 {offsets = [0, 0], sizes = [32, 360], strides = [1, 1]} : vector<32x398xbf16> to vector<32x360xbf16>
    %85 = vector.extract_strided_slice %81 {offsets = [0, 1], sizes = [32, 360], strides = [1, 1]} : vector<32x398xbf16> to vector<32x360xbf16>
    %86 = vector.extract_strided_slice %81 {offsets = [0, 2], sizes = [32, 360], strides = [1, 1]} : vector<32x398xbf16> to vector<32x360xbf16>
    %87 = vector.extract_strided_slice %81 {offsets = [0, 18], sizes = [32, 360], strides = [1, 1]} : vector<32x398xbf16> to vector<32x360xbf16>
    %88 = vector.extract_strided_slice %81 {offsets = [0, 19], sizes = [32, 360], strides = [1, 1]} : vector<32x398xbf16> to vector<32x360xbf16>
    %89 = vector.extract_strided_slice %81 {offsets = [0, 20], sizes = [32, 360], strides = [1, 1]} : vector<32x398xbf16> to vector<32x360xbf16>
    %90 = vector.extract_strided_slice %81 {offsets = [0, 36], sizes = [32, 360], strides = [1, 1]} : vector<32x398xbf16> to vector<32x360xbf16>
    %91 = vector.extract_strided_slice %81 {offsets = [0, 37], sizes = [32, 360], strides = [1, 1]} : vector<32x398xbf16> to vector<32x360xbf16>
    %92 = vector.extract_strided_slice %81 {offsets = [0, 38], sizes = [32, 360], strides = [1, 1]} : vector<32x398xbf16> to vector<32x360xbf16>
    %93 = tpu.concatenate %84, %85, %86, %87, %88, %89, %90, %91, %92, %57 in 0 : vector<32x360xbf16>, vector<32x360xbf16>, vector<32x360xbf16>, vector<32x360xbf16>, vector<32x360xbf16>, vector<32x360xbf16>, vector<32x360xbf16>, vector<32x360xbf16>, vector<32x360xbf16>, vector<16x360xbf16> -> vector<304x360xbf16>
    %cst_75 = arith.constant dense<0.000000e+00> : vector<32x360xf32>
    %94 = tpu.matmul %82, %93, %cst_75 {dimension_numbers = #tpu.dot_dimension_numbers<[1], [0], [0], [1], [0, 0, 1, 1], [], []>} : vector<32x304xbf16>, vector<304x360xbf16>, vector<32x360xf32> -> vector<32x360xf32>
    %95 = vector.broadcast %83 : vector<32x1xf32> to vector<32x360xf32>
    %96 = arith.addf %94, %95 : vector<32x360xf32>
    %cst_76 = arith.constant 0.000000e+00 : f32
    %97 = vector.broadcast %cst_76 : f32 to vector<32x360xf32>
    %98 = arith.maximumf %96, %97 : vector<32x360xf32>
    %99 = vector.extract_strided_slice %98 {offsets = [0, 0], sizes = [32, 359], strides = [1, 1]} : vector<32x360xf32> to vector<32x359xf32>
    %100 = vector.extract_strided_slice %98 {offsets = [0, 1], sizes = [32, 359], strides = [1, 1]} : vector<32x360xf32> to vector<32x359xf32>
    %101 = arith.maximumf %99, %100 : vector<32x359xf32>
    %102 = vector.extract_strided_slice %101 {offsets = [0, 0], sizes = [32, 341], strides = [1, 1]} : vector<32x359xf32> to vector<32x341xf32>
    %103 = vector.extract_strided_slice %101 {offsets = [0, 18], sizes = [32, 341], strides = [1, 1]} : vector<32x359xf32> to vector<32x341xf32>
    %104 = arith.maximumf %102, %103 : vector<32x341xf32>
    %c0_77 = arith.constant 0 : index
    %c0_78 = arith.constant 0 : index
    %105 = vector.load %arg4[%c0_77, %c0_78] : memref<341x16xf32, #tpu.memory_space<vmem>>, vector<341x16xf32>
    %cst_79 = arith.constant dense<0.000000e+00> : vector<32x16xf32>
    %106 = tpu.matmul %104, %105, %cst_79 {dimension_numbers = #tpu.dot_dimension_numbers<[1], [0], [0], [1], [0, 0, 1, 1], [], []>} : vector<32x341xf32>, vector<341x16xf32>, vector<32x16xf32> -> vector<32x16xf32>
    %107 = tpu.transpose %106, [1, 0] : vector<32x16xf32> -> vector<16x32xf32>
    %cst_80 = arith.constant 1.000000e+00 : f32
    %108 = vector.broadcast %cst_80 : f32 to vector<2x32xf32>
    %cst_81 = arith.constant 0.000000e+00 : f32
    %109 = vector.broadcast %cst_81 : f32 to vector<2x32xf32>
    %110 = tpu.concatenate %108, %109 in 1 : vector<2x32xf32>, vector<2x32xf32> -> vector<2x64xf32>
    %111 = tpu.concatenate %109, %108 in 1 : vector<2x32xf32>, vector<2x32xf32> -> vector<2x64xf32>
    %112 = tpu.concatenate %110, %111 in 0 : vector<2x64xf32>, vector<2x64xf32> -> vector<4x64xf32>
    %c0_82 = arith.constant 0 : index
    %c0_83 = arith.constant 0 : index
    %113 = vector.load %arg5[%c0_82, %c0_83] : memref<64x1152xbf16, #tpu.memory_space<vmem>>, vector<32x256xbf16>
    %c0_84 = arith.constant 0 : index
    %c256 = arith.constant 256 : index
    %114 = vector.load %arg5[%c0_84, %c256] : memref<64x1152xbf16, #tpu.memory_space<vmem>>, vector<64x128xbf16>
    %c0_85 = arith.constant 0 : index
    %c384 = arith.constant 384 : index
    %115 = vector.load %arg5[%c0_85, %c384] : memref<64x1152xbf16, #tpu.memory_space<vmem>>, vector<64x32xbf16>
    %c0_86 = arith.constant 0 : index
    %c0_87 = arith.constant 0 : index
    %116 = vector.load %arg6[%c0_86, %c0_87] : memref<4x256xf32, #tpu.memory_space<vmem>>, vector<1x256xf32>
    %c2_88 = arith.constant 2 : index
    %c0_89 = arith.constant 0 : index
    %117 = vector.load %arg6[%c2_88, %c0_89] : memref<4x256xf32, #tpu.memory_space<vmem>>, vector<1x32xf32>
    %118 = arith.truncf %107 : vector<16x32xf32> to vector<16x32xbf16>
    %cst_90 = arith.constant dense<0.000000e+00> : vector<16x256xf32>
    %119 = tpu.matmul %118, %113, %cst_90 {dimension_numbers = #tpu.dot_dimension_numbers<[1], [0], [0], [1], [0, 0, 1, 1], [], []>} : vector<16x32xbf16>, vector<32x256xbf16>, vector<16x256xf32> -> vector<16x256xf32>
    %120 = vector.broadcast %116 : vector<1x256xf32> to vector<16x256xf32>
    %121 = arith.addf %119, %120 : vector<16x256xf32>
    %cst_91 = arith.constant 0.000000e+00 : f32
    %122 = vector.broadcast %cst_91 : f32 to vector<4x64xf32>
    %cst_92 = arith.constant 0.000000e+00 : f32
    %123 = vector.broadcast %cst_92 : f32 to vector<4x32xf32>
    %124 = vector.extract_strided_slice %121 {offsets = [0, 0], sizes = [2, 128], strides = [1, 1]} : vector<16x256xf32> to vector<2x128xf32>
    %125 = vector.extract_strided_slice %121 {offsets = [14, 128], sizes = [2, 128], strides = [1, 1]} : vector<16x256xf32> to vector<2x128xf32>
    %126 = tpu.concatenate %124, %125 in 0 : vector<2x128xf32>, vector<2x128xf32> -> vector<4x128xf32>
    %127 = arith.truncf %122 : vector<4x64xf32> to vector<4x64xbf16>
    %cst_93 = arith.constant dense<0.000000e+00> : vector<4x128xf32>
    %128 = tpu.matmul %127, %114, %cst_93 {dimension_numbers = #tpu.dot_dimension_numbers<[1], [0], [0], [1], [0, 0, 1, 1], [], []>} : vector<4x64xbf16>, vector<64x128xbf16>, vector<4x128xf32> -> vector<4x128xf32>
    %129 = arith.addf %126, %128 : vector<4x128xf32>
    %130 = arith.negf %129 : vector<4x128xf32>
    %131 = math.exp %130 : vector<4x128xf32>
    %cst_94 = arith.constant 1.000000e+00 : f32
    %132 = vector.broadcast %cst_94 : f32 to vector<4x128xf32>
    %133 = arith.addf %132, %131 : vector<4x128xf32>
    %134 = arith.divf %132, %133 : vector<4x128xf32>
    %135 = math.tanh %129 : vector<4x128xf32>
    %136 = vector.extract_strided_slice %134 {offsets = [0, 32], sizes = [4, 32], strides = [1, 1]} : vector<4x128xf32> to vector<4x32xf32>
    %137 = arith.mulf %136, %123 : vector<4x32xf32>
    %138 = vector.extract_strided_slice %134 {offsets = [0, 0], sizes = [4, 32], strides = [1, 1]} : vector<4x128xf32> to vector<4x32xf32>
    %139 = vector.extract_strided_slice %135 {offsets = [0, 64], sizes = [4, 32], strides = [1, 1]} : vector<4x128xf32> to vector<4x32xf32>
    %140 = arith.mulf %138, %139 : vector<4x32xf32>
    %141 = arith.addf %137, %140 : vector<4x32xf32>
    %142 = vector.extract_strided_slice %134 {offsets = [0, 96], sizes = [4, 32], strides = [1, 1]} : vector<4x128xf32> to vector<4x32xf32>
    %143 = math.tanh %141 : vector<4x32xf32>
    %144 = arith.mulf %142, %143 : vector<4x32xf32>
    %145 = tpu.concatenate %144, %144 in 1 : vector<4x32xf32>, vector<4x32xf32> -> vector<4x64xf32>
    %146 = arith.mulf %145, %112 : vector<4x64xf32>
    %147 = vector.extract_strided_slice %121 {offsets = [2, 0], sizes = [2, 128], strides = [1, 1]} : vector<16x256xf32> to vector<2x128xf32>
    %148 = vector.extract_strided_slice %121 {offsets = [12, 128], sizes = [2, 128], strides = [1, 1]} : vector<16x256xf32> to vector<2x128xf32>
    %149 = tpu.concatenate %147, %148 in 0 : vector<2x128xf32>, vector<2x128xf32> -> vector<4x128xf32>
    %150 = arith.truncf %146 : vector<4x64xf32> to vector<4x64xbf16>
    %cst_95 = arith.constant dense<0.000000e+00> : vector<4x128xf32>
    %151 = tpu.matmul %150, %114, %cst_95 {dimension_numbers = #tpu.dot_dimension_numbers<[1], [0], [0], [1], [0, 0, 1, 1], [], []>} : vector<4x64xbf16>, vector<64x128xbf16>, vector<4x128xf32> -> vector<4x128xf32>
    %152 = arith.addf %149, %151 : vector<4x128xf32>
    %153 = arith.negf %152 : vector<4x128xf32>
    %154 = math.exp %153 : vector<4x128xf32>
    %cst_96 = arith.constant 1.000000e+00 : f32
    %155 = vector.broadcast %cst_96 : f32 to vector<4x128xf32>
    %156 = arith.addf %155, %154 : vector<4x128xf32>
    %157 = arith.divf %155, %156 : vector<4x128xf32>
    %158 = math.tanh %152 : vector<4x128xf32>
    %159 = vector.extract_strided_slice %157 {offsets = [0, 32], sizes = [4, 32], strides = [1, 1]} : vector<4x128xf32> to vector<4x32xf32>
    %160 = arith.mulf %159, %141 : vector<4x32xf32>
    %161 = vector.extract_strided_slice %157 {offsets = [0, 0], sizes = [4, 32], strides = [1, 1]} : vector<4x128xf32> to vector<4x32xf32>
    %162 = vector.extract_strided_slice %158 {offsets = [0, 64], sizes = [4, 32], strides = [1, 1]} : vector<4x128xf32> to vector<4x32xf32>
    %163 = arith.mulf %161, %162 : vector<4x32xf32>
    %164 = arith.addf %160, %163 : vector<4x32xf32>
    %165 = vector.extract_strided_slice %157 {offsets = [0, 96], sizes = [4, 32], strides = [1, 1]} : vector<4x128xf32> to vector<4x32xf32>
    %166 = math.tanh %164 : vector<4x32xf32>
    %167 = arith.mulf %165, %166 : vector<4x32xf32>
    %168 = tpu.concatenate %167, %167 in 1 : vector<4x32xf32>, vector<4x32xf32> -> vector<4x64xf32>
    %169 = arith.mulf %168, %112 : vector<4x64xf32>
    %170 = vector.extract_strided_slice %121 {offsets = [4, 0], sizes = [2, 128], strides = [1, 1]} : vector<16x256xf32> to vector<2x128xf32>
    %171 = vector.extract_strided_slice %121 {offsets = [10, 128], sizes = [2, 128], strides = [1, 1]} : vector<16x256xf32> to vector<2x128xf32>
    %172 = tpu.concatenate %170, %171 in 0 : vector<2x128xf32>, vector<2x128xf32> -> vector<4x128xf32>
    %173 = arith.truncf %169 : vector<4x64xf32> to vector<4x64xbf16>
    %cst_97 = arith.constant dense<0.000000e+00> : vector<4x128xf32>
    %174 = tpu.matmul %173, %114, %cst_97 {dimension_numbers = #tpu.dot_dimension_numbers<[1], [0], [0], [1], [0, 0, 1, 1], [], []>} : vector<4x64xbf16>, vector<64x128xbf16>, vector<4x128xf32> -> vector<4x128xf32>
    %175 = arith.addf %172, %174 : vector<4x128xf32>
    %176 = arith.negf %175 : vector<4x128xf32>
    %177 = math.exp %176 : vector<4x128xf32>
    %cst_98 = arith.constant 1.000000e+00 : f32
    %178 = vector.broadcast %cst_98 : f32 to vector<4x128xf32>
    %179 = arith.addf %178, %177 : vector<4x128xf32>
    %180 = arith.divf %178, %179 : vector<4x128xf32>
    %181 = math.tanh %175 : vector<4x128xf32>
    %182 = vector.extract_strided_slice %180 {offsets = [0, 32], sizes = [4, 32], strides = [1, 1]} : vector<4x128xf32> to vector<4x32xf32>
    %183 = arith.mulf %182, %164 : vector<4x32xf32>
    %184 = vector.extract_strided_slice %180 {offsets = [0, 0], sizes = [4, 32], strides = [1, 1]} : vector<4x128xf32> to vector<4x32xf32>
    %185 = vector.extract_strided_slice %181 {offsets = [0, 64], sizes = [4, 32], strides = [1, 1]} : vector<4x128xf32> to vector<4x32xf32>
    %186 = arith.mulf %184, %185 : vector<4x32xf32>
    %187 = arith.addf %183, %186 : vector<4x32xf32>
    %188 = vector.extract_strided_slice %180 {offsets = [0, 96], sizes = [4, 32], strides = [1, 1]} : vector<4x128xf32> to vector<4x32xf32>
    %189 = math.tanh %187 : vector<4x32xf32>
    %190 = arith.mulf %188, %189 : vector<4x32xf32>
    %191 = tpu.concatenate %190, %190 in 1 : vector<4x32xf32>, vector<4x32xf32> -> vector<4x64xf32>
    %192 = arith.mulf %191, %112 : vector<4x64xf32>
    %193 = vector.extract_strided_slice %121 {offsets = [6, 0], sizes = [2, 128], strides = [1, 1]} : vector<16x256xf32> to vector<2x128xf32>
    %194 = vector.extract_strided_slice %121 {offsets = [8, 128], sizes = [2, 128], strides = [1, 1]} : vector<16x256xf32> to vector<2x128xf32>
    %195 = tpu.concatenate %193, %194 in 0 : vector<2x128xf32>, vector<2x128xf32> -> vector<4x128xf32>
    %196 = arith.truncf %192 : vector<4x64xf32> to vector<4x64xbf16>
    %cst_99 = arith.constant dense<0.000000e+00> : vector<4x128xf32>
    %197 = tpu.matmul %196, %114, %cst_99 {dimension_numbers = #tpu.dot_dimension_numbers<[1], [0], [0], [1], [0, 0, 1, 1], [], []>} : vector<4x64xbf16>, vector<64x128xbf16>, vector<4x128xf32> -> vector<4x128xf32>
    %198 = arith.addf %195, %197 : vector<4x128xf32>
    %199 = arith.negf %198 : vector<4x128xf32>
    %200 = math.exp %199 : vector<4x128xf32>
    %cst_100 = arith.constant 1.000000e+00 : f32
    %201 = vector.broadcast %cst_100 : f32 to vector<4x128xf32>
    %202 = arith.addf %201, %200 : vector<4x128xf32>
    %203 = arith.divf %201, %202 : vector<4x128xf32>
    %204 = math.tanh %198 : vector<4x128xf32>
    %205 = vector.extract_strided_slice %203 {offsets = [0, 32], sizes = [4, 32], strides = [1, 1]} : vector<4x128xf32> to vector<4x32xf32>
    %206 = arith.mulf %205, %187 : vector<4x32xf32>
    %207 = vector.extract_strided_slice %203 {offsets = [0, 0], sizes = [4, 32], strides = [1, 1]} : vector<4x128xf32> to vector<4x32xf32>
    %208 = vector.extract_strided_slice %204 {offsets = [0, 64], sizes = [4, 32], strides = [1, 1]} : vector<4x128xf32> to vector<4x32xf32>
    %209 = arith.mulf %207, %208 : vector<4x32xf32>
    %210 = arith.addf %206, %209 : vector<4x32xf32>
    %211 = vector.extract_strided_slice %203 {offsets = [0, 96], sizes = [4, 32], strides = [1, 1]} : vector<4x128xf32> to vector<4x32xf32>
    %212 = math.tanh %210 : vector<4x32xf32>
    %213 = arith.mulf %211, %212 : vector<4x32xf32>
    %214 = tpu.concatenate %213, %213 in 1 : vector<4x32xf32>, vector<4x32xf32> -> vector<4x64xf32>
    %215 = arith.mulf %214, %112 : vector<4x64xf32>
    %216 = vector.extract_strided_slice %121 {offsets = [8, 0], sizes = [2, 128], strides = [1, 1]} : vector<16x256xf32> to vector<2x128xf32>
    %217 = vector.extract_strided_slice %121 {offsets = [6, 128], sizes = [2, 128], strides = [1, 1]} : vector<16x256xf32> to vector<2x128xf32>
    %218 = tpu.concatenate %216, %217 in 0 : vector<2x128xf32>, vector<2x128xf32> -> vector<4x128xf32>
    %219 = arith.truncf %215 : vector<4x64xf32> to vector<4x64xbf16>
    %cst_101 = arith.constant dense<0.000000e+00> : vector<4x128xf32>
    %220 = tpu.matmul %219, %114, %cst_101 {dimension_numbers = #tpu.dot_dimension_numbers<[1], [0], [0], [1], [0, 0, 1, 1], [], []>} : vector<4x64xbf16>, vector<64x128xbf16>, vector<4x128xf32> -> vector<4x128xf32>
    %221 = arith.addf %218, %220 : vector<4x128xf32>
    %222 = arith.negf %221 : vector<4x128xf32>
    %223 = math.exp %222 : vector<4x128xf32>
    %cst_102 = arith.constant 1.000000e+00 : f32
    %224 = vector.broadcast %cst_102 : f32 to vector<4x128xf32>
    %225 = arith.addf %224, %223 : vector<4x128xf32>
    %226 = arith.divf %224, %225 : vector<4x128xf32>
    %227 = math.tanh %221 : vector<4x128xf32>
    %228 = vector.extract_strided_slice %226 {offsets = [0, 32], sizes = [4, 32], strides = [1, 1]} : vector<4x128xf32> to vector<4x32xf32>
    %229 = arith.mulf %228, %210 : vector<4x32xf32>
    %230 = vector.extract_strided_slice %226 {offsets = [0, 0], sizes = [4, 32], strides = [1, 1]} : vector<4x128xf32> to vector<4x32xf32>
    %231 = vector.extract_strided_slice %227 {offsets = [0, 64], sizes = [4, 32], strides = [1, 1]} : vector<4x128xf32> to vector<4x32xf32>
    %232 = arith.mulf %230, %231 : vector<4x32xf32>
    %233 = arith.addf %229, %232 : vector<4x32xf32>
    %234 = vector.extract_strided_slice %226 {offsets = [0, 96], sizes = [4, 32], strides = [1, 1]} : vector<4x128xf32> to vector<4x32xf32>
    %235 = math.tanh %233 : vector<4x32xf32>
    %236 = arith.mulf %234, %235 : vector<4x32xf32>
    %237 = tpu.concatenate %236, %236 in 1 : vector<4x32xf32>, vector<4x32xf32> -> vector<4x64xf32>
    %238 = arith.mulf %237, %112 : vector<4x64xf32>
    %239 = vector.extract_strided_slice %121 {offsets = [10, 0], sizes = [2, 128], strides = [1, 1]} : vector<16x256xf32> to vector<2x128xf32>
    %240 = vector.extract_strided_slice %121 {offsets = [4, 128], sizes = [2, 128], strides = [1, 1]} : vector<16x256xf32> to vector<2x128xf32>
    %241 = tpu.concatenate %239, %240 in 0 : vector<2x128xf32>, vector<2x128xf32> -> vector<4x128xf32>
    %242 = arith.truncf %238 : vector<4x64xf32> to vector<4x64xbf16>
    %cst_103 = arith.constant dense<0.000000e+00> : vector<4x128xf32>
    %243 = tpu.matmul %242, %114, %cst_103 {dimension_numbers = #tpu.dot_dimension_numbers<[1], [0], [0], [1], [0, 0, 1, 1], [], []>} : vector<4x64xbf16>, vector<64x128xbf16>, vector<4x128xf32> -> vector<4x128xf32>
    %244 = arith.addf %241, %243 : vector<4x128xf32>
    %245 = arith.negf %244 : vector<4x128xf32>
    %246 = math.exp %245 : vector<4x128xf32>
    %cst_104 = arith.constant 1.000000e+00 : f32
    %247 = vector.broadcast %cst_104 : f32 to vector<4x128xf32>
    %248 = arith.addf %247, %246 : vector<4x128xf32>
    %249 = arith.divf %247, %248 : vector<4x128xf32>
    %250 = math.tanh %244 : vector<4x128xf32>
    %251 = vector.extract_strided_slice %249 {offsets = [0, 32], sizes = [4, 32], strides = [1, 1]} : vector<4x128xf32> to vector<4x32xf32>
    %252 = arith.mulf %251, %233 : vector<4x32xf32>
    %253 = vector.extract_strided_slice %249 {offsets = [0, 0], sizes = [4, 32], strides = [1, 1]} : vector<4x128xf32> to vector<4x32xf32>
    %254 = vector.extract_strided_slice %250 {offsets = [0, 64], sizes = [4, 32], strides = [1, 1]} : vector<4x128xf32> to vector<4x32xf32>
    %255 = arith.mulf %253, %254 : vector<4x32xf32>
    %256 = arith.addf %252, %255 : vector<4x32xf32>
    %257 = vector.extract_strided_slice %249 {offsets = [0, 96], sizes = [4, 32], strides = [1, 1]} : vector<4x128xf32> to vector<4x32xf32>
    %258 = math.tanh %256 : vector<4x32xf32>
    %259 = arith.mulf %257, %258 : vector<4x32xf32>
    %260 = tpu.concatenate %259, %259 in 1 : vector<4x32xf32>, vector<4x32xf32> -> vector<4x64xf32>
    %261 = arith.mulf %260, %112 : vector<4x64xf32>
    %262 = vector.extract_strided_slice %121 {offsets = [12, 0], sizes = [2, 128], strides = [1, 1]} : vector<16x256xf32> to vector<2x128xf32>
    %263 = vector.extract_strided_slice %121 {offsets = [2, 128], sizes = [2, 128], strides = [1, 1]} : vector<16x256xf32> to vector<2x128xf32>
    %264 = tpu.concatenate %262, %263 in 0 : vector<2x128xf32>, vector<2x128xf32> -> vector<4x128xf32>
    %265 = arith.truncf %261 : vector<4x64xf32> to vector<4x64xbf16>
    %cst_105 = arith.constant dense<0.000000e+00> : vector<4x128xf32>
    %266 = tpu.matmul %265, %114, %cst_105 {dimension_numbers = #tpu.dot_dimension_numbers<[1], [0], [0], [1], [0, 0, 1, 1], [], []>} : vector<4x64xbf16>, vector<64x128xbf16>, vector<4x128xf32> -> vector<4x128xf32>
    %267 = arith.addf %264, %266 : vector<4x128xf32>
    %268 = arith.negf %267 : vector<4x128xf32>
    %269 = math.exp %268 : vector<4x128xf32>
    %cst_106 = arith.constant 1.000000e+00 : f32
    %270 = vector.broadcast %cst_106 : f32 to vector<4x128xf32>
    %271 = arith.addf %270, %269 : vector<4x128xf32>
    %272 = arith.divf %270, %271 : vector<4x128xf32>
    %273 = math.tanh %267 : vector<4x128xf32>
    %274 = vector.extract_strided_slice %272 {offsets = [0, 32], sizes = [4, 32], strides = [1, 1]} : vector<4x128xf32> to vector<4x32xf32>
    %275 = arith.mulf %274, %256 : vector<4x32xf32>
    %276 = vector.extract_strided_slice %272 {offsets = [0, 0], sizes = [4, 32], strides = [1, 1]} : vector<4x128xf32> to vector<4x32xf32>
    %277 = vector.extract_strided_slice %273 {offsets = [0, 64], sizes = [4, 32], strides = [1, 1]} : vector<4x128xf32> to vector<4x32xf32>
    %278 = arith.mulf %276, %277 : vector<4x32xf32>
    %279 = arith.addf %275, %278 : vector<4x32xf32>
    %280 = vector.extract_strided_slice %272 {offsets = [0, 96], sizes = [4, 32], strides = [1, 1]} : vector<4x128xf32> to vector<4x32xf32>
    %281 = math.tanh %279 : vector<4x32xf32>
    %282 = arith.mulf %280, %281 : vector<4x32xf32>
    %283 = tpu.concatenate %282, %282 in 1 : vector<4x32xf32>, vector<4x32xf32> -> vector<4x64xf32>
    %284 = arith.mulf %283, %112 : vector<4x64xf32>
    %285 = vector.extract_strided_slice %121 {offsets = [14, 0], sizes = [2, 128], strides = [1, 1]} : vector<16x256xf32> to vector<2x128xf32>
    %286 = vector.extract_strided_slice %121 {offsets = [0, 128], sizes = [2, 128], strides = [1, 1]} : vector<16x256xf32> to vector<2x128xf32>
    %287 = tpu.concatenate %285, %286 in 0 : vector<2x128xf32>, vector<2x128xf32> -> vector<4x128xf32>
    %288 = arith.truncf %284 : vector<4x64xf32> to vector<4x64xbf16>
    %cst_107 = arith.constant dense<0.000000e+00> : vector<4x128xf32>
    %289 = tpu.matmul %288, %114, %cst_107 {dimension_numbers = #tpu.dot_dimension_numbers<[1], [0], [0], [1], [0, 0, 1, 1], [], []>} : vector<4x64xbf16>, vector<64x128xbf16>, vector<4x128xf32> -> vector<4x128xf32>
    %290 = arith.addf %287, %289 : vector<4x128xf32>
    %291 = arith.negf %290 : vector<4x128xf32>
    %292 = math.exp %291 : vector<4x128xf32>
    %cst_108 = arith.constant 1.000000e+00 : f32
    %293 = vector.broadcast %cst_108 : f32 to vector<4x128xf32>
    %294 = arith.addf %293, %292 : vector<4x128xf32>
    %295 = arith.divf %293, %294 : vector<4x128xf32>
    %296 = math.tanh %290 : vector<4x128xf32>
    %297 = vector.extract_strided_slice %295 {offsets = [0, 32], sizes = [4, 32], strides = [1, 1]} : vector<4x128xf32> to vector<4x32xf32>
    %298 = arith.mulf %297, %279 : vector<4x32xf32>
    %299 = vector.extract_strided_slice %295 {offsets = [0, 0], sizes = [4, 32], strides = [1, 1]} : vector<4x128xf32> to vector<4x32xf32>
    %300 = vector.extract_strided_slice %296 {offsets = [0, 64], sizes = [4, 32], strides = [1, 1]} : vector<4x128xf32> to vector<4x32xf32>
    %301 = arith.mulf %299, %300 : vector<4x32xf32>
    %302 = arith.addf %298, %301 : vector<4x32xf32>
    %303 = vector.extract_strided_slice %295 {offsets = [0, 96], sizes = [4, 32], strides = [1, 1]} : vector<4x128xf32> to vector<4x32xf32>
    %304 = math.tanh %302 : vector<4x32xf32>
    %305 = arith.mulf %303, %304 : vector<4x32xf32>
    %306 = vector.extract_strided_slice %144 {offsets = [0, 0], sizes = [2, 32], strides = [1, 1]} : vector<4x32xf32> to vector<2x32xf32>
    %307 = vector.extract_strided_slice %167 {offsets = [0, 0], sizes = [2, 32], strides = [1, 1]} : vector<4x32xf32> to vector<2x32xf32>
    %308 = vector.extract_strided_slice %190 {offsets = [0, 0], sizes = [2, 32], strides = [1, 1]} : vector<4x32xf32> to vector<2x32xf32>
    %309 = vector.extract_strided_slice %213 {offsets = [0, 0], sizes = [2, 32], strides = [1, 1]} : vector<4x32xf32> to vector<2x32xf32>
    %310 = vector.extract_strided_slice %236 {offsets = [0, 0], sizes = [2, 32], strides = [1, 1]} : vector<4x32xf32> to vector<2x32xf32>
    %311 = vector.extract_strided_slice %259 {offsets = [0, 0], sizes = [2, 32], strides = [1, 1]} : vector<4x32xf32> to vector<2x32xf32>
    %312 = vector.extract_strided_slice %282 {offsets = [0, 0], sizes = [2, 32], strides = [1, 1]} : vector<4x32xf32> to vector<2x32xf32>
    %313 = vector.extract_strided_slice %305 {offsets = [0, 0], sizes = [2, 32], strides = [1, 1]} : vector<4x32xf32> to vector<2x32xf32>
    %314 = tpu.concatenate %306, %307, %308, %309, %310, %311, %312, %313 in 0 : vector<2x32xf32>, vector<2x32xf32>, vector<2x32xf32>, vector<2x32xf32>, vector<2x32xf32>, vector<2x32xf32>, vector<2x32xf32>, vector<2x32xf32> -> vector<16x32xf32>
    %315 = vector.extract_strided_slice %305 {offsets = [2, 0], sizes = [2, 32], strides = [1, 1]} : vector<4x32xf32> to vector<2x32xf32>
    %316 = vector.extract_strided_slice %282 {offsets = [2, 0], sizes = [2, 32], strides = [1, 1]} : vector<4x32xf32> to vector<2x32xf32>
    %317 = vector.extract_strided_slice %259 {offsets = [2, 0], sizes = [2, 32], strides = [1, 1]} : vector<4x32xf32> to vector<2x32xf32>
    %318 = vector.extract_strided_slice %236 {offsets = [2, 0], sizes = [2, 32], strides = [1, 1]} : vector<4x32xf32> to vector<2x32xf32>
    %319 = vector.extract_strided_slice %213 {offsets = [2, 0], sizes = [2, 32], strides = [1, 1]} : vector<4x32xf32> to vector<2x32xf32>
    %320 = vector.extract_strided_slice %190 {offsets = [2, 0], sizes = [2, 32], strides = [1, 1]} : vector<4x32xf32> to vector<2x32xf32>
    %321 = vector.extract_strided_slice %167 {offsets = [2, 0], sizes = [2, 32], strides = [1, 1]} : vector<4x32xf32> to vector<2x32xf32>
    %322 = vector.extract_strided_slice %144 {offsets = [2, 0], sizes = [2, 32], strides = [1, 1]} : vector<4x32xf32> to vector<2x32xf32>
    %323 = tpu.concatenate %315, %316, %317, %318, %319, %320, %321, %322 in 0 : vector<2x32xf32>, vector<2x32xf32>, vector<2x32xf32>, vector<2x32xf32>, vector<2x32xf32>, vector<2x32xf32>, vector<2x32xf32>, vector<2x32xf32> -> vector<16x32xf32>
    %324 = tpu.concatenate %314, %323 in 1 : vector<16x32xf32>, vector<16x32xf32> -> vector<16x64xf32>
    %325 = arith.truncf %324 : vector<16x64xf32> to vector<16x64xbf16>
    %cst_109 = arith.constant dense<0.000000e+00> : vector<16x32xf32>
    %326 = tpu.matmul %325, %115, %cst_109 {dimension_numbers = #tpu.dot_dimension_numbers<[1], [0], [0], [1], [0, 0, 1, 1], [], []>} : vector<16x64xbf16>, vector<64x32xbf16>, vector<16x32xf32> -> vector<16x32xf32>
    %327 = vector.broadcast %117 : vector<1x32xf32> to vector<16x32xf32>
    %328 = arith.addf %326, %327 : vector<16x32xf32>
    %c0_110 = arith.constant 0 : index
    %c512 = arith.constant 512 : index
    %329 = vector.load %arg5[%c0_110, %c512] : memref<64x1152xbf16, #tpu.memory_space<vmem>>, vector<32x256xbf16>
    %c0_111 = arith.constant 0 : index
    %c768 = arith.constant 768 : index
    %330 = vector.load %arg5[%c0_111, %c768] : memref<64x1152xbf16, #tpu.memory_space<vmem>>, vector<64x128xbf16>
    %c0_112 = arith.constant 0 : index
    %c896 = arith.constant 896 : index
    %331 = vector.load %arg5[%c0_112, %c896] : memref<64x1152xbf16, #tpu.memory_space<vmem>>, vector<64x32xbf16>
    %c1_113 = arith.constant 1 : index
    %c0_114 = arith.constant 0 : index
    %332 = vector.load %arg6[%c1_113, %c0_114] : memref<4x256xf32, #tpu.memory_space<vmem>>, vector<1x256xf32>
    %c2_115 = arith.constant 2 : index
    %c32 = arith.constant 32 : index
    %333 = vector.load %arg6[%c2_115, %c32] : memref<4x256xf32, #tpu.memory_space<vmem>>, vector<1x32xf32>
    %334 = arith.truncf %328 : vector<16x32xf32> to vector<16x32xbf16>
    %cst_116 = arith.constant dense<0.000000e+00> : vector<16x256xf32>
    %335 = tpu.matmul %334, %329, %cst_116 {dimension_numbers = #tpu.dot_dimension_numbers<[1], [0], [0], [1], [0, 0, 1, 1], [], []>} : vector<16x32xbf16>, vector<32x256xbf16>, vector<16x256xf32> -> vector<16x256xf32>
    %336 = vector.broadcast %332 : vector<1x256xf32> to vector<16x256xf32>
    %337 = arith.addf %335, %336 : vector<16x256xf32>
    %cst_117 = arith.constant 0.000000e+00 : f32
    %338 = vector.broadcast %cst_117 : f32 to vector<4x64xf32>
    %cst_118 = arith.constant 0.000000e+00 : f32
    %339 = vector.broadcast %cst_118 : f32 to vector<4x32xf32>
    %340 = vector.extract_strided_slice %337 {offsets = [0, 0], sizes = [2, 128], strides = [1, 1]} : vector<16x256xf32> to vector<2x128xf32>
    %341 = vector.extract_strided_slice %337 {offsets = [14, 128], sizes = [2, 128], strides = [1, 1]} : vector<16x256xf32> to vector<2x128xf32>
    %342 = tpu.concatenate %340, %341 in 0 : vector<2x128xf32>, vector<2x128xf32> -> vector<4x128xf32>
    %343 = arith.truncf %338 : vector<4x64xf32> to vector<4x64xbf16>
    %cst_119 = arith.constant dense<0.000000e+00> : vector<4x128xf32>
    %344 = tpu.matmul %343, %330, %cst_119 {dimension_numbers = #tpu.dot_dimension_numbers<[1], [0], [0], [1], [0, 0, 1, 1], [], []>} : vector<4x64xbf16>, vector<64x128xbf16>, vector<4x128xf32> -> vector<4x128xf32>
    %345 = arith.addf %342, %344 : vector<4x128xf32>
    %346 = arith.negf %345 : vector<4x128xf32>
    %347 = math.exp %346 : vector<4x128xf32>
    %cst_120 = arith.constant 1.000000e+00 : f32
    %348 = vector.broadcast %cst_120 : f32 to vector<4x128xf32>
    %349 = arith.addf %348, %347 : vector<4x128xf32>
    %350 = arith.divf %348, %349 : vector<4x128xf32>
    %351 = math.tanh %345 : vector<4x128xf32>
    %352 = vector.extract_strided_slice %350 {offsets = [0, 32], sizes = [4, 32], strides = [1, 1]} : vector<4x128xf32> to vector<4x32xf32>
    %353 = arith.mulf %352, %339 : vector<4x32xf32>
    %354 = vector.extract_strided_slice %350 {offsets = [0, 0], sizes = [4, 32], strides = [1, 1]} : vector<4x128xf32> to vector<4x32xf32>
    %355 = vector.extract_strided_slice %351 {offsets = [0, 64], sizes = [4, 32], strides = [1, 1]} : vector<4x128xf32> to vector<4x32xf32>
    %356 = arith.mulf %354, %355 : vector<4x32xf32>
    %357 = arith.addf %353, %356 : vector<4x32xf32>
    %358 = vector.extract_strided_slice %350 {offsets = [0, 96], sizes = [4, 32], strides = [1, 1]} : vector<4x128xf32> to vector<4x32xf32>
    %359 = math.tanh %357 : vector<4x32xf32>
    %360 = arith.mulf %358, %359 : vector<4x32xf32>
    %361 = tpu.concatenate %360, %360 in 1 : vector<4x32xf32>, vector<4x32xf32> -> vector<4x64xf32>
    %362 = arith.mulf %361, %112 : vector<4x64xf32>
    %363 = vector.extract_strided_slice %337 {offsets = [2, 0], sizes = [2, 128], strides = [1, 1]} : vector<16x256xf32> to vector<2x128xf32>
    %364 = vector.extract_strided_slice %337 {offsets = [12, 128], sizes = [2, 128], strides = [1, 1]} : vector<16x256xf32> to vector<2x128xf32>
    %365 = tpu.concatenate %363, %364 in 0 : vector<2x128xf32>, vector<2x128xf32> -> vector<4x128xf32>
    %366 = arith.truncf %362 : vector<4x64xf32> to vector<4x64xbf16>
    %cst_121 = arith.constant dense<0.000000e+00> : vector<4x128xf32>
    %367 = tpu.matmul %366, %330, %cst_121 {dimension_numbers = #tpu.dot_dimension_numbers<[1], [0], [0], [1], [0, 0, 1, 1], [], []>} : vector<4x64xbf16>, vector<64x128xbf16>, vector<4x128xf32> -> vector<4x128xf32>
    %368 = arith.addf %365, %367 : vector<4x128xf32>
    %369 = arith.negf %368 : vector<4x128xf32>
    %370 = math.exp %369 : vector<4x128xf32>
    %cst_122 = arith.constant 1.000000e+00 : f32
    %371 = vector.broadcast %cst_122 : f32 to vector<4x128xf32>
    %372 = arith.addf %371, %370 : vector<4x128xf32>
    %373 = arith.divf %371, %372 : vector<4x128xf32>
    %374 = math.tanh %368 : vector<4x128xf32>
    %375 = vector.extract_strided_slice %373 {offsets = [0, 32], sizes = [4, 32], strides = [1, 1]} : vector<4x128xf32> to vector<4x32xf32>
    %376 = arith.mulf %375, %357 : vector<4x32xf32>
    %377 = vector.extract_strided_slice %373 {offsets = [0, 0], sizes = [4, 32], strides = [1, 1]} : vector<4x128xf32> to vector<4x32xf32>
    %378 = vector.extract_strided_slice %374 {offsets = [0, 64], sizes = [4, 32], strides = [1, 1]} : vector<4x128xf32> to vector<4x32xf32>
    %379 = arith.mulf %377, %378 : vector<4x32xf32>
    %380 = arith.addf %376, %379 : vector<4x32xf32>
    %381 = vector.extract_strided_slice %373 {offsets = [0, 96], sizes = [4, 32], strides = [1, 1]} : vector<4x128xf32> to vector<4x32xf32>
    %382 = math.tanh %380 : vector<4x32xf32>
    %383 = arith.mulf %381, %382 : vector<4x32xf32>
    %384 = tpu.concatenate %383, %383 in 1 : vector<4x32xf32>, vector<4x32xf32> -> vector<4x64xf32>
    %385 = arith.mulf %384, %112 : vector<4x64xf32>
    %386 = vector.extract_strided_slice %337 {offsets = [4, 0], sizes = [2, 128], strides = [1, 1]} : vector<16x256xf32> to vector<2x128xf32>
    %387 = vector.extract_strided_slice %337 {offsets = [10, 128], sizes = [2, 128], strides = [1, 1]} : vector<16x256xf32> to vector<2x128xf32>
    %388 = tpu.concatenate %386, %387 in 0 : vector<2x128xf32>, vector<2x128xf32> -> vector<4x128xf32>
    %389 = arith.truncf %385 : vector<4x64xf32> to vector<4x64xbf16>
    %cst_123 = arith.constant dense<0.000000e+00> : vector<4x128xf32>
    %390 = tpu.matmul %389, %330, %cst_123 {dimension_numbers = #tpu.dot_dimension_numbers<[1], [0], [0], [1], [0, 0, 1, 1], [], []>} : vector<4x64xbf16>, vector<64x128xbf16>, vector<4x128xf32> -> vector<4x128xf32>
    %391 = arith.addf %388, %390 : vector<4x128xf32>
    %392 = arith.negf %391 : vector<4x128xf32>
    %393 = math.exp %392 : vector<4x128xf32>
    %cst_124 = arith.constant 1.000000e+00 : f32
    %394 = vector.broadcast %cst_124 : f32 to vector<4x128xf32>
    %395 = arith.addf %394, %393 : vector<4x128xf32>
    %396 = arith.divf %394, %395 : vector<4x128xf32>
    %397 = math.tanh %391 : vector<4x128xf32>
    %398 = vector.extract_strided_slice %396 {offsets = [0, 32], sizes = [4, 32], strides = [1, 1]} : vector<4x128xf32> to vector<4x32xf32>
    %399 = arith.mulf %398, %380 : vector<4x32xf32>
    %400 = vector.extract_strided_slice %396 {offsets = [0, 0], sizes = [4, 32], strides = [1, 1]} : vector<4x128xf32> to vector<4x32xf32>
    %401 = vector.extract_strided_slice %397 {offsets = [0, 64], sizes = [4, 32], strides = [1, 1]} : vector<4x128xf32> to vector<4x32xf32>
    %402 = arith.mulf %400, %401 : vector<4x32xf32>
    %403 = arith.addf %399, %402 : vector<4x32xf32>
    %404 = vector.extract_strided_slice %396 {offsets = [0, 96], sizes = [4, 32], strides = [1, 1]} : vector<4x128xf32> to vector<4x32xf32>
    %405 = math.tanh %403 : vector<4x32xf32>
    %406 = arith.mulf %404, %405 : vector<4x32xf32>
    %407 = tpu.concatenate %406, %406 in 1 : vector<4x32xf32>, vector<4x32xf32> -> vector<4x64xf32>
    %408 = arith.mulf %407, %112 : vector<4x64xf32>
    %409 = vector.extract_strided_slice %337 {offsets = [6, 0], sizes = [2, 128], strides = [1, 1]} : vector<16x256xf32> to vector<2x128xf32>
    %410 = vector.extract_strided_slice %337 {offsets = [8, 128], sizes = [2, 128], strides = [1, 1]} : vector<16x256xf32> to vector<2x128xf32>
    %411 = tpu.concatenate %409, %410 in 0 : vector<2x128xf32>, vector<2x128xf32> -> vector<4x128xf32>
    %412 = arith.truncf %408 : vector<4x64xf32> to vector<4x64xbf16>
    %cst_125 = arith.constant dense<0.000000e+00> : vector<4x128xf32>
    %413 = tpu.matmul %412, %330, %cst_125 {dimension_numbers = #tpu.dot_dimension_numbers<[1], [0], [0], [1], [0, 0, 1, 1], [], []>} : vector<4x64xbf16>, vector<64x128xbf16>, vector<4x128xf32> -> vector<4x128xf32>
    %414 = arith.addf %411, %413 : vector<4x128xf32>
    %415 = arith.negf %414 : vector<4x128xf32>
    %416 = math.exp %415 : vector<4x128xf32>
    %cst_126 = arith.constant 1.000000e+00 : f32
    %417 = vector.broadcast %cst_126 : f32 to vector<4x128xf32>
    %418 = arith.addf %417, %416 : vector<4x128xf32>
    %419 = arith.divf %417, %418 : vector<4x128xf32>
    %420 = math.tanh %414 : vector<4x128xf32>
    %421 = vector.extract_strided_slice %419 {offsets = [0, 32], sizes = [4, 32], strides = [1, 1]} : vector<4x128xf32> to vector<4x32xf32>
    %422 = arith.mulf %421, %403 : vector<4x32xf32>
    %423 = vector.extract_strided_slice %419 {offsets = [0, 0], sizes = [4, 32], strides = [1, 1]} : vector<4x128xf32> to vector<4x32xf32>
    %424 = vector.extract_strided_slice %420 {offsets = [0, 64], sizes = [4, 32], strides = [1, 1]} : vector<4x128xf32> to vector<4x32xf32>
    %425 = arith.mulf %423, %424 : vector<4x32xf32>
    %426 = arith.addf %422, %425 : vector<4x32xf32>
    %427 = vector.extract_strided_slice %419 {offsets = [0, 96], sizes = [4, 32], strides = [1, 1]} : vector<4x128xf32> to vector<4x32xf32>
    %428 = math.tanh %426 : vector<4x32xf32>
    %429 = arith.mulf %427, %428 : vector<4x32xf32>
    %430 = tpu.concatenate %429, %429 in 1 : vector<4x32xf32>, vector<4x32xf32> -> vector<4x64xf32>
    %431 = arith.mulf %430, %112 : vector<4x64xf32>
    %432 = vector.extract_strided_slice %337 {offsets = [8, 0], sizes = [2, 128], strides = [1, 1]} : vector<16x256xf32> to vector<2x128xf32>
    %433 = vector.extract_strided_slice %337 {offsets = [6, 128], sizes = [2, 128], strides = [1, 1]} : vector<16x256xf32> to vector<2x128xf32>
    %434 = tpu.concatenate %432, %433 in 0 : vector<2x128xf32>, vector<2x128xf32> -> vector<4x128xf32>
    %435 = arith.truncf %431 : vector<4x64xf32> to vector<4x64xbf16>
    %cst_127 = arith.constant dense<0.000000e+00> : vector<4x128xf32>
    %436 = tpu.matmul %435, %330, %cst_127 {dimension_numbers = #tpu.dot_dimension_numbers<[1], [0], [0], [1], [0, 0, 1, 1], [], []>} : vector<4x64xbf16>, vector<64x128xbf16>, vector<4x128xf32> -> vector<4x128xf32>
    %437 = arith.addf %434, %436 : vector<4x128xf32>
    %438 = arith.negf %437 : vector<4x128xf32>
    %439 = math.exp %438 : vector<4x128xf32>
    %cst_128 = arith.constant 1.000000e+00 : f32
    %440 = vector.broadcast %cst_128 : f32 to vector<4x128xf32>
    %441 = arith.addf %440, %439 : vector<4x128xf32>
    %442 = arith.divf %440, %441 : vector<4x128xf32>
    %443 = math.tanh %437 : vector<4x128xf32>
    %444 = vector.extract_strided_slice %442 {offsets = [0, 32], sizes = [4, 32], strides = [1, 1]} : vector<4x128xf32> to vector<4x32xf32>
    %445 = arith.mulf %444, %426 : vector<4x32xf32>
    %446 = vector.extract_strided_slice %442 {offsets = [0, 0], sizes = [4, 32], strides = [1, 1]} : vector<4x128xf32> to vector<4x32xf32>
    %447 = vector.extract_strided_slice %443 {offsets = [0, 64], sizes = [4, 32], strides = [1, 1]} : vector<4x128xf32> to vector<4x32xf32>
    %448 = arith.mulf %446, %447 : vector<4x32xf32>
    %449 = arith.addf %445, %448 : vector<4x32xf32>
    %450 = vector.extract_strided_slice %442 {offsets = [0, 96], sizes = [4, 32], strides = [1, 1]} : vector<4x128xf32> to vector<4x32xf32>
    %451 = math.tanh %449 : vector<4x32xf32>
    %452 = arith.mulf %450, %451 : vector<4x32xf32>
    %453 = tpu.concatenate %452, %452 in 1 : vector<4x32xf32>, vector<4x32xf32> -> vector<4x64xf32>
    %454 = arith.mulf %453, %112 : vector<4x64xf32>
    %455 = vector.extract_strided_slice %337 {offsets = [10, 0], sizes = [2, 128], strides = [1, 1]} : vector<16x256xf32> to vector<2x128xf32>
    %456 = vector.extract_strided_slice %337 {offsets = [4, 128], sizes = [2, 128], strides = [1, 1]} : vector<16x256xf32> to vector<2x128xf32>
    %457 = tpu.concatenate %455, %456 in 0 : vector<2x128xf32>, vector<2x128xf32> -> vector<4x128xf32>
    %458 = arith.truncf %454 : vector<4x64xf32> to vector<4x64xbf16>
    %cst_129 = arith.constant dense<0.000000e+00> : vector<4x128xf32>
    %459 = tpu.matmul %458, %330, %cst_129 {dimension_numbers = #tpu.dot_dimension_numbers<[1], [0], [0], [1], [0, 0, 1, 1], [], []>} : vector<4x64xbf16>, vector<64x128xbf16>, vector<4x128xf32> -> vector<4x128xf32>
    %460 = arith.addf %457, %459 : vector<4x128xf32>
    %461 = arith.negf %460 : vector<4x128xf32>
    %462 = math.exp %461 : vector<4x128xf32>
    %cst_130 = arith.constant 1.000000e+00 : f32
    %463 = vector.broadcast %cst_130 : f32 to vector<4x128xf32>
    %464 = arith.addf %463, %462 : vector<4x128xf32>
    %465 = arith.divf %463, %464 : vector<4x128xf32>
    %466 = math.tanh %460 : vector<4x128xf32>
    %467 = vector.extract_strided_slice %465 {offsets = [0, 32], sizes = [4, 32], strides = [1, 1]} : vector<4x128xf32> to vector<4x32xf32>
    %468 = arith.mulf %467, %449 : vector<4x32xf32>
    %469 = vector.extract_strided_slice %465 {offsets = [0, 0], sizes = [4, 32], strides = [1, 1]} : vector<4x128xf32> to vector<4x32xf32>
    %470 = vector.extract_strided_slice %466 {offsets = [0, 64], sizes = [4, 32], strides = [1, 1]} : vector<4x128xf32> to vector<4x32xf32>
    %471 = arith.mulf %469, %470 : vector<4x32xf32>
    %472 = arith.addf %468, %471 : vector<4x32xf32>
    %473 = vector.extract_strided_slice %465 {offsets = [0, 96], sizes = [4, 32], strides = [1, 1]} : vector<4x128xf32> to vector<4x32xf32>
    %474 = math.tanh %472 : vector<4x32xf32>
    %475 = arith.mulf %473, %474 : vector<4x32xf32>
    %476 = tpu.concatenate %475, %475 in 1 : vector<4x32xf32>, vector<4x32xf32> -> vector<4x64xf32>
    %477 = arith.mulf %476, %112 : vector<4x64xf32>
    %478 = vector.extract_strided_slice %337 {offsets = [12, 0], sizes = [2, 128], strides = [1, 1]} : vector<16x256xf32> to vector<2x128xf32>
    %479 = vector.extract_strided_slice %337 {offsets = [2, 128], sizes = [2, 128], strides = [1, 1]} : vector<16x256xf32> to vector<2x128xf32>
    %480 = tpu.concatenate %478, %479 in 0 : vector<2x128xf32>, vector<2x128xf32> -> vector<4x128xf32>
    %481 = arith.truncf %477 : vector<4x64xf32> to vector<4x64xbf16>
    %cst_131 = arith.constant dense<0.000000e+00> : vector<4x128xf32>
    %482 = tpu.matmul %481, %330, %cst_131 {dimension_numbers = #tpu.dot_dimension_numbers<[1], [0], [0], [1], [0, 0, 1, 1], [], []>} : vector<4x64xbf16>, vector<64x128xbf16>, vector<4x128xf32> -> vector<4x128xf32>
    %483 = arith.addf %480, %482 : vector<4x128xf32>
    %484 = arith.negf %483 : vector<4x128xf32>
    %485 = math.exp %484 : vector<4x128xf32>
    %cst_132 = arith.constant 1.000000e+00 : f32
    %486 = vector.broadcast %cst_132 : f32 to vector<4x128xf32>
    %487 = arith.addf %486, %485 : vector<4x128xf32>
    %488 = arith.divf %486, %487 : vector<4x128xf32>
    %489 = math.tanh %483 : vector<4x128xf32>
    %490 = vector.extract_strided_slice %488 {offsets = [0, 32], sizes = [4, 32], strides = [1, 1]} : vector<4x128xf32> to vector<4x32xf32>
    %491 = arith.mulf %490, %472 : vector<4x32xf32>
    %492 = vector.extract_strided_slice %488 {offsets = [0, 0], sizes = [4, 32], strides = [1, 1]} : vector<4x128xf32> to vector<4x32xf32>
    %493 = vector.extract_strided_slice %489 {offsets = [0, 64], sizes = [4, 32], strides = [1, 1]} : vector<4x128xf32> to vector<4x32xf32>
    %494 = arith.mulf %492, %493 : vector<4x32xf32>
    %495 = arith.addf %491, %494 : vector<4x32xf32>
    %496 = vector.extract_strided_slice %488 {offsets = [0, 96], sizes = [4, 32], strides = [1, 1]} : vector<4x128xf32> to vector<4x32xf32>
    %497 = math.tanh %495 : vector<4x32xf32>
    %498 = arith.mulf %496, %497 : vector<4x32xf32>
    %499 = tpu.concatenate %498, %498 in 1 : vector<4x32xf32>, vector<4x32xf32> -> vector<4x64xf32>
    %500 = arith.mulf %499, %112 : vector<4x64xf32>
    %501 = vector.extract_strided_slice %337 {offsets = [14, 0], sizes = [2, 128], strides = [1, 1]} : vector<16x256xf32> to vector<2x128xf32>
    %502 = vector.extract_strided_slice %337 {offsets = [0, 128], sizes = [2, 128], strides = [1, 1]} : vector<16x256xf32> to vector<2x128xf32>
    %503 = tpu.concatenate %501, %502 in 0 : vector<2x128xf32>, vector<2x128xf32> -> vector<4x128xf32>
    %504 = arith.truncf %500 : vector<4x64xf32> to vector<4x64xbf16>
    %cst_133 = arith.constant dense<0.000000e+00> : vector<4x128xf32>
    %505 = tpu.matmul %504, %330, %cst_133 {dimension_numbers = #tpu.dot_dimension_numbers<[1], [0], [0], [1], [0, 0, 1, 1], [], []>} : vector<4x64xbf16>, vector<64x128xbf16>, vector<4x128xf32> -> vector<4x128xf32>
    %506 = arith.addf %503, %505 : vector<4x128xf32>
    %507 = arith.negf %506 : vector<4x128xf32>
    %508 = math.exp %507 : vector<4x128xf32>
    %cst_134 = arith.constant 1.000000e+00 : f32
    %509 = vector.broadcast %cst_134 : f32 to vector<4x128xf32>
    %510 = arith.addf %509, %508 : vector<4x128xf32>
    %511 = arith.divf %509, %510 : vector<4x128xf32>
    %512 = math.tanh %506 : vector<4x128xf32>
    %513 = vector.extract_strided_slice %511 {offsets = [0, 32], sizes = [4, 32], strides = [1, 1]} : vector<4x128xf32> to vector<4x32xf32>
    %514 = arith.mulf %513, %495 : vector<4x32xf32>
    %515 = vector.extract_strided_slice %511 {offsets = [0, 0], sizes = [4, 32], strides = [1, 1]} : vector<4x128xf32> to vector<4x32xf32>
    %516 = vector.extract_strided_slice %512 {offsets = [0, 64], sizes = [4, 32], strides = [1, 1]} : vector<4x128xf32> to vector<4x32xf32>
    %517 = arith.mulf %515, %516 : vector<4x32xf32>
    %518 = arith.addf %514, %517 : vector<4x32xf32>
    %519 = vector.extract_strided_slice %511 {offsets = [0, 96], sizes = [4, 32], strides = [1, 1]} : vector<4x128xf32> to vector<4x32xf32>
    %520 = math.tanh %518 : vector<4x32xf32>
    %521 = arith.mulf %519, %520 : vector<4x32xf32>
    %522 = vector.extract_strided_slice %360 {offsets = [0, 0], sizes = [2, 32], strides = [1, 1]} : vector<4x32xf32> to vector<2x32xf32>
    %523 = vector.extract_strided_slice %383 {offsets = [0, 0], sizes = [2, 32], strides = [1, 1]} : vector<4x32xf32> to vector<2x32xf32>
    %524 = vector.extract_strided_slice %406 {offsets = [0, 0], sizes = [2, 32], strides = [1, 1]} : vector<4x32xf32> to vector<2x32xf32>
    %525 = vector.extract_strided_slice %429 {offsets = [0, 0], sizes = [2, 32], strides = [1, 1]} : vector<4x32xf32> to vector<2x32xf32>
    %526 = vector.extract_strided_slice %452 {offsets = [0, 0], sizes = [2, 32], strides = [1, 1]} : vector<4x32xf32> to vector<2x32xf32>
    %527 = vector.extract_strided_slice %475 {offsets = [0, 0], sizes = [2, 32], strides = [1, 1]} : vector<4x32xf32> to vector<2x32xf32>
    %528 = vector.extract_strided_slice %498 {offsets = [0, 0], sizes = [2, 32], strides = [1, 1]} : vector<4x32xf32> to vector<2x32xf32>
    %529 = vector.extract_strided_slice %521 {offsets = [0, 0], sizes = [2, 32], strides = [1, 1]} : vector<4x32xf32> to vector<2x32xf32>
    %530 = tpu.concatenate %522, %523, %524, %525, %526, %527, %528, %529 in 0 : vector<2x32xf32>, vector<2x32xf32>, vector<2x32xf32>, vector<2x32xf32>, vector<2x32xf32>, vector<2x32xf32>, vector<2x32xf32>, vector<2x32xf32> -> vector<16x32xf32>
    %531 = vector.extract_strided_slice %521 {offsets = [2, 0], sizes = [2, 32], strides = [1, 1]} : vector<4x32xf32> to vector<2x32xf32>
    %532 = vector.extract_strided_slice %498 {offsets = [2, 0], sizes = [2, 32], strides = [1, 1]} : vector<4x32xf32> to vector<2x32xf32>
    %533 = vector.extract_strided_slice %475 {offsets = [2, 0], sizes = [2, 32], strides = [1, 1]} : vector<4x32xf32> to vector<2x32xf32>
    %534 = vector.extract_strided_slice %452 {offsets = [2, 0], sizes = [2, 32], strides = [1, 1]} : vector<4x32xf32> to vector<2x32xf32>
    %535 = vector.extract_strided_slice %429 {offsets = [2, 0], sizes = [2, 32], strides = [1, 1]} : vector<4x32xf32> to vector<2x32xf32>
    %536 = vector.extract_strided_slice %406 {offsets = [2, 0], sizes = [2, 32], strides = [1, 1]} : vector<4x32xf32> to vector<2x32xf32>
    %537 = vector.extract_strided_slice %383 {offsets = [2, 0], sizes = [2, 32], strides = [1, 1]} : vector<4x32xf32> to vector<2x32xf32>
    %538 = vector.extract_strided_slice %360 {offsets = [2, 0], sizes = [2, 32], strides = [1, 1]} : vector<4x32xf32> to vector<2x32xf32>
    %539 = tpu.concatenate %531, %532, %533, %534, %535, %536, %537, %538 in 0 : vector<2x32xf32>, vector<2x32xf32>, vector<2x32xf32>, vector<2x32xf32>, vector<2x32xf32>, vector<2x32xf32>, vector<2x32xf32>, vector<2x32xf32> -> vector<16x32xf32>
    %540 = tpu.concatenate %530, %539 in 1 : vector<16x32xf32>, vector<16x32xf32> -> vector<16x64xf32>
    %541 = arith.truncf %540 : vector<16x64xf32> to vector<16x64xbf16>
    %cst_135 = arith.constant dense<0.000000e+00> : vector<16x32xf32>
    %542 = tpu.matmul %541, %331, %cst_135 {dimension_numbers = #tpu.dot_dimension_numbers<[1], [0], [0], [1], [0, 0, 1, 1], [], []>} : vector<16x64xbf16>, vector<64x32xbf16>, vector<16x32xf32> -> vector<16x32xf32>
    %543 = vector.broadcast %333 : vector<1x32xf32> to vector<16x32xf32>
    %544 = arith.addf %542, %543 : vector<16x32xf32>
    %c0_136 = arith.constant 0 : index
    %c1024 = arith.constant 1024 : index
    %545 = vector.load %arg5[%c0_136, %c1024] : memref<64x1152xbf16, #tpu.memory_space<vmem>>, vector<32x128xbf16>
    %c3 = arith.constant 3 : index
    %c0_137 = arith.constant 0 : index
    %546 = vector.load %arg6[%c3, %c0_137] : memref<4x256xf32, #tpu.memory_space<vmem>>, vector<1x128xf32>
    %547 = arith.truncf %544 : vector<16x32xf32> to vector<16x32xbf16>
    %cst_138 = arith.constant dense<0.000000e+00> : vector<16x128xf32>
    %548 = tpu.matmul %547, %545, %cst_138 {dimension_numbers = #tpu.dot_dimension_numbers<[1], [0], [0], [1], [0, 0, 1, 1], [], []>} : vector<16x32xbf16>, vector<32x128xbf16>, vector<16x128xf32> -> vector<16x128xf32>
    %549 = vector.broadcast %546 : vector<1x128xf32> to vector<16x128xf32>
    %550 = arith.addf %548, %549 : vector<16x128xf32>
    %c0_139 = arith.constant 0 : index
    %c0_140 = arith.constant 0 : index
    %551 = vector.load %arg7[%c0_139, %c0_140] : memref<16x128xf32, #tpu.memory_space<vmem>>, vector<16x128xf32>
    tpu.vector_store %arg7[%c0_139, %c0_140], %550 {strides = array<i32>} : memref<16x128xf32, #tpu.memory_space<vmem>>, vector<16x128xf32>,
    return
  }
}

</mosaic_0001>

<llo_original>
// kernel: model_forward.1
$region0: #{model_forward.1}
  #allocation0 [shape = 'u32[]', space=smem, size = 0x4, offset = 0x4, fixed_abs, tag = 'smem constant byte address 0x4 - core index']
  #allocation1 [shape = 'u32[72,128]{1,0:T(1,128)}', space=vmem, size = 0x9000, scoped, tag = 'internal scratch']
  %s0 = inlined_call_operand.vmem [shape: f32[8,1440], index: 0, kind: input, shape index: {}]
  %s1 = inlined_call_operand.vmem [shape: bf16[32,520], index: 1, kind: input, shape index: {}]
  %s2 = inlined_call_operand.vmem [shape: f32[32,4], index: 2, kind: input, shape index: {}]
  %s3 = inlined_call_operand.vmem [shape: f32[1,360], index: 3, kind: input, shape index: {}]
  %s4 = inlined_call_operand.vmem [shape: f32[341,16], index: 4, kind: input, shape index: {}]
  %s5 = inlined_call_operand.vmem [shape: bf16[64,1152], index: 5, kind: input, shape index: {}]
  %s6 = inlined_call_operand.vmem [shape: f32[4,256], index: 6, kind: input, shape index: {}]
  %s7 = inlined_call_operand.vmem [shape: f32[16,128], index: 7, kind: output, shape index: {}]
  %s8 = sld [smem:[#allocation0]]
  $region38: #{model_forward.1} parent=0
    _
  %s10 = ssub.s32 1, %s8
  %s11 = scalar_select 0, %s10, %s8
  // Predicated region
  $region2: #{model_forward.1} parent=0 // pred_check
    _
  $region3: #{model_forward.1} parent=0 // pred_check_branch
    %13 = sbr.rel (0) target = $region5
  $region4: #{model_forward.1} parent=0 // pred_region
    _
  $region5: #{model_forward.1} parent=0 // pred_fallthru
    _
  // Predicated region
  $region6: #{model_forward.1} parent=0 // pred_check
    _
  $region7: #{model_forward.1} parent=0 // pred_check_branch
    %15 = sbr.rel (0) target = $region9
  $region8: #{model_forward.1} parent=0 // pred_region
    _
  $region9: #{model_forward.1} parent=0 // pred_fallthru
    _
  // Predicated region
  $region10: #{model_forward.1} parent=0 // pred_check
    _
  $region11: #{model_forward.1} parent=0 // pred_check_branch
    %17 = sbr.rel (0) target = $region13
  $region12: #{model_forward.1} parent=0 // pred_region
    _
  $region13: #{model_forward.1} parent=0 // pred_fallthru
    _
  // Predicated region
  $region14: #{model_forward.1} parent=0 // pred_check
    _
  $region15: #{model_forward.1} parent=0 // pred_check_branch
    %19 = sbr.rel (0) target = $region17
  $region16: #{model_forward.1} parent=0 // pred_region
    _
  $region17: #{model_forward.1} parent=0 // pred_fallthru
    _
  // Predicated region
  $region18: #{model_forward.1} parent=0 // pred_check
    _
  $region19: #{model_forward.1} parent=0 // pred_check_branch
    %21 = sbr.rel (0) target = $region21
  $region20: #{model_forward.1} parent=0 // pred_region
    _
  $region21: #{model_forward.1} parent=0 // pred_fallthru
    _
  // Predicated region
  $region22: #{model_forward.1} parent=0 // pred_check
    _
  $region23: #{model_forward.1} parent=0 // pred_check_branch
    %23 = sbr.rel (0) target = $region25
  $region24: #{model_forward.1} parent=0 // pred_region
    _
  $region25: #{model_forward.1} parent=0 // pred_fallthru
    _
  // Predicated region
  $region26: #{model_forward.1} parent=0 // pred_check
    _
  $region27: #{model_forward.1} parent=0 // pred_check_branch
    %25 = sbr.rel (0) target = $region29
  $region28: #{model_forward.1} parent=0 // pred_region
    _
  $region29: #{model_forward.1} parent=0 // pred_fallthru
    _
  %v27 = vld [vmem:[%s3] sm:$0x7]
  %v28 = vld [vmem:[%s1] sm:$0xf]
  %v29 = vld [vmem:[%s1 + $0x14] sm:$0xf]
  %v30 = vunpack.c.l.bf16 %v28
  %v31 = vunpack.c.l.bf16 %v29
  %v32 = vld [vmem:[%s2] sm:$0xff]
  %v33 = vld [vmem:[%s2 + $0x8] sm:$0xff]
  %v34 = vld [vmem:[%s0 + $0x40] sm:$0xff]
  %v35 = vld [vmem:[%s0 + $0x48] sm:$0xff]
  %v36 = vld [vmem:[%s0 + $0x50] sm:$0xff]
  %v37 = vld [vmem:[%s0 + $0x58] sm:$0xff]
  %v38 = vld [vmem:[%s0 + $0x28] sm:$0xff]
  %v39 = vld [vmem:[%s0 + $0x30] sm:$0xff]
  %v40 = vld [vmem:[%s0 + $0x38] sm:$0xff]
  %v41 = vld [vmem:[%s0 + $0x10] sm:$0xff]
  %v42 = vld [vmem:[%s0 + $0x18] sm:$0xff]
  %v43 = vld [vmem:[%s0 + $0x20] sm:$0xff]
  %v44 = vld [vmem:[%s0] sm:$0xff]
  %v45 = vld [vmem:[%s0 + $0x8] sm:$0xff]
  %50 = vrot.lane.b32.xlu0 %v38, 103
  %v51 = vpop.permute.xlu0 %50
  %52 = vrot.lane.b32.xlu0 %v39, 103
  %v53 = vpop.permute.xlu0 %52
  %54 = vrot.lane.b32.xlu0 %v40, 103
  %v55 = vpop.permute.xlu0 %54
  %56 = vrot.lane.b32.xlu0 %v34, 103
  %v57 = vpop.permute.xlu0 %56
  %vm58 = vcmask 842752
  %v59 = vsel %vm58, %v51, %v53
  %v60 = vsel %vm58, %v53, %v55
  %v61 = vsel %vm58, %v55, %v57
  %65 = vrot.lane.b32.xlu0 %v34, 127
  %v66 = vpop.permute.xlu0 %65
  %67 = vrot.lane.b32.xlu0 %v35, 127
  %v68 = vpop.permute.xlu0 %67
  %69 = vrot.lane.b32.xlu0 %v36, 127
  %v70 = vpop.permute.xlu0 %69
  %71 = vrot.lane.b32.xlu0 %v37, 127
  %v72 = vpop.permute.xlu0 %71
  %vm73 = vcmask 1039360
  %v74 = vsel %vm73, %v66, %v68
  %v75 = vsel %vm73, %v68, %v70
  %v76 = vsel %vm73, %v70, %v72
  %80 = vrot.lane.b32.xlu0 %v41, 62
  %v81 = vpop.permute.xlu0 %80
  %82 = vrot.lane.b32.xlu0 %v42, 62
  %v83 = vpop.permute.xlu0 %82
  %84 = vrot.lane.b32.xlu0 %v43, 62
  %v85 = vpop.permute.xlu0 %84
  %86 = vrot.lane.b32.xlu0 %v38, 62
  %v87 = vpop.permute.xlu0 %86
  %vm88 = vcmask 506880
  %v89 = vsel %vm88, %v81, %v83
  %v90 = vsel %vm88, %v83, %v85
  %v91 = vsel %vm88, %v85, %v87
  %94 = vrot.lane.b32.xlu0 %v44, 37
  %v95 = vpop.permute.xlu0 %94
  %96 = vrot.lane.b32.xlu0 %v45, 37
  %v97 = vpop.permute.xlu0 %96
  %98 = vrot.lane.b32.xlu0 %v41, 37
  %v99 = vpop.permute.xlu0 %98
  %vm100 = vcmask 302080
  %v101 = vsel %vm100, %v95, %v97
  %v102 = vsel %vm100, %v97, %v99
  %103 = vrot.lane.b32.xlu0 %v41, 61
  %v104 = vpop.permute.xlu0 %103
  %105 = vrot.lane.b32.xlu0 %v42, 61
  %v106 = vpop.permute.xlu0 %105
  %107 = vrot.lane.b32.xlu0 %v43, 61
  %v108 = vpop.permute.xlu0 %107
  %109 = vrot.lane.b32.xlu0 %v38, 61
  %v110 = vpop.permute.xlu0 %109
  %vm111 = vcmask 498688
  %v112 = vsel %vm111, %v104, %v106
  %v113 = vsel %vm111, %v106, %v108
  %v114 = vsel %vm111, %v108, %v110
  %115 = vrot.lane.b32.xlu0 %v34, 110
  %v116 = vpop.permute.xlu0 %115
  %117 = vrot.lane.b32.xlu0 %v35, 110
  %v118 = vpop.permute.xlu0 %117
  %119 = vrot.lane.b32.xlu0 %v36, 110
  %v120 = vpop.permute.xlu0 %119
  %121 = vrot.lane.b32.xlu0 %v37, 110
  %v122 = vpop.permute.xlu0 %121
  %vm123 = vcmask 900096
  %v124 = vsel %vm123, %v116, %v118
  %v125 = vsel %vm123, %v118, %v120
  %v126 = vsel %vm123, %v120, %v122
  %127 = vrot.lane.b32.xlu0 %v38, 85
  %v128 = vpop.permute.xlu0 %127
  %129 = vrot.lane.b32.xlu0 %v39, 85
  %v130 = vpop.permute.xlu0 %129
  %131 = vrot.lane.b32.xlu0 %v40, 85
  %v132 = vpop.permute.xlu0 %131
  %133 = vrot.lane.b32.xlu0 %v34, 85
  %v134 = vpop.permute.xlu0 %133
  %vm135 = vcmask 695296
  %v136 = vsel %vm135, %v128, %v130
  %v137 = vsel %vm135, %v130, %v132
  %v138 = vsel %vm135, %v132, %v134
  %139 = vrot.lane.b32.xlu0 %v34, 109
  %v140 = vpop.permute.xlu0 %139
  %141 = vrot.lane.b32.xlu0 %v35, 109
  %v142 = vpop.permute.xlu0 %141
  %143 = vrot.lane.b32.xlu0 %v36, 109
  %v144 = vpop.permute.xlu0 %143
  %145 = vrot.lane.b32.xlu0 %v37, 109
  %v146 = vpop.permute.xlu0 %145
  %vm147 = vcmask 891904
  %v148 = vsel %vm147, %v140, %v142
  %v149 = vsel %vm147, %v142, %v144
  %v150 = vsel %vm147, %v144, %v146
  %151 = vrot.lane.b32.xlu0 %v34, 91
  %v152 = vpop.permute.xlu0 %151
  %153 = vrot.lane.b32.xlu0 %v35, 91
  %v154 = vpop.permute.xlu0 %153
  %155 = vrot.lane.b32.xlu0 %v36, 91
  %v156 = vpop.permute.xlu0 %155
  %157 = vrot.lane.b32.xlu0 %v37, 91
  %v158 = vpop.permute.xlu0 %157
  %159 = vrot.lane.b32.xlu0 %v59, 91
  %v160 = vpop.permute.xlu0 %159
  %161 = vrot.lane.b32.xlu0 %v60, 91
  %v162 = vpop.permute.xlu0 %161
  %163 = vrot.lane.b32.xlu0 %v61, 91
  %v164 = vpop.permute.xlu0 %163
  %165 = vrot.lane.b32.xlu0 %v57, 91
  %v166 = vpop.permute.xlu0 %165
  %167 = vrot.lane.b32.xlu0 %v74, 91
  %v168 = vpop.permute.xlu0 %167
  %169 = vrot.lane.b32.xlu0 %v75, 91
  %v170 = vpop.permute.xlu0 %169
  %171 = vrot.lane.b32.xlu0 %v76, 91
  %v172 = vpop.permute.xlu0 %171
  %173 = vrot.lane.b32.xlu0 %v72, 91
  %v174 = vpop.permute.xlu0 %173
  %175 = vrot.lane.b32.xlu0 %v89, 91
  %v176 = vpop.permute.xlu0 %175
  %177 = vrot.lane.b32.xlu0 %v90, 91
  %v178 = vpop.permute.xlu0 %177
  %179 = vrot.lane.b32.xlu0 %v91, 91
  %v180 = vpop.permute.xlu0 %179
  %181 = vrot.lane.b32.xlu0 %v87, 91
  %v182 = vpop.permute.xlu0 %181
  %183 = vrot.lane.b32.xlu0 %v95, 91
  %v184 = vpop.permute.xlu0 %183
  %185 = vrot.lane.b32.xlu0 %v101, 91
  %v186 = vpop.permute.xlu0 %185
  %187 = vrot.lane.b32.xlu0 %v102, 91
  %v188 = vpop.permute.xlu0 %187
  %189 = vrot.lane.b32.xlu0 %v99, 91
  %v190 = vpop.permute.xlu0 %189
  %191 = vrot.lane.b32.xlu0 %v112, 91
  %v192 = vpop.permute.xlu0 %191
  %193 = vrot.lane.b32.xlu0 %v113, 91
  %v194 = vpop.permute.xlu0 %193
  %195 = vrot.lane.b32.xlu0 %v114, 91
  %v196 = vpop.permute.xlu0 %195
  %197 = vrot.lane.b32.xlu0 %v110, 91
  %v198 = vpop.permute.xlu0 %197
  %199 = vrot.lane.b32.xlu0 %v124, 91
  %v200 = vpop.permute.xlu0 %199
  %201 = vrot.lane.b32.xlu0 %v125, 91
  %v202 = vpop.permute.xlu0 %201
  %203 = vrot.lane.b32.xlu0 %v126, 91
  %v204 = vpop.permute.xlu0 %203
  %205 = vrot.lane.b32.xlu0 %v122, 91
  %v206 = vpop.permute.xlu0 %205
  %207 = vrot.lane.b32.xlu0 %v136, 91
  %v208 = vpop.permute.xlu0 %207
  %209 = vrot.lane.b32.xlu0 %v137, 91
  %v210 = vpop.permute.xlu0 %209
  %211 = vrot.lane.b32.xlu0 %v138, 91
  %v212 = vpop.permute.xlu0 %211
  %213 = vrot.lane.b32.xlu0 %v134, 91
  %v214 = vpop.permute.xlu0 %213
  %215 = vrot.lane.b32.xlu0 %v148, 91
  %v216 = vpop.permute.xlu0 %215
  %217 = vrot.lane.b32.xlu0 %v149, 91
  %v218 = vpop.permute.xlu0 %217
  %219 = vrot.lane.b32.xlu0 %v150, 91
  %v220 = vpop.permute.xlu0 %219
  %221 = vrot.lane.b32.xlu0 %v146, 91
  %v222 = vpop.permute.xlu0 %221
  %vm223 = vcmask 744448
  %v224 = vsel %vm223, %v152, %v154
  %v225 = vsel %vm223, %v154, %v156
  %v226 = vsel %vm223, %v156, %v158
  %v227 = vsel %vm223, %v160, %v162
  %v228 = vsel %vm223, %v162, %v164
  %v229 = vsel %vm223, %v164, %v166
  %v230 = vsel %vm223, %v168, %v170
  %v231 = vsel %vm223, %v170, %v172
  %v232 = vsel %vm223, %v172, %v174
  %v233 = vsel %vm223, %v176, %v178
  %v234 = vsel %vm223, %v178, %v180
  %v235 = vsel %vm223, %v180, %v182
  %v236 = vsel %vm223, %v184, %v186
  %v237 = vsel %vm223, %v186, %v188
  %v238 = vsel %vm223, %v188, %v190
  %v239 = vsel %vm223, %v192, %v194
  %v240 = vsel %vm223, %v194, %v196
  %v241 = vsel %vm223, %v196, %v198
  %v242 = vsel %vm223, %v200, %v202
  %v243 = vsel %vm223, %v202, %v204
  %v244 = vsel %vm223, %v204, %v206
  %v245 = vsel %vm223, %v208, %v210
  %v246 = vsel %vm223, %v210, %v212
  %v247 = vsel %vm223, %v212, %v214
  %v248 = vsel %vm223, %v216, %v218
  %v249 = vsel %vm223, %v218, %v220
  %v250 = vsel %vm223, %v220, %v222
  %vm278 = vcmask 588800
  %v280 = vsel %vm278, %v30, 0
  %v283 = vsel %vm278, %v31, 0
  %285 = vmatpush.msra.mxu0 0.0
  %286 = vmatpush.msra.mxu0 0.0
  %287 = vmatpush.msra.mxu0 0.0
  %288 = vmatpush.msra.mxu0 0.0
  %289 = vmatpush.msra.mxu0 0.0
  %290 = vmatpush.msra.mxu0 0.0
  %291 = vmatpush.msra.mxu0 0.0
  %292 = vmatpush.msra.mxu0 %v248
  %293 = vmatpush.msra.mxu0 %v245
  %294 = vmatpush.msra.mxu0 %v242
  %295 = vmatpush.msra.mxu0 %v239
  %296 = vmatpush.msra.mxu0 %v236
  %297 = vmatpush.msra.mxu0 %v233
  %298 = vmatpush.msra.mxu0 %v230
  %299 = vmatpush.msra.mxu0 %v227
  %300 = vmatpush.msra.mxu0 %v224
  %301 = vmatmul.f32.gmra.mxu0 %v280
  %v302 = vpop.f32.mrf.mxu0
  %v303 = vadd.f32 0.0, %v302
  %304 = vmatmul.f32.gmra.mxu0 %v283
  %v305 = vpop.f32.mrf.mxu0
  %v306 = vadd.f32 0.0, %v305
  %307 = vdwg.mxu0
  %308 = vmatpush.msra.mxu0 0.0
  %309 = vmatpush.msra.mxu0 0.0
  %310 = vmatpush.msra.mxu0 0.0
  %311 = vmatpush.msra.mxu0 0.0
  %312 = vmatpush.msra.mxu0 0.0
  %313 = vmatpush.msra.mxu0 0.0
  %314 = vmatpush.msra.mxu0 0.0
  %315 = vmatpush.msra.mxu0 %v249
  %316 = vmatpush.msra.mxu0 %v246
  %317 = vmatpush.msra.mxu0 %v243
  %318 = vmatpush.msra.mxu0 %v240
  %319 = vmatpush.msra.mxu0 %v237
  %320 = vmatpush.msra.mxu0 %v234
  %321 = vmatpush.msra.mxu0 %v231
  %322 = vmatpush.msra.mxu0 %v228
  %323 = vmatpush.msra.mxu0 %v225
  %324 = vmatmul.f32.gmra.mxu0 %v280
  %v325 = vpop.f32.mrf.mxu0
  %v326 = vadd.f32 0.0, %v325
  %327 = vmatmul.f32.gmra.mxu0 %v283
  %v328 = vpop.f32.mrf.mxu0
  %v329 = vadd.f32 0.0, %v328
  %330 = vdwg.mxu0
  %331 = vmatpush.msra.mxu0 0.0
  %332 = vmatpush.msra.mxu0 0.0
  %333 = vmatpush.msra.mxu0 0.0
  %334 = vmatpush.msra.mxu0 0.0
  %335 = vmatpush.msra.mxu0 0.0
  %336 = vmatpush.msra.mxu0 0.0
  %337 = vmatpush.msra.mxu0 0.0
  %338 = vmatpush.msra.mxu0 %v250
  %339 = vmatpush.msra.mxu0 %v247
  %340 = vmatpush.msra.mxu0 %v244
  %341 = vmatpush.msra.mxu0 %v241
  %342 = vmatpush.msra.mxu0 %v238
  %343 = vmatpush.msra.mxu0 %v235
  %344 = vmatpush.msra.mxu0 %v232
  %345 = vmatpush.msra.mxu0 %v229
  %346 = vmatpush.msra.mxu0 %v226
  %347 = vmatmul.f32.gmra.mxu0 %v280
  %v348 = vpop.f32.mrf.mxu0
  %v349 = vadd.f32 0.0, %v348
  %350 = vmatmul.f32.gmra.mxu0 %v283
  %v351 = vpop.f32.mrf.mxu0
  %v352 = vadd.f32 0.0, %v351
  %353 = vdwg.mxu0
  %354 = vrot.lane.b32.xlu0 %v34, 24
  %v355 = vpop.permute.xlu0 %354
  %356 = vrot.lane.b32.xlu0 %v35, 24
  %v357 = vpop.permute.xlu0 %356
  %358 = vrot.lane.b32.xlu0 %v36, 24
  %v359 = vpop.permute.xlu0 %358
  %360 = vrot.lane.b32.xlu0 %v37, 24
  %v361 = vpop.permute.xlu0 %360
  %vm362 = vcmask 195584
  %v363 = vsel %vm362, %v355, %v357
  %v364 = vsel %vm362, %v357, %v359
  %v365 = vsel %vm362, %v359, %v361
  %366 = vrot.lane.b32.xlu0 %v38, 127
  %v367 = vpop.permute.xlu0 %366
  %368 = vrot.lane.b32.xlu0 %v39, 127
  %v369 = vpop.permute.xlu0 %368
  %370 = vrot.lane.b32.xlu0 %v40, 127
  %v371 = vpop.permute.xlu0 %370
  %v372 = vsel %vm73, %v367, %v369
  %v373 = vsel %vm73, %v369, %v371
  %v374 = vsel %vm73, %v371, %v66
  %375 = vrot.lane.b32.xlu0 %v44, 62
  %v376 = vpop.permute.xlu0 %375
  %377 = vrot.lane.b32.xlu0 %v45, 62
  %v378 = vpop.permute.xlu0 %377
  %v379 = vsel %vm88, %v376, %v378
  %v380 = vsel %vm88, %v378, %v81
  %381 = vrot.lane.b32.xlu0 %v41, 86
  %v382 = vpop.permute.xlu0 %381
  %383 = vrot.lane.b32.xlu0 %v42, 86
  %v384 = vpop.permute.xlu0 %383
  %385 = vrot.lane.b32.xlu0 %v43, 86
  %v386 = vpop.permute.xlu0 %385
  %387 = vrot.lane.b32.xlu0 %v38, 86
  %v388 = vpop.permute.xlu0 %387
  %vm389 = vcmask 703488
  %v390 = vsel %vm389, %v382, %v384
  %v391 = vsel %vm389, %v384, %v386
  %v392 = vsel %vm389, %v386, %v388
  %393 = vrot.lane.b32.xlu0 %v44, 61
  %v394 = vpop.permute.xlu0 %393
  %395 = vrot.lane.b32.xlu0 %v45, 61
  %v396 = vpop.permute.xlu0 %395
  %v397 = vsel %vm111, %v394, %v396
  %v398 = vsel %vm111, %v396, %v104
  %399 = vrot.lane.b32.xlu0 %v38, 110
  %v400 = vpop.permute.xlu0 %399
  %401 = vrot.lane.b32.xlu0 %v39, 110
  %v402 = vpop.permute.xlu0 %401
  %403 = vrot.lane.b32.xlu0 %v40, 110
  %v404 = vpop.permute.xlu0 %403
  %v405 = vsel %vm123, %v400, %v402
  %v406 = vsel %vm123, %v402, %v404
  %v407 = vsel %vm123, %v404, %v116
  %408 = vrot.lane.b32.xlu0 %v34, 6
  %v409 = vpop.permute.xlu0 %408
  %410 = vrot.lane.b32.xlu0 %v35, 6
  %v411 = vpop.permute.xlu0 %410
  %412 = vrot.lane.b32.xlu0 %v36, 6
  %v413 = vpop.permute.xlu0 %412
  %414 = vrot.lane.b32.xlu0 %v37, 6
  %v415 = vpop.permute.xlu0 %414
  %vm416 = vcmask 48128
  %v417 = vsel %vm416, %v409, %v411
  %v418 = vsel %vm416, %v411, %v413
  %v419 = vsel %vm416, %v413, %v415
  %420 = vrot.lane.b32.xlu0 %v38, 109
  %v421 = vpop.permute.xlu0 %420
  %422 = vrot.lane.b32.xlu0 %v39, 109
  %v423 = vpop.permute.xlu0 %422
  %424 = vrot.lane.b32.xlu0 %v40, 109
  %v425 = vpop.permute.xlu0 %424
  %v426 = vsel %vm147, %v421, %v423
  %v427 = vsel %vm147, %v423, %v425
  %v428 = vsel %vm147, %v425, %v140
  %429 = vrot.lane.b32.xlu0 %v38, 66
  %v430 = vpop.permute.xlu0 %429
  %431 = vrot.lane.b32.xlu0 %v39, 66
  %v432 = vpop.permute.xlu0 %431
  %433 = vrot.lane.b32.xlu0 %v40, 66
  %v434 = vpop.permute.xlu0 %433
  %435 = vrot.lane.b32.xlu0 %v34, 66
  %v436 = vpop.permute.xlu0 %435
  %437 = vrot.lane.b32.xlu0 %v355, 66
  %v438 = vpop.permute.xlu0 %437
  %439 = vrot.lane.b32.xlu0 %v363, 66
  %v440 = vpop.permute.xlu0 %439
  %441 = vrot.lane.b32.xlu0 %v364, 66
  %v442 = vpop.permute.xlu0 %441
  %443 = vrot.lane.b32.xlu0 %v365, 66
  %v444 = vpop.permute.xlu0 %443
  %445 = vrot.lane.b32.xlu0 %v372, 66
  %v446 = vpop.permute.xlu0 %445
  %447 = vrot.lane.b32.xlu0 %v373, 66
  %v448 = vpop.permute.xlu0 %447
  %449 = vrot.lane.b32.xlu0 %v374, 66
  %v450 = vpop.permute.xlu0 %449
  %451 = vrot.lane.b32.xlu0 %v66, 66
  %v452 = vpop.permute.xlu0 %451
  %453 = vrot.lane.b32.xlu0 %v376, 66
  %v454 = vpop.permute.xlu0 %453
  %455 = vrot.lane.b32.xlu0 %v379, 66
  %v456 = vpop.permute.xlu0 %455
  %457 = vrot.lane.b32.xlu0 %v380, 66
  %v458 = vpop.permute.xlu0 %457
  %459 = vrot.lane.b32.xlu0 %v81, 66
  %v460 = vpop.permute.xlu0 %459
  %461 = vrot.lane.b32.xlu0 %v390, 66
  %v462 = vpop.permute.xlu0 %461
  %463 = vrot.lane.b32.xlu0 %v391, 66
  %v464 = vpop.permute.xlu0 %463
  %465 = vrot.lane.b32.xlu0 %v392, 66
  %v466 = vpop.permute.xlu0 %465
  %467 = vrot.lane.b32.xlu0 %v388, 66
  %v468 = vpop.permute.xlu0 %467
  %469 = vrot.lane.b32.xlu0 %v394, 66
  %v470 = vpop.permute.xlu0 %469
  %471 = vrot.lane.b32.xlu0 %v397, 66
  %v472 = vpop.permute.xlu0 %471
  %473 = vrot.lane.b32.xlu0 %v398, 66
  %v474 = vpop.permute.xlu0 %473
  %475 = vrot.lane.b32.xlu0 %v104, 66
  %v476 = vpop.permute.xlu0 %475
  %477 = vrot.lane.b32.xlu0 %v405, 66
  %v478 = vpop.permute.xlu0 %477
  %479 = vrot.lane.b32.xlu0 %v406, 66
  %v480 = vpop.permute.xlu0 %479
  %481 = vrot.lane.b32.xlu0 %v407, 66
  %v482 = vpop.permute.xlu0 %481
  %483 = vrot.lane.b32.xlu0 %v116, 66
  %v484 = vpop.permute.xlu0 %483
  %485 = vrot.lane.b32.xlu0 %v409, 66
  %v486 = vpop.permute.xlu0 %485
  %487 = vrot.lane.b32.xlu0 %v417, 66
  %v488 = vpop.permute.xlu0 %487
  %489 = vrot.lane.b32.xlu0 %v418, 66
  %v490 = vpop.permute.xlu0 %489
  %491 = vrot.lane.b32.xlu0 %v419, 66
  %v492 = vpop.permute.xlu0 %491
  %493 = vrot.lane.b32.xlu0 %v426, 66
  %v494 = vpop.permute.xlu0 %493
  %495 = vrot.lane.b32.xlu0 %v427, 66
  %v496 = vpop.permute.xlu0 %495
  %497 = vrot.lane.b32.xlu0 %v428, 66
  %v498 = vpop.permute.xlu0 %497
  %499 = vrot.lane.b32.xlu0 %v140, 66
  %v500 = vpop.permute.xlu0 %499
  %vm501 = vcmask 539648
  %v502 = vsel %vm501, %v430, %v432
  %v503 = vsel %vm501, %v432, %v434
  %v504 = vsel %vm501, %v434, %v436
  %v505 = vsel %vm501, %v438, %v440
  %v506 = vsel %vm501, %v440, %v442
  %v507 = vsel %vm501, %v442, %v444
  %v508 = vsel %vm501, %v446, %v448
  %v509 = vsel %vm501, %v448, %v450
  %v510 = vsel %vm501, %v450, %v452
  %v511 = vsel %vm501, %v454, %v456
  %v512 = vsel %vm501, %v456, %v458
  %v513 = vsel %vm501, %v458, %v460
  %v514 = vsel %vm501, %v462, %v464
  %v515 = vsel %vm501, %v464, %v466
  %v516 = vsel %vm501, %v466, %v468
  %v517 = vsel %vm501, %v470, %v472
  %v518 = vsel %vm501, %v472, %v474
  %v519 = vsel %vm501, %v474, %v476
  %v520 = vsel %vm501, %v478, %v480
  %v521 = vsel %vm501, %v480, %v482
  %v522 = vsel %vm501, %v482, %v484
  %v523 = vsel %vm501, %v486, %v488
  %v524 = vsel %vm501, %v488, %v490
  %v525 = vsel %vm501, %v490, %v492
  %v526 = vsel %vm501, %v494, %v496
  %v527 = vsel %vm501, %v496, %v498
  %v528 = vsel %vm501, %v498, %v500
  %556 = vmatpush.msra.mxu0 0.0
  %557 = vmatpush.msra.mxu0 0.0
  %558 = vmatpush.msra.mxu0 0.0
  %559 = vmatpush.msra.mxu0 0.0
  %560 = vmatpush.msra.mxu0 0.0
  %561 = vmatpush.msra.mxu0 0.0
  %562 = vmatpush.msra.mxu0 0.0
  %563 = vmatpush.msra.mxu0 %v526
  %564 = vmatpush.msra.mxu0 %v523
  %565 = vmatpush.msra.mxu0 %v520
  %566 = vmatpush.msra.mxu0 %v517
  %567 = vmatpush.msra.mxu0 %v514
  %568 = vmatpush.msra.mxu0 %v511
  %569 = vmatpush.msra.mxu0 %v508
  %570 = vmatpush.msra.mxu0 %v505
  %571 = vmatpush.msra.mxu0 %v502
  %572 = vmatmul.f32.gmra.mxu0 %v280
  %v573 = vpop.f32.mrf.mxu0
  %v574 = vadd.f32 0.0, %v573
  %575 = vmatmul.f32.gmra.mxu0 %v283
  %v576 = vpop.f32.mrf.mxu0
  %v577 = vadd.f32 0.0, %v576
  %578 = vdwg.mxu0
  %579 = vmatpush.msra.mxu0 0.0
  %580 = vmatpush.msra.mxu0 0.0
  %581 = vmatpush.msra.mxu0 0.0
  %582 = vmatpush.msra.mxu0 0.0
  %583 = vmatpush.msra.mxu0 0.0
  %584 = vmatpush.msra.mxu0 0.0
  %585 = vmatpush.msra.mxu0 0.0
  %586 = vmatpush.msra.mxu0 %v527
  %587 = vmatpush.msra.mxu0 %v524
  %588 = vmatpush.msra.mxu0 %v521
  %589 = vmatpush.msra.mxu0 %v518
  %590 = vmatpush.msra.mxu0 %v515
  %591 = vmatpush.msra.mxu0 %v512
  %592 = vmatpush.msra.mxu0 %v509
  %593 = vmatpush.msra.mxu0 %v506
  %594 = vmatpush.msra.mxu0 %v503
  %595 = vmatmul.f32.gmra.mxu0 %v280
  %v596 = vpop.f32.mrf.mxu0
  %v597 = vadd.f32 0.0, %v596
  %598 = vmatmul.f32.gmra.mxu0 %v283
  %v599 = vpop.f32.mrf.mxu0
  %v600 = vadd.f32 0.0, %v599
  %601 = vdwg.mxu0
  %602 = vmatpush.msra.mxu0 0.0
  %603 = vmatpush.msra.mxu0 0.0
  %604 = vmatpush.msra.mxu0 0.0
  %605 = vmatpush.msra.mxu0 0.0
  %606 = vmatpush.msra.mxu0 0.0
  %607 = vmatpush.msra.mxu0 0.0
  %608 = vmatpush.msra.mxu0 0.0
  %609 = vmatpush.msra.mxu0 %v528
  %610 = vmatpush.msra.mxu0 %v525
  %611 = vmatpush.msra.mxu0 %v522
  %612 = vmatpush.msra.mxu0 %v519
  %613 = vmatpush.msra.mxu0 %v516
  %614 = vmatpush.msra.mxu0 %v513
  %615 = vmatpush.msra.mxu0 %v510
  %616 = vmatpush.msra.mxu0 %v507
  %617 = vmatpush.msra.mxu0 %v504
  %618 = vmatmul.f32.gmra.mxu0 %v280
  %v619 = vpop.f32.mrf.mxu0
  %v620 = vadd.f32 0.0, %v619
  %621 = vmatmul.f32.gmra.mxu0 %v283
  %v622 = vpop.f32.mrf.mxu0
  %v623 = vadd.f32 0.0, %v622
  %624 = vdwg.mxu0
  %625 = vrot.lane.b32.xlu0 %v44, 103
  %v626 = vpop.permute.xlu0 %625
  %627 = vrot.lane.b32.xlu0 %v45, 103
  %v628 = vpop.permute.xlu0 %627
  %629 = vrot.lane.b32.xlu0 %v41, 103
  %v630 = vpop.permute.xlu0 %629
  %v631 = vsel %vm58, %v626, %v628
  %v632 = vsel %vm58, %v628, %v630
  %633 = vrot.lane.b32.xlu0 %v41, 127
  %v634 = vpop.permute.xlu0 %633
  %635 = vrot.lane.b32.xlu0 %v42, 127
  %v636 = vpop.permute.xlu0 %635
  %637 = vrot.lane.b32.xlu0 %v43, 127
  %v638 = vpop.permute.xlu0 %637
  %v639 = vsel %vm73, %v634, %v636
  %v640 = vsel %vm73, %v636, %v638
  %v641 = vsel %vm73, %v638, %v367
  %642 = vrot.lane.b32.xlu0 %v34, 48
  %v643 = vpop.permute.xlu0 %642
  %644 = vrot.lane.b32.xlu0 %v35, 48
  %v645 = vpop.permute.xlu0 %644
  %646 = vrot.lane.b32.xlu0 %v36, 48
  %v647 = vpop.permute.xlu0 %646
  %648 = vrot.lane.b32.xlu0 %v37, 48
  %v649 = vpop.permute.xlu0 %648
  %vm650 = vcmask 392192
  %v651 = vsel %vm650, %v643, %v645
  %v652 = vsel %vm650, %v645, %v647
  %v653 = vsel %vm650, %v647, %v649
  %654 = vrot.lane.b32.xlu0 %v38, 23
  %v655 = vpop.permute.xlu0 %654
  %656 = vrot.lane.b32.xlu0 %v39, 23
  %v657 = vpop.permute.xlu0 %656
  %658 = vrot.lane.b32.xlu0 %v40, 23
  %v659 = vpop.permute.xlu0 %658
  %660 = vrot.lane.b32.xlu0 %v34, 23
  %v661 = vpop.permute.xlu0 %660
  %vm662 = vcmask 187392
  %v663 = vsel %vm662, %v655, %v657
  %v664 = vsel %vm662, %v657, %v659
  %v665 = vsel %vm662, %v659, %v661
  %666 = vrot.lane.b32.xlu0 %v34, 47
  %v667 = vpop.permute.xlu0 %666
  %668 = vrot.lane.b32.xlu0 %v35, 47
  %v669 = vpop.permute.xlu0 %668
  %670 = vrot.lane.b32.xlu0 %v36, 47
  %v671 = vpop.permute.xlu0 %670
  %672 = vrot.lane.b32.xlu0 %v37, 47
  %v673 = vpop.permute.xlu0 %672
  %vm674 = vcmask 384000
  %v675 = vsel %vm674, %v667, %v669
  %v676 = vsel %vm674, %v669, %v671
  %v677 = vsel %vm674, %v671, %v673
  %678 = vrot.lane.b32.xlu0 %v41, 110
  %v679 = vpop.permute.xlu0 %678
  %680 = vrot.lane.b32.xlu0 %v42, 110
  %v681 = vpop.permute.xlu0 %680
  %682 = vrot.lane.b32.xlu0 %v43, 110
  %v683 = vpop.permute.xlu0 %682
  %v684 = vsel %vm123, %v679, %v681
  %v685 = vsel %vm123, %v681, %v683
  %v686 = vsel %vm123, %v683, %v400
  %687 = vrot.lane.b32.xlu0 %v44, 85
  %v688 = vpop.permute.xlu0 %687
  %689 = vrot.lane.b32.xlu0 %v45, 85
  %v690 = vpop.permute.xlu0 %689
  %691 = vrot.lane.b32.xlu0 %v41, 85
  %v692 = vpop.permute.xlu0 %691
  %v693 = vsel %vm135, %v688, %v690
  %v694 = vsel %vm135, %v690, %v692
  %695 = vrot.lane.b32.xlu0 %v41, 109
  %v696 = vpop.permute.xlu0 %695
  %697 = vrot.lane.b32.xlu0 %v42, 109
  %v698 = vpop.permute.xlu0 %697
  %699 = vrot.lane.b32.xlu0 %v43, 109
  %v700 = vpop.permute.xlu0 %699
  %v701 = vsel %vm147, %v696, %v698
  %v702 = vsel %vm147, %v698, %v700
  %v703 = vsel %vm147, %v700, %v421
  %704 = vrot.lane.b32.xlu0 %v41, 25
  %v705 = vpop.permute.xlu0 %704
  %706 = vrot.lane.b32.xlu0 %v42, 25
  %v707 = vpop.permute.xlu0 %706
  %708 = vrot.lane.b32.xlu0 %v43, 25
  %v709 = vpop.permute.xlu0 %708
  %710 = vrot.lane.b32.xlu0 %v38, 25
  %v711 = vpop.permute.xlu0 %710
  %712 = vrot.lane.b32.xlu0 %v626, 25
  %v713 = vpop.permute.xlu0 %712
  %714 = vrot.lane.b32.xlu0 %v631, 25
  %v715 = vpop.permute.xlu0 %714
  %716 = vrot.lane.b32.xlu0 %v632, 25
  %v717 = vpop.permute.xlu0 %716
  %718 = vrot.lane.b32.xlu0 %v630, 25
  %v719 = vpop.permute.xlu0 %718
  %720 = vrot.lane.b32.xlu0 %v639, 25
  %v721 = vpop.permute.xlu0 %720
  %722 = vrot.lane.b32.xlu0 %v640, 25
  %v723 = vpop.permute.xlu0 %722
  %724 = vrot.lane.b32.xlu0 %v641, 25
  %v725 = vpop.permute.xlu0 %724
  %726 = vrot.lane.b32.xlu0 %v367, 25
  %v727 = vpop.permute.xlu0 %726
  %728 = vrot.lane.b32.xlu0 %v643, 25
  %v729 = vpop.permute.xlu0 %728
  %730 = vrot.lane.b32.xlu0 %v651, 25
  %v731 = vpop.permute.xlu0 %730
  %732 = vrot.lane.b32.xlu0 %v652, 25
  %v733 = vpop.permute.xlu0 %732
  %734 = vrot.lane.b32.xlu0 %v653, 25
  %v735 = vpop.permute.xlu0 %734
  %736 = vrot.lane.b32.xlu0 %v655, 25
  %v737 = vpop.permute.xlu0 %736
  %738 = vrot.lane.b32.xlu0 %v663, 25
  %v739 = vpop.permute.xlu0 %738
  %740 = vrot.lane.b32.xlu0 %v664, 25
  %v741 = vpop.permute.xlu0 %740
  %742 = vrot.lane.b32.xlu0 %v665, 25
  %v743 = vpop.permute.xlu0 %742
  %744 = vrot.lane.b32.xlu0 %v667, 25
  %v745 = vpop.permute.xlu0 %744
  %746 = vrot.lane.b32.xlu0 %v675, 25
  %v747 = vpop.permute.xlu0 %746
  %748 = vrot.lane.b32.xlu0 %v676, 25
  %v749 = vpop.permute.xlu0 %748
  %750 = vrot.lane.b32.xlu0 %v677, 25
  %v751 = vpop.permute.xlu0 %750
  %752 = vrot.lane.b32.xlu0 %v684, 25
  %v753 = vpop.permute.xlu0 %752
  %754 = vrot.lane.b32.xlu0 %v685, 25
  %v755 = vpop.permute.xlu0 %754
  %756 = vrot.lane.b32.xlu0 %v686, 25
  %v757 = vpop.permute.xlu0 %756
  %758 = vrot.lane.b32.xlu0 %v400, 25
  %v759 = vpop.permute.xlu0 %758
  %760 = vrot.lane.b32.xlu0 %v688, 25
  %v761 = vpop.permute.xlu0 %760
  %762 = vrot.lane.b32.xlu0 %v693, 25
  %v763 = vpop.permute.xlu0 %762
  %764 = vrot.lane.b32.xlu0 %v694, 25
  %v765 = vpop.permute.xlu0 %764
  %766 = vrot.lane.b32.xlu0 %v692, 25
  %v767 = vpop.permute.xlu0 %766
  %768 = vrot.lane.b32.xlu0 %v701, 25
  %v769 = vpop.permute.xlu0 %768
  %770 = vrot.lane.b32.xlu0 %v702, 25
  %v771 = vpop.permute.xlu0 %770
  %772 = vrot.lane.b32.xlu0 %v703, 25
  %v773 = vpop.permute.xlu0 %772
  %774 = vrot.lane.b32.xlu0 %v421, 25
  %v775 = vpop.permute.xlu0 %774
  %vm776 = vcmask 203776
  %v777 = vsel %vm776, %v705, %v707
  %v778 = vsel %vm776, %v707, %v709
  %v779 = vsel %vm776, %v709, %v711
  %v780 = vsel %vm776, %v713, %v715
  %v781 = vsel %vm776, %v715, %v717
  %v782 = vsel %vm776, %v717, %v719
  %v783 = vsel %vm776, %v721, %v723
  %v784 = vsel %vm776, %v723, %v725
  %v785 = vsel %vm776, %v725, %v727
  %v786 = vsel %vm776, %v729, %v731
  %v787 = vsel %vm776, %v731, %v733
  %v788 = vsel %vm776, %v733, %v735
  %v789 = vsel %vm776, %v737, %v739
  %v790 = vsel %vm776, %v739, %v741
  %v791 = vsel %vm776, %v741, %v743
  %v792 = vsel %vm776, %v745, %v747
  %v793 = vsel %vm776, %v747, %v749
  %v794 = vsel %vm776, %v749, %v751
  %v795 = vsel %vm776, %v753, %v755
  %v796 = vsel %vm776, %v755, %v757
  %v797 = vsel %vm776, %v757, %v759
  %v798 = vsel %vm776, %v761, %v763
  %v799 = vsel %vm776, %v763, %v765
  %v800 = vsel %vm776, %v765, %v767
  %v801 = vsel %vm776, %v769, %v771
  %v802 = vsel %vm776, %v771, %v773
  %v803 = vsel %vm776, %v773, %v775
  %831 = vmatpush.msra.mxu0 0.0
  %832 = vmatpush.msra.mxu0 0.0
  %833 = vmatpush.msra.mxu0 0.0
  %834 = vmatpush.msra.mxu0 0.0
  %835 = vmatpush.msra.mxu0 0.0
  %836 = vmatpush.msra.mxu0 0.0
  %837 = vmatpush.msra.mxu0 0.0
  %838 = vmatpush.msra.mxu0 %v801
  %839 = vmatpush.msra.mxu0 %v798
  %840 = vmatpush.msra.mxu0 %v795
  %841 = vmatpush.msra.mxu0 %v792
  %842 = vmatpush.msra.mxu0 %v789
  %843 = vmatpush.msra.mxu0 %v786
  %844 = vmatpush.msra.mxu0 %v783
  %845 = vmatpush.msra.mxu0 %v780
  %846 = vmatpush.msra.mxu0 %v777
  %847 = vmatmul.f32.gmra.mxu0 %v280
  %v848 = vpop.f32.mrf.mxu0
  %v849 = vadd.f32 0.0, %v848
  %850 = vmatmul.f32.gmra.mxu0 %v283
  %v851 = vpop.f32.mrf.mxu0
  %v852 = vadd.f32 0.0, %v851
  %853 = vdwg.mxu0
  %854 = vmatpush.msra.mxu0 0.0
  %855 = vmatpush.msra.mxu0 0.0
  %856 = vmatpush.msra.mxu0 0.0
  %857 = vmatpush.msra.mxu0 0.0
  %858 = vmatpush.msra.mxu0 0.0
  %859 = vmatpush.msra.mxu0 0.0
  %860 = vmatpush.msra.mxu0 0.0
  %861 = vmatpush.msra.mxu0 %v802
  %862 = vmatpush.msra.mxu0 %v799
  %863 = vmatpush.msra.mxu0 %v796
  %864 = vmatpush.msra.mxu0 %v793
  %865 = vmatpush.msra.mxu0 %v790
  %866 = vmatpush.msra.mxu0 %v787
  %867 = vmatpush.msra.mxu0 %v784
  %868 = vmatpush.msra.mxu0 %v781
  %869 = vmatpush.msra.mxu0 %v778
  %870 = vmatmul.f32.gmra.mxu0 %v280
  %v871 = vpop.f32.mrf.mxu0
  %v872 = vadd.f32 0.0, %v871
  %873 = vmatmul.f32.gmra.mxu0 %v283
  %v874 = vpop.f32.mrf.mxu0
  %v875 = vadd.f32 0.0, %v874
  %876 = vdwg.mxu0
  %877 = vmatpush.msra.mxu0 0.0
  %878 = vmatpush.msra.mxu0 0.0
  %879 = vmatpush.msra.mxu0 0.0
  %880 = vmatpush.msra.mxu0 0.0
  %881 = vmatpush.msra.mxu0 0.0
  %882 = vmatpush.msra.mxu0 0.0
  %883 = vmatpush.msra.mxu0 0.0
  %884 = vmatpush.msra.mxu0 %v803
  %885 = vmatpush.msra.mxu0 %v800
  %886 = vmatpush.msra.mxu0 %v797
  %887 = vmatpush.msra.mxu0 %v794
  %888 = vmatpush.msra.mxu0 %v791
  %889 = vmatpush.msra.mxu0 %v788
  %890 = vmatpush.msra.mxu0 %v785
  %891 = vmatpush.msra.mxu0 %v782
  %892 = vmatpush.msra.mxu0 %v779
  %893 = vmatmul.f32.gmra.mxu0 %v280
  %v894 = vpop.f32.mrf.mxu0
  %v895 = vadd.f32 0.0, %v894
  %896 = vmatmul.f32.gmra.mxu0 %v283
  %v897 = vpop.f32.mrf.mxu0
  %v898 = vadd.f32 0.0, %v897
  %899 = vdwg.mxu0
  %900 = vrot.lane.b32.xlu0 %v41, 24
  %v901 = vpop.permute.xlu0 %900
  %902 = vrot.lane.b32.xlu0 %v42, 24
  %v903 = vpop.permute.xlu0 %902
  %904 = vrot.lane.b32.xlu0 %v43, 24
  %v905 = vpop.permute.xlu0 %904
  %906 = vrot.lane.b32.xlu0 %v38, 24
  %v907 = vpop.permute.xlu0 %906
  %v908 = vsel %vm362, %v901, %v903
  %v909 = vsel %vm362, %v903, %v905
  %v910 = vsel %vm362, %v905, %v907
  %914 = vrot.lane.b32.xlu0 %v44, 127
  %v915 = vpop.permute.xlu0 %914
  %916 = vrot.lane.b32.xlu0 %v45, 127
  %v917 = vpop.permute.xlu0 %916
  %v918 = vsel %vm73, %v915, %v917
  %v919 = vsel %vm73, %v917, %v634
  %923 = vrot.lane.b32.xlu0 %v38, 48
  %v924 = vpop.permute.xlu0 %923
  %925 = vrot.lane.b32.xlu0 %v39, 48
  %v926 = vpop.permute.xlu0 %925
  %927 = vrot.lane.b32.xlu0 %v40, 48
  %v928 = vpop.permute.xlu0 %927
  %v929 = vsel %vm650, %v924, %v926
  %v930 = vsel %vm650, %v926, %v928
  %v931 = vsel %vm650, %v928, %v643
  %935 = vrot.lane.b32.xlu0 %v34, 72
  %v936 = vpop.permute.xlu0 %935
  %937 = vrot.lane.b32.xlu0 %v35, 72
  %v938 = vpop.permute.xlu0 %937
  %939 = vrot.lane.b32.xlu0 %v36, 72
  %v940 = vpop.permute.xlu0 %939
  %941 = vrot.lane.b32.xlu0 %v37, 72
  %v942 = vpop.permute.xlu0 %941
  %v943 = vsel %vm278, %v936, %v938
  %v944 = vsel %vm278, %v938, %v940
  %v945 = vsel %vm278, %v940, %v942
  %949 = vrot.lane.b32.xlu0 %v38, 47
  %v950 = vpop.permute.xlu0 %949
  %951 = vrot.lane.b32.xlu0 %v39, 47
  %v952 = vpop.permute.xlu0 %951
  %953 = vrot.lane.b32.xlu0 %v40, 47
  %v954 = vpop.permute.xlu0 %953
  %v955 = vsel %vm674, %v950, %v952
  %v956 = vsel %vm674, %v952, %v954
  %v957 = vsel %vm674, %v954, %v667
  %961 = vrot.lane.b32.xlu0 %v44, 110
  %v962 = vpop.permute.xlu0 %961
  %963 = vrot.lane.b32.xlu0 %v45, 110
  %v964 = vpop.permute.xlu0 %963
  %v965 = vsel %vm123, %v962, %v964
  %v966 = vsel %vm123, %v964, %v679
  %970 = vrot.lane.b32.xlu0 %v41, 6
  %v971 = vpop.permute.xlu0 %970
  %972 = vrot.lane.b32.xlu0 %v42, 6
  %v973 = vpop.permute.xlu0 %972
  %974 = vrot.lane.b32.xlu0 %v43, 6
  %v975 = vpop.permute.xlu0 %974
  %976 = vrot.lane.b32.xlu0 %v38, 6
  %v977 = vpop.permute.xlu0 %976
  %v978 = vsel %vm416, %v971, %v973
  %v979 = vsel %vm416, %v973, %v975
  %v980 = vsel %vm416, %v975, %v977
  %984 = vrot.lane.b32.xlu0 %v44, 109
  %v985 = vpop.permute.xlu0 %984
  %986 = vrot.lane.b32.xlu0 %v45, 109
  %v987 = vpop.permute.xlu0 %986
  %v988 = vsel %vm147, %v985, %v987
  %v989 = vsel %vm147, %v987, %v696
  %993 = vmatpush.msra.mxu0 0.0
  %994 = vmatpush.msra.mxu0 0.0
  %995 = vmatpush.msra.mxu0 0.0
  %996 = vmatpush.msra.mxu0 0.0
  %997 = vmatpush.msra.mxu0 0.0
  %998 = vmatpush.msra.mxu0 0.0
  %999 = vmatpush.msra.mxu0 0.0
  %1000 = vmatpush.msra.mxu0 %v988
  %1001 = vmatpush.msra.mxu0 %v978
  %1002 = vmatpush.msra.mxu0 %v965
  %1003 = vmatpush.msra.mxu0 %v955
  %1004 = vmatpush.msra.mxu0 %v943
  %1005 = vmatpush.msra.mxu0 %v929
  %1006 = vmatpush.msra.mxu0 %v918
  %1007 = vmatpush.msra.mxu0 %v908
  %1008 = vmatpush.msra.mxu0 %v44
  %1009 = vmatmul.f32.gmra.mxu0 %v280
  %v1010 = vpop.f32.mrf.mxu0
  %v1011 = vadd.f32 0.0, %v1010
  %1012 = vmatmul.f32.gmra.mxu0 %v283
  %v1013 = vpop.f32.mrf.mxu0
  %v1014 = vadd.f32 0.0, %v1013
  %1015 = vdwg.mxu0
  %1016 = vmatpush.msra.mxu0 0.0
  %1017 = vmatpush.msra.mxu0 0.0
  %1018 = vmatpush.msra.mxu0 0.0
  %1019 = vmatpush.msra.mxu0 0.0
  %1020 = vmatpush.msra.mxu0 0.0
  %1021 = vmatpush.msra.mxu0 0.0
  %1022 = vmatpush.msra.mxu0 0.0
  %1023 = vmatpush.msra.mxu0 %v989
  %1024 = vmatpush.msra.mxu0 %v979
  %1025 = vmatpush.msra.mxu0 %v966
  %1026 = vmatpush.msra.mxu0 %v956
  %1027 = vmatpush.msra.mxu0 %v944
  %1028 = vmatpush.msra.mxu0 %v930
  %1029 = vmatpush.msra.mxu0 %v919
  %1030 = vmatpush.msra.mxu0 %v909
  %1031 = vmatpush.msra.mxu0 %v45
  %1032 = vmatmul.f32.gmra.mxu0 %v280
  %v1033 = vpop.f32.mrf.mxu0
  %v1034 = vadd.f32 0.0, %v1033
  %1035 = vmatmul.f32.gmra.mxu0 %v283
  %v1036 = vpop.f32.mrf.mxu0
  %v1037 = vadd.f32 0.0, %v1036
  %1038 = vdwg.mxu0
  %1039 = vmatpush.msra.mxu0 0.0
  %1040 = vmatpush.msra.mxu0 0.0
  %1041 = vmatpush.msra.mxu0 0.0
  %1042 = vmatpush.msra.mxu0 0.0
  %1043 = vmatpush.msra.mxu0 0.0
  %1044 = vmatpush.msra.mxu0 0.0
  %1045 = vmatpush.msra.mxu0 0.0
  %1046 = vmatpush.msra.mxu0 %v696
  %1047 = vmatpush.msra.mxu0 %v980
  %1048 = vmatpush.msra.mxu0 %v679
  %1049 = vmatpush.msra.mxu0 %v957
  %1050 = vmatpush.msra.mxu0 %v945
  %1051 = vmatpush.msra.mxu0 %v931
  %1052 = vmatpush.msra.mxu0 %v634
  %1053 = vmatpush.msra.mxu0 %v910
  %1054 = vmatpush.msra.mxu0 %v41
  %1055 = vmatmul.f32.gmra.mxu0 %v280
  %v1056 = vpop.f32.mrf.mxu0
  %v1057 = vadd.f32 0.0, %v1056
  %1058 = vmatmul.f32.gmra.mxu0 %v283
  %v1059 = vpop.f32.mrf.mxu0
  %v1060 = vadd.f32 0.0, %v1059
  %1061 = vdwg.mxu0
  %v1062 = vmax.f32 %v303, %v574
  %v1063 = vmax.f32 %v326, %v597
  %v1064 = vmax.f32 %v349, %v620
  %v1065 = vmax.f32 %v306, %v577
  %v1066 = vmax.f32 %v329, %v600
  %v1067 = vmax.f32 %v352, %v623
  %v1068 = vmax.f32 %v849, %v1011
  %v1069 = vmax.f32 %v872, %v1034
  %v1070 = vmax.f32 %v895, %v1057
  %v1071 = vmax.f32 %v852, %v1014
  %v1072 = vmax.f32 %v875, %v1037
  %v1073 = vmax.f32 %v898, %v1060
  %v1074 = vmax.f32 %v1062, %v1068
  %v1075 = vmax.f32 %v1063, %v1069
  %v1076 = vmax.f32 %v1064, %v1070
  %v1077 = vmax.f32 %v1065, %v1071
  %v1078 = vmax.f32 %v1066, %v1072
  %v1079 = vmax.f32 %v1067, %v1073
  %1081 = vset.pattern.permute.xlu0 0
  %1082 = vperm.xlu0 %1081, %v32
  %v1083 = vpop.permute.xlu0 %1082
  %1086 = vset.pattern.permute.xlu0 0
  %1087 = vperm.xlu0 %1086, %v33
  %v1088 = vpop.permute.xlu0 %1087
  %v1090 = vadd.f32 %v1074, %v1083
  %v1091 = vadd.f32 %v1075, %v1083
  %v1092 = vadd.f32 %v1076, %v1083
  %v1093 = vadd.f32 %v1077, %v1088
  %v1094 = vadd.f32 %v1078, %v1088
  %v1095 = vadd.f32 %v1079, %v1088
  %v1096 = vmax.f32 %v1090, 0.0
  %v1097 = vmax.f32 %v1091, 0.0
  %v1098 = vmax.f32 %v1092, 0.0
  %v1099 = vmax.f32 %v1093, 0.0
  %v1100 = vmax.f32 %v1094, 0.0
  %v1101 = vmax.f32 %v1095, 0.0
  %v1103 = vperm.slane %v27, 0
  %v1104 = vperm.slane %v27, 1
  %v1105 = vperm.slane %v27, 2
  %v1109 = vmul.f32 %v1096, %v1103
  %v1110 = vmul.f32 %v1097, %v1104
  %v1111 = vmul.f32 %v1098, %v1105
  %v1112 = vmul.f32 %v1099, %v1103
  %v1113 = vmul.f32 %v1100, %v1104
  %v1114 = vmul.f32 %v1101, %v1105
  %v1115 = vpack.c.bf16 %v1110, %v1109
  %v1116 = vpack.c.bf16 %v1111, %v1111
  %v1117 = vpack.c.bf16 %v1113, %v1112
  %v1118 = vpack.c.bf16 %v1114, %v1114
  %v1123 = vunpack.c.l.b16 %v1115
  %v1124 = vunpack.c.h.b16 %v1115
  %v1125 = vunpack.c.l.b16 %v1116
  %v1126 = vunpack.c.l.b16 %v1117
  %v1127 = vunpack.c.h.b16 %v1117
  %v1128 = vunpack.c.l.b16 %v1118
  %v1129 = vpack.c.b16 %v1126, %v1123
  %v1130 = vpack.c.b16 %v1127, %v1124
  %v1131 = vpack.c.b16 %v1128, %v1125
  %1132 = vrot.lane.b32.xlu0 %v1129, 19
  %v1133 = vpop.permute.xlu0 %1132
  %1134 = vrot.lane.b32.xlu0 %v1130, 19
  %v1135 = vpop.permute.xlu0 %1134
  %1136 = vrot.lane.b32.xlu0 %v1131, 19
  %v1137 = vpop.permute.xlu0 %1136
  %vm1138 = vcmask 154624
  %v1139 = vsel %vm1138, %v1133, %v1135
  %v1140 = vsel %vm1138, %v1135, %v1137
  %vm1142 = vcmask 154624
  %v1145 = vsel %vm1142, 0, %v1133
  %vm1147 = vcmask 1006592
  %v1149 = vsel %vm1147, %v1140, 0
  %v1151 = vld [vmem:[%s1] sm:$0xff]
  %v1152 = vld [vmem:[%s1 + $0x14] sm:$0xff]
  %v1153 = vld [vmem:[%s1 + $0x28] sm:$0xff]
  %v1154 = vld [vmem:[%s1 + $0x3c] sm:$0xff]
  %v1155 = vld [vmem:[%s2] sm:$0xff]
  %v1156 = vld [vmem:[%s2 + $0x8] sm:$0xff]
  %v1157 = vld [vmem:[%s2 + $0x10] sm:$0xff]
  %v1158 = vld [vmem:[%s2 + $0x18] sm:$0xff]
  %1161 = vrot.lane.b32.xlu0 %v1145, 127
  %v1162 = vpop.permute.xlu0 %1161
  %1163 = vrot.lane.b32.xlu0 %v1139, 127
  %v1164 = vpop.permute.xlu0 %1163
  %1165 = vrot.lane.b32.xlu0 %v1149, 127
  %v1166 = vpop.permute.xlu0 %1165
  %vm1167 = vcmask 1039360
  %v1168 = vsel %vm1167, %v1162, %v1164
  %v1169 = vsel %vm1167, %v1164, %v1166
  %1173 = vrot.lane.b32.xlu0 %v1145, 126
  %v1174 = vpop.permute.xlu0 %1173
  %1175 = vrot.lane.b32.xlu0 %v1139, 126
  %v1176 = vpop.permute.xlu0 %1175
  %1177 = vrot.lane.b32.xlu0 %v1149, 126
  %v1178 = vpop.permute.xlu0 %1177
  %vm1179 = vcmask 1031168
  %v1180 = vsel %vm1179, %v1174, %v1176
  %v1181 = vsel %vm1179, %v1176, %v1178
  %1185 = vrot.lane.b32.xlu0 %v1145, 110
  %v1186 = vpop.permute.xlu0 %1185
  %1187 = vrot.lane.b32.xlu0 %v1139, 110
  %v1188 = vpop.permute.xlu0 %1187
  %1189 = vrot.lane.b32.xlu0 %v1149, 110
  %v1190 = vpop.permute.xlu0 %1189
  %vm1191 = vcmask 900096
  %v1192 = vsel %vm1191, %v1186, %v1188
  %v1193 = vsel %vm1191, %v1188, %v1190
  %1197 = vrot.lane.b32.xlu0 %v1145, 109
  %v1198 = vpop.permute.xlu0 %1197
  %1199 = vrot.lane.b32.xlu0 %v1139, 109
  %v1200 = vpop.permute.xlu0 %1199
  %1201 = vrot.lane.b32.xlu0 %v1149, 109
  %v1202 = vpop.permute.xlu0 %1201
  %vm1203 = vcmask 891904
  %v1204 = vsel %vm1203, %v1198, %v1200
  %v1205 = vsel %vm1203, %v1200, %v1202
  %1209 = vrot.lane.b32.xlu0 %v1145, 108
  %v1210 = vpop.permute.xlu0 %1209
  %1211 = vrot.lane.b32.xlu0 %v1139, 108
  %v1212 = vpop.permute.xlu0 %1211
  %1213 = vrot.lane.b32.xlu0 %v1149, 108
  %v1214 = vpop.permute.xlu0 %1213
  %vm1215 = vcmask 883712
  %v1216 = vsel %vm1215, %v1210, %v1212
  %v1217 = vsel %vm1215, %v1212, %v1214
  %1222 = vrot.lane.b32.xlu0 %v1145, 92
  %v1223 = vpop.permute.xlu0 %1222
  %1224 = vrot.lane.b32.xlu0 %v1139, 92
  %v1225 = vpop.permute.xlu0 %1224
  %1226 = vrot.lane.b32.xlu0 %v1149, 92
  %v1227 = vpop.permute.xlu0 %1226
  %1228 = vrot.lane.b32.xlu0 0, 92
  %v1229 = vpop.permute.xlu0 %1228
  %vm1230 = vcmask 752640
  %v1231 = vsel %vm1230, %v1223, %v1225
  %v1232 = vsel %vm1230, %v1225, %v1227
  %v1233 = vsel %vm1230, %v1227, %v1229
  %1237 = vrot.lane.b32.xlu0 %v1145, 91
  %v1238 = vpop.permute.xlu0 %1237
  %1239 = vrot.lane.b32.xlu0 %v1139, 91
  %v1240 = vpop.permute.xlu0 %1239
  %1241 = vrot.lane.b32.xlu0 %v1149, 91
  %v1242 = vpop.permute.xlu0 %1241
  %1243 = vrot.lane.b32.xlu0 0, 91
  %v1244 = vpop.permute.xlu0 %1243
  %vm1245 = vcmask 744448
  %v1246 = vsel %vm1245, %v1238, %v1240
  %v1247 = vsel %vm1245, %v1240, %v1242
  %v1248 = vsel %vm1245, %v1242, %v1244
  %1252 = vrot.lane.b32.xlu0 %v1145, 90
  %v1253 = vpop.permute.xlu0 %1252
  %1254 = vrot.lane.b32.xlu0 %v1139, 90
  %v1255 = vpop.permute.xlu0 %1254
  %1256 = vrot.lane.b32.xlu0 %v1149, 90
  %v1257 = vpop.permute.xlu0 %1256
  %1258 = vrot.lane.b32.xlu0 0, 90
  %v1259 = vpop.permute.xlu0 %1258
  %vm1260 = vcmask 736256
  %v1261 = vsel %vm1260, %v1253, %v1255
  %v1262 = vsel %vm1260, %v1255, %v1257
  %v1263 = vsel %vm1260, %v1257, %v1259
  %1268 = vset.pattern.permute.xlu0 1
  %1269 = vperm.xlu0 %1268, %v1155
  %v1270 = vpop.permute.xlu0 %1269
  %1273 = vset.pattern.permute.xlu0 1
  %1274 = vperm.xlu0 %1273, %v1156
  %v1275 = vpop.permute.xlu0 %1274
  %1278 = vset.pattern.permute.xlu0 1
  %1279 = vperm.xlu0 %1278, %v1157
  %v1280 = vpop.permute.xlu0 %1279
  %1283 = vset.pattern.permute.xlu0 1
  %1284 = vperm.xlu0 %1283, %v1158
  %v1285 = vpop.permute.xlu0 %1284
  %v1291 = vunpack.c.l.b16 %v1151
  %v1292 = vunpack.c.h.b16 %v1151
  %v1293 = vunpack.c.l.b16 %v1152
  %v1294 = vunpack.c.h.b16 %v1152
  %v1295 = vunpack.c.l.b16 %v1153
  %v1296 = vunpack.c.h.b16 %v1153
  %v1297 = vunpack.c.l.b16 %v1154
  %v1298 = vunpack.c.h.b16 %v1154
  %v1299 = vpack.c.b16 %v1293, %v1291
  %v1300 = vpack.c.b16 %v1294, %v1292
  %v1301 = vpack.c.b16 %v1297, %v1295
  %v1302 = vpack.c.b16 %v1298, %v1296
  %1303 = vrot.lane.b32.xlu0 %v1299, 56
  %v1304 = vpop.permute.xlu0 %1303
  %1305 = vrot.lane.b32.xlu0 %v1300, 56
  %v1306 = vpop.permute.xlu0 %1305
  %1307 = vrot.lane.b32.xlu0 %v1301, 56
  %v1308 = vpop.permute.xlu0 %1307
  %1309 = vrot.lane.b32.xlu0 %v1302, 56
  %v1310 = vpop.permute.xlu0 %1309
  %vm1311 = vcmask 457728
  %v1312 = vsel %vm1311, %v1304, %v1306
  %v1313 = vsel %vm1311, %v1308, %v1310
  %vm1316 = vcmask 130048
  %v1318 = vsel %vm1316, %v1306, 0
  %v1321 = vsel %vm1316, %v1310, 0
  %1323 = vmatpush.bf16.msra.mxu0 %v1246
  %1324 = vmatpush.bf16.msra.mxu0 %v1231
  %1325 = vmatpush.bf16.msra.mxu0 %v1216
  %1326 = vmatpush.bf16.msra.mxu0 %v1204
  %1327 = vmatpush.bf16.msra.mxu0 %v1192
  %1328 = vmatpush.bf16.msra.mxu0 %v1180
  %1329 = vmatpush.bf16.msra.mxu0 %v1168
  %1330 = vmatpush.bf16.msra.mxu0 %v1145
  %1331 = vmatmul.bf16.gmra.mxu0 %v1312
  %v1332 = vpop.f32.mrf.mxu0
  %v1333 = vadd.f32 %v1270, %v1332
  %v1334 = vpop.f32.mrf.mxu0
  %v1335 = vadd.f32 %v1275, %v1334
  %1336 = vmatmul.bf16.gmra.mxu0 %v1313
  %v1337 = vpop.f32.mrf.mxu0
  %v1338 = vadd.f32 %v1280, %v1337
  %v1339 = vpop.f32.mrf.mxu0
  %v1340 = vadd.f32 %v1285, %v1339
  %1341 = vdwg.mxu0
  %1342 = vmatpush.bf16.msra.mxu0 0
  %1343 = vmatpush.bf16.msra.mxu0 0
  %1344 = vmatpush.bf16.msra.mxu0 0
  %1345 = vmatpush.bf16.msra.mxu0 0
  %1346 = vmatpush.bf16.msra.mxu0 0
  %1347 = vmatpush.bf16.msra.mxu0 0
  %1348 = vmatpush.bf16.msra.mxu0 0
  %1349 = vmatpush.bf16.msra.mxu0 %v1261
  %1350 = vmatmul.bf16.gmra.mxu0 %v1318
  %v1351 = vpop.f32.mrf.mxu0
  %v1352 = vadd.f32 %v1333, %v1351
  %v1353 = vpop.f32.mrf.mxu0
  %v1354 = vadd.f32 %v1335, %v1353
  %1355 = vmatmul.bf16.gmra.mxu0 %v1321
  %v1356 = vpop.f32.mrf.mxu0
  %v1357 = vadd.f32 %v1338, %v1356
  %v1358 = vpop.f32.mrf.mxu0
  %v1359 = vadd.f32 %v1340, %v1358
  %1360 = vdwg.mxu0
  %1361 = vmatpush.bf16.msra.mxu0 %v1247
  %1362 = vmatpush.bf16.msra.mxu0 %v1232
  %1363 = vmatpush.bf16.msra.mxu0 %v1217
  %1364 = vmatpush.bf16.msra.mxu0 %v1205
  %1365 = vmatpush.bf16.msra.mxu0 %v1193
  %1366 = vmatpush.bf16.msra.mxu0 %v1181
  %1367 = vmatpush.bf16.msra.mxu0 %v1169
  %1368 = vmatpush.bf16.msra.mxu0 %v1139
  %1369 = vmatmul.bf16.gmra.mxu0 %v1312
  %v1370 = vpop.f32.mrf.mxu0
  %v1371 = vadd.f32 %v1270, %v1370
  %v1372 = vpop.f32.mrf.mxu0
  %v1373 = vadd.f32 %v1275, %v1372
  %1374 = vmatmul.bf16.gmra.mxu0 %v1313
  %v1375 = vpop.f32.mrf.mxu0
  %v1376 = vadd.f32 %v1280, %v1375
  %v1377 = vpop.f32.mrf.mxu0
  %v1378 = vadd.f32 %v1285, %v1377
  %1379 = vdwg.mxu0
  %1380 = vmatpush.bf16.msra.mxu0 0
  %1381 = vmatpush.bf16.msra.mxu0 0
  %1382 = vmatpush.bf16.msra.mxu0 0
  %1383 = vmatpush.bf16.msra.mxu0 0
  %1384 = vmatpush.bf16.msra.mxu0 0
  %1385 = vmatpush.bf16.msra.mxu0 0
  %1386 = vmatpush.bf16.msra.mxu0 0
  %1387 = vmatpush.bf16.msra.mxu0 %v1262
  %1388 = vmatmul.bf16.gmra.mxu0 %v1318
  %v1389 = vpop.f32.mrf.mxu0
  %v1390 = vadd.f32 %v1371, %v1389
  %v1391 = vpop.f32.mrf.mxu0
  %v1392 = vadd.f32 %v1373, %v1391
  %1393 = vmatmul.bf16.gmra.mxu0 %v1321
  %v1394 = vpop.f32.mrf.mxu0
  %v1395 = vadd.f32 %v1376, %v1394
  %v1396 = vpop.f32.mrf.mxu0
  %v1397 = vadd.f32 %v1378, %v1396
  %1398 = vdwg.mxu0
  %1399 = vmatpush.bf16.msra.mxu0 %v1248
  %1400 = vmatpush.bf16.msra.mxu0 %v1233
  %1401 = vmatpush.bf16.msra.mxu0 %v1214
  %1402 = vmatpush.bf16.msra.mxu0 %v1202
  %1403 = vmatpush.bf16.msra.mxu0 %v1190
  %1404 = vmatpush.bf16.msra.mxu0 %v1178
  %1405 = vmatpush.bf16.msra.mxu0 %v1166
  %1406 = vmatpush.bf16.msra.mxu0 %v1149
  %1407 = vmatmul.bf16.gmra.mxu0 %v1312
  %v1408 = vpop.f32.mrf.mxu0
  %v1409 = vadd.f32 %v1270, %v1408
  %v1410 = vpop.f32.mrf.mxu0
  %v1411 = vadd.f32 %v1275, %v1410
  %1412 = vmatmul.bf16.gmra.mxu0 %v1313
  %v1413 = vpop.f32.mrf.mxu0
  %v1414 = vadd.f32 %v1280, %v1413
  %v1415 = vpop.f32.mrf.mxu0
  %v1416 = vadd.f32 %v1285, %v1415
  %1417 = vdwg.mxu0
  %1418 = vmatpush.bf16.msra.mxu0 0
  %1419 = vmatpush.bf16.msra.mxu0 0
  %1420 = vmatpush.bf16.msra.mxu0 0
  %1421 = vmatpush.bf16.msra.mxu0 0
  %1422 = vmatpush.bf16.msra.mxu0 0
  %1423 = vmatpush.bf16.msra.mxu0 0
  %1424 = vmatpush.bf16.msra.mxu0 0
  %1425 = vmatpush.bf16.msra.mxu0 %v1263
  %1426 = vmatmul.bf16.gmra.mxu0 %v1318
  %v1427 = vpop.f32.mrf.mxu0
  %v1428 = vadd.f32 %v1409, %v1427
  %v1429 = vpop.f32.mrf.mxu0
  %v1430 = vadd.f32 %v1411, %v1429
  %1431 = vmatmul.bf16.gmra.mxu0 %v1321
  %v1432 = vpop.f32.mrf.mxu0
  %v1433 = vadd.f32 %v1414, %v1432
  %v1434 = vpop.f32.mrf.mxu0
  %v1435 = vadd.f32 %v1416, %v1434
  %1436 = vdwg.mxu0
  %v1437 = vmax.f32 %v1352, 0.0
  %v1438 = vmax.f32 %v1390, 0.0
  %v1439 = vmax.f32 %v1428, 0.0
  %v1440 = vmax.f32 %v1354, 0.0
  %v1441 = vmax.f32 %v1392, 0.0
  %v1442 = vmax.f32 %v1430, 0.0
  %v1443 = vmax.f32 %v1357, 0.0
  %v1444 = vmax.f32 %v1395, 0.0
  %v1445 = vmax.f32 %v1433, 0.0
  %v1446 = vmax.f32 %v1359, 0.0
  %v1447 = vmax.f32 %v1397, 0.0
  %v1448 = vmax.f32 %v1435, 0.0
  %v1449 = vmul.f32 %v1437, %v1103
  %v1450 = vmul.f32 %v1438, %v1104
  %v1451 = vmul.f32 %v1439, %v1105
  %v1452 = vmul.f32 %v1440, %v1103
  %v1453 = vmul.f32 %v1441, %v1104
  %v1454 = vmul.f32 %v1442, %v1105
  %v1455 = vmul.f32 %v1443, %v1103
  %v1456 = vmul.f32 %v1444, %v1104
  %v1457 = vmul.f32 %v1445, %v1105
  %v1458 = vmul.f32 %v1446, %v1103
  %v1459 = vmul.f32 %v1447, %v1104
  %v1460 = vmul.f32 %v1448, %v1105
  %v1461 = vpack.c.bf16 %v1450, %v1449
  %v1462 = vpack.c.bf16 %v1451, %v1451
  %v1463 = vpack.c.bf16 %v1453, %v1452
  %v1464 = vpack.c.bf16 %v1454, %v1454
  %v1465 = vpack.c.bf16 %v1456, %v1455
  %v1466 = vpack.c.bf16 %v1457, %v1457
  %v1467 = vpack.c.bf16 %v1459, %v1458
  %v1468 = vpack.c.bf16 %v1460, %v1460
  %v1477 = vunpack.c.l.b16 %v1461
  %v1478 = vunpack.c.h.b16 %v1461
  %v1479 = vunpack.c.l.b16 %v1462
  %v1480 = vunpack.c.l.b16 %v1463
  %v1481 = vunpack.c.h.b16 %v1463
  %v1482 = vunpack.c.l.b16 %v1464
  %v1483 = vunpack.c.l.b16 %v1465
  %v1484 = vunpack.c.h.b16 %v1465
  %v1485 = vunpack.c.l.b16 %v1466
  %v1486 = vunpack.c.l.b16 %v1467
  %v1487 = vunpack.c.h.b16 %v1467
  %v1488 = vunpack.c.l.b16 %v1468
  %v1489 = vpack.c.b16 %v1480, %v1477
  %v1490 = vpack.c.b16 %v1481, %v1478
  %v1491 = vpack.c.b16 %v1482, %v1479
  %v1492 = vpack.c.b16 %v1486, %v1483
  %v1493 = vpack.c.b16 %v1487, %v1484
  %v1494 = vpack.c.b16 %v1488, %v1485
  %1495 = vrot.lane.b32.xlu0 %v1489, 19
  %v1496 = vpop.permute.xlu0 %1495
  %1497 = vrot.lane.b32.xlu0 %v1490, 19
  %v1498 = vpop.permute.xlu0 %1497
  %1499 = vrot.lane.b32.xlu0 %v1491, 19
  %v1500 = vpop.permute.xlu0 %1499
  %1501 = vrot.lane.b32.xlu0 %v1492, 19
  %v1502 = vpop.permute.xlu0 %1501
  %1503 = vrot.lane.b32.xlu0 %v1493, 19
  %v1504 = vpop.permute.xlu0 %1503
  %1505 = vrot.lane.b32.xlu0 %v1494, 19
  %v1506 = vpop.permute.xlu0 %1505
  %v1507 = vsel %vm1138, %v1496, %v1498
  %v1508 = vsel %vm1138, %v1498, %v1500
  %v1509 = vsel %vm1138, %v1502, %v1504
  %v1510 = vsel %vm1138, %v1504, %v1506
  %v1514 = vsel %vm1142, 0, %v1496
  %v1517 = vsel %vm1142, 0, %v1502
  %v1520 = vsel %vm1147, %v1508, 0
  %v1523 = vsel %vm1147, %v1510, 0
  %v1525 = vld [vmem:[%s1 + $0x4] sm:$0xff]
  %v1526 = vld [vmem:[%s1 + $0xc] sm:$0xff]
  %v1527 = vld [vmem:[%s1 + $0x18] sm:$0xff]
  %v1528 = vld [vmem:[%s1 + $0x20] sm:$0xff]
  %v1529 = vld [vmem:[%s1 + $0x2c] sm:$0xff]
  %v1530 = vld [vmem:[%s1 + $0x34] sm:$0xff]
  %v1531 = vld [vmem:[%s1 + $0x40] sm:$0xff]
  %v1532 = vld [vmem:[%s1 + $0x48] sm:$0xff]
  %1537 = vrot.lane.b32.xlu0 %v1514, 127
  %v1538 = vpop.permute.xlu0 %1537
  %1539 = vrot.lane.b32.xlu0 %v1507, 127
  %v1540 = vpop.permute.xlu0 %1539
  %1541 = vrot.lane.b32.xlu0 %v1520, 127
  %v1542 = vpop.permute.xlu0 %1541
  %1543 = vrot.lane.b32.xlu0 %v1517, 127
  %v1544 = vpop.permute.xlu0 %1543
  %1545 = vrot.lane.b32.xlu0 %v1509, 127
  %v1546 = vpop.permute.xlu0 %1545
  %1547 = vrot.lane.b32.xlu0 %v1523, 127
  %v1548 = vpop.permute.xlu0 %1547
  %v1549 = vsel %vm1167, %v1538, %v1540
  %v1550 = vsel %vm1167, %v1540, %v1542
  %v1551 = vsel %vm1167, %v1544, %v1546
  %v1552 = vsel %vm1167, %v1546, %v1548
  %1559 = vrot.lane.b32.xlu0 %v1514, 126
  %v1560 = vpop.permute.xlu0 %1559
  %1561 = vrot.lane.b32.xlu0 %v1507, 126
  %v1562 = vpop.permute.xlu0 %1561
  %1563 = vrot.lane.b32.xlu0 %v1520, 126
  %v1564 = vpop.permute.xlu0 %1563
  %1565 = vrot.lane.b32.xlu0 %v1517, 126
  %v1566 = vpop.permute.xlu0 %1565
  %1567 = vrot.lane.b32.xlu0 %v1509, 126
  %v1568 = vpop.permute.xlu0 %1567
  %1569 = vrot.lane.b32.xlu0 %v1523, 126
  %v1570 = vpop.permute.xlu0 %1569
  %v1571 = vsel %vm1179, %v1560, %v1562
  %v1572 = vsel %vm1179, %v1562, %v1564
  %v1573 = vsel %vm1179, %v1566, %v1568
  %v1574 = vsel %vm1179, %v1568, %v1570
  %1581 = vrot.lane.b32.xlu0 %v1514, 110
  %v1582 = vpop.permute.xlu0 %1581
  %1583 = vrot.lane.b32.xlu0 %v1507, 110
  %v1584 = vpop.permute.xlu0 %1583
  %1585 = vrot.lane.b32.xlu0 %v1520, 110
  %v1586 = vpop.permute.xlu0 %1585
  %1587 = vrot.lane.b32.xlu0 %v1517, 110
  %v1588 = vpop.permute.xlu0 %1587
  %1589 = vrot.lane.b32.xlu0 %v1509, 110
  %v1590 = vpop.permute.xlu0 %1589
  %1591 = vrot.lane.b32.xlu0 %v1523, 110
  %v1592 = vpop.permute.xlu0 %1591
  %v1593 = vsel %vm1191, %v1582, %v1584
  %v1594 = vsel %vm1191, %v1584, %v1586
  %v1595 = vsel %vm1191, %v1588, %v1590
  %v1596 = vsel %vm1191, %v1590, %v1592
  %1603 = vrot.lane.b32.xlu0 %v1514, 109
  %v1604 = vpop.permute.xlu0 %1603
  %1605 = vrot.lane.b32.xlu0 %v1507, 109
  %v1606 = vpop.permute.xlu0 %1605
  %1607 = vrot.lane.b32.xlu0 %v1520, 109
  %v1608 = vpop.permute.xlu0 %1607
  %1609 = vrot.lane.b32.xlu0 %v1517, 109
  %v1610 = vpop.permute.xlu0 %1609
  %1611 = vrot.lane.b32.xlu0 %v1509, 109
  %v1612 = vpop.permute.xlu0 %1611
  %1613 = vrot.lane.b32.xlu0 %v1523, 109
  %v1614 = vpop.permute.xlu0 %1613
  %v1615 = vsel %vm1203, %v1604, %v1606
  %v1616 = vsel %vm1203, %v1606, %v1608
  %v1617 = vsel %vm1203, %v1610, %v1612
  %v1618 = vsel %vm1203, %v1612, %v1614
  %1625 = vrot.lane.b32.xlu0 %v1514, 108
  %v1626 = vpop.permute.xlu0 %1625
  %1627 = vrot.lane.b32.xlu0 %v1507, 108
  %v1628 = vpop.permute.xlu0 %1627
  %1629 = vrot.lane.b32.xlu0 %v1520, 108
  %v1630 = vpop.permute.xlu0 %1629
  %1631 = vrot.lane.b32.xlu0 %v1517, 108
  %v1632 = vpop.permute.xlu0 %1631
  %1633 = vrot.lane.b32.xlu0 %v1509, 108
  %v1634 = vpop.permute.xlu0 %1633
  %1635 = vrot.lane.b32.xlu0 %v1523, 108
  %v1636 = vpop.permute.xlu0 %1635
  %v1637 = vsel %vm1215, %v1626, %v1628
  %v1638 = vsel %vm1215, %v1628, %v1630
  %v1639 = vsel %vm1215, %v1632, %v1634
  %v1640 = vsel %vm1215, %v1634, %v1636
  %1647 = vrot.lane.b32.xlu0 %v1514, 92
  %v1648 = vpop.permute.xlu0 %1647
  %1649 = vrot.lane.b32.xlu0 %v1507, 92
  %v1650 = vpop.permute.xlu0 %1649
  %1651 = vrot.lane.b32.xlu0 %v1520, 92
  %v1652 = vpop.permute.xlu0 %1651
  %1653 = vrot.lane.b32.xlu0 %v1517, 92
  %v1654 = vpop.permute.xlu0 %1653
  %1655 = vrot.lane.b32.xlu0 %v1509, 92
  %v1656 = vpop.permute.xlu0 %1655
  %1657 = vrot.lane.b32.xlu0 %v1523, 92
  %v1658 = vpop.permute.xlu0 %1657
  %v1659 = vsel %vm1230, %v1648, %v1650
  %v1660 = vsel %vm1230, %v1650, %v1652
  %v1661 = vsel %vm1230, %v1652, %v1229
  %v1662 = vsel %vm1230, %v1654, %v1656
  %v1663 = vsel %vm1230, %v1656, %v1658
  %v1664 = vsel %vm1230, %v1658, %v1229
  %1671 = vrot.lane.b32.xlu0 %v1514, 91
  %v1672 = vpop.permute.xlu0 %1671
  %1673 = vrot.lane.b32.xlu0 %v1507, 91
  %v1674 = vpop.permute.xlu0 %1673
  %1675 = vrot.lane.b32.xlu0 %v1520, 91
  %v1676 = vpop.permute.xlu0 %1675
  %1677 = vrot.lane.b32.xlu0 %v1517, 91
  %v1678 = vpop.permute.xlu0 %1677
  %1679 = vrot.lane.b32.xlu0 %v1509, 91
  %v1680 = vpop.permute.xlu0 %1679
  %1681 = vrot.lane.b32.xlu0 %v1523, 91
  %v1682 = vpop.permute.xlu0 %1681
  %v1683 = vsel %vm1245, %v1672, %v1674
  %v1684 = vsel %vm1245, %v1674, %v1676
  %v1685 = vsel %vm1245, %v1676, %v1244
  %v1686 = vsel %vm1245, %v1678, %v1680
  %v1687 = vsel %vm1245, %v1680, %v1682
  %v1688 = vsel %vm1245, %v1682, %v1244
  %1695 = vrot.lane.b32.xlu0 %v1514, 90
  %v1696 = vpop.permute.xlu0 %1695
  %1697 = vrot.lane.b32.xlu0 %v1507, 90
  %v1698 = vpop.permute.xlu0 %1697
  %1699 = vrot.lane.b32.xlu0 %v1520, 90
  %v1700 = vpop.permute.xlu0 %1699
  %1701 = vrot.lane.b32.xlu0 %v1517, 90
  %v1702 = vpop.permute.xlu0 %1701
  %1703 = vrot.lane.b32.xlu0 %v1509, 90
  %v1704 = vpop.permute.xlu0 %1703
  %1705 = vrot.lane.b32.xlu0 %v1523, 90
  %v1706 = vpop.permute.xlu0 %1705
  %v1707 = vsel %vm1260, %v1696, %v1698
  %v1708 = vsel %vm1260, %v1698, %v1700
  %v1709 = vsel %vm1260, %v1700, %v1259
  %v1710 = vsel %vm1260, %v1702, %v1704
  %v1711 = vsel %vm1260, %v1704, %v1706
  %v1712 = vsel %vm1260, %v1706, %v1259
  %1722 = vset.pattern.permute.xlu0 2
  %1723 = vperm.xlu0 %1722, %v1155
  %v1724 = vpop.permute.xlu0 %1723
  %1726 = vset.pattern.permute.xlu0 2
  %1727 = vperm.xlu0 %1726, %v1156
  %v1728 = vpop.permute.xlu0 %1727
  %1730 = vset.pattern.permute.xlu0 2
  %1731 = vperm.xlu0 %1730, %v1157
  %v1732 = vpop.permute.xlu0 %1731
  %1734 = vset.pattern.permute.xlu0 2
  %1735 = vperm.xlu0 %1734, %v1158
  %v1736 = vpop.permute.xlu0 %1735
  %v1746 = vunpack.c.l.b16 %v1525
  %v1747 = vunpack.c.h.b16 %v1525
  %v1748 = vunpack.c.l.b16 %v1526
  %v1749 = vunpack.c.h.b16 %v1526
  %v1750 = vunpack.c.l.b16 %v1527
  %v1751 = vunpack.c.h.b16 %v1527
  %v1752 = vunpack.c.l.b16 %v1528
  %v1753 = vunpack.c.h.b16 %v1528
  %v1754 = vunpack.c.l.b16 %v1529
  %v1755 = vunpack.c.h.b16 %v1529
  %v1756 = vunpack.c.l.b16 %v1530
  %v1757 = vunpack.c.h.b16 %v1530
  %v1758 = vunpack.c.l.b16 %v1531
  %v1759 = vunpack.c.h.b16 %v1531
  %v1760 = vunpack.c.l.b16 %v1532
  %v1761 = vunpack.c.h.b16 %v1532
  %v1762 = vpack.c.b16 %v1750, %v1746
  %v1763 = vpack.c.b16 %v1751, %v1747
  %v1764 = vpack.c.b16 %v1752, %v1748
  %v1765 = vpack.c.b16 %v1753, %v1749
  %v1766 = vpack.c.b16 %v1758, %v1754
  %v1767 = vpack.c.b16 %v1759, %v1755
  %v1768 = vpack.c.b16 %v1760, %v1756
  %v1769 = vpack.c.b16 %v1761, %v1757
  %1770 = vrot.lane.b32.xlu0 %v1762, 40
  %v1771 = vpop.permute.xlu0 %1770
  %1772 = vrot.lane.b32.xlu0 %v1763, 40
  %v1773 = vpop.permute.xlu0 %1772
  %1774 = vrot.lane.b32.xlu0 %v1764, 40
  %v1775 = vpop.permute.xlu0 %1774
  %1776 = vrot.lane.b32.xlu0 %v1765, 40
  %v1777 = vpop.permute.xlu0 %1776
  %1778 = vrot.lane.b32.xlu0 %v1766, 40
  %v1779 = vpop.permute.xlu0 %1778
  %1780 = vrot.lane.b32.xlu0 %v1767, 40
  %v1781 = vpop.permute.xlu0 %1780
  %1782 = vrot.lane.b32.xlu0 %v1768, 40
  %v1783 = vpop.permute.xlu0 %1782
  %1784 = vrot.lane.b32.xlu0 %v1769, 40
  %v1785 = vpop.permute.xlu0 %1784
  %vm1786 = vcmask 326656
  %v1787 = vsel %vm1786, %v1771, %v1773
  %v1788 = vsel %vm1786, %v1773, %v1775
  %v1789 = vsel %vm1786, %v1775, %v1777
  %v1790 = vsel %vm1786, %v1779, %v1781
  %v1791 = vsel %vm1786, %v1781, %v1783
  %v1792 = vsel %vm1786, %v1783, %v1785
  %v1798 = vsel %vm650, %v1789, 0
  %v1801 = vsel %vm650, %v1792, 0
  %1803 = vmatpush.bf16.msra.mxu0 %v1595
  %1804 = vmatpush.bf16.msra.mxu0 %v1593
  %1805 = vmatpush.bf16.msra.mxu0 %v1573
  %1806 = vmatpush.bf16.msra.mxu0 %v1571
  %1807 = vmatpush.bf16.msra.mxu0 %v1551
  %1808 = vmatpush.bf16.msra.mxu0 %v1549
  %1809 = vmatpush.bf16.msra.mxu0 %v1517
  %1810 = vmatpush.bf16.msra.mxu0 %v1514
  %1811 = vmatmul.bf16.gmra.mxu0 %v1787
  %v1812 = vpop.f32.mrf.mxu0
  %v1813 = vadd.f32 %v1724, %v1812
  %v1814 = vpop.f32.mrf.mxu0
  %v1815 = vadd.f32 %v1728, %v1814
  %1816 = vmatmul.bf16.gmra.mxu0 %v1790
  %v1817 = vpop.f32.mrf.mxu0
  %v1818 = vadd.f32 %v1732, %v1817
  %v1819 = vpop.f32.mrf.mxu0
  %v1820 = vadd.f32 %v1736, %v1819
  %1821 = vdwg.mxu0
  %1822 = vmatpush.bf16.msra.mxu0 %v1686
  %1823 = vmatpush.bf16.msra.mxu0 %v1683
  %1824 = vmatpush.bf16.msra.mxu0 %v1662
  %1825 = vmatpush.bf16.msra.mxu0 %v1659
  %1826 = vmatpush.bf16.msra.mxu0 %v1639
  %1827 = vmatpush.bf16.msra.mxu0 %v1637
  %1828 = vmatpush.bf16.msra.mxu0 %v1617
  %1829 = vmatpush.bf16.msra.mxu0 %v1615
  %1830 = vmatmul.bf16.gmra.mxu0 %v1788
  %v1831 = vpop.f32.mrf.mxu0
  %v1832 = vadd.f32 %v1813, %v1831
  %v1833 = vpop.f32.mrf.mxu0
  %v1834 = vadd.f32 %v1815, %v1833
  %1835 = vmatmul.bf16.gmra.mxu0 %v1791
  %v1836 = vpop.f32.mrf.mxu0
  %v1837 = vadd.f32 %v1818, %v1836
  %v1838 = vpop.f32.mrf.mxu0
  %v1839 = vadd.f32 %v1820, %v1838
  %1840 = vdwg.mxu0
  %1841 = vmatpush.bf16.msra.mxu0 0
  %1842 = vmatpush.bf16.msra.mxu0 0
  %1843 = vmatpush.bf16.msra.mxu0 0
  %1844 = vmatpush.bf16.msra.mxu0 0
  %1845 = vmatpush.bf16.msra.mxu0 0
  %1846 = vmatpush.bf16.msra.mxu0 %v1129
  %1847 = vmatpush.bf16.msra.mxu0 %v1710
  %1848 = vmatpush.bf16.msra.mxu0 %v1707
  %1849 = vmatmul.bf16.gmra.mxu0 %v1798
  %v1850 = vpop.f32.mrf.mxu0
  %v1851 = vadd.f32 %v1832, %v1850
  %v1852 = vpop.f32.mrf.mxu0
  %v1853 = vadd.f32 %v1834, %v1852
  %1854 = vmatmul.bf16.gmra.mxu0 %v1801
  %v1855 = vpop.f32.mrf.mxu0
  %v1856 = vadd.f32 %v1837, %v1855
  %v1857 = vpop.f32.mrf.mxu0
  %v1858 = vadd.f32 %v1839, %v1857
  %1859 = vdwg.mxu0
  %1860 = vmatpush.bf16.msra.mxu0 %v1596
  %1861 = vmatpush.bf16.msra.mxu0 %v1594
  %1862 = vmatpush.bf16.msra.mxu0 %v1574
  %1863 = vmatpush.bf16.msra.mxu0 %v1572
  %1864 = vmatpush.bf16.msra.mxu0 %v1552
  %1865 = vmatpush.bf16.msra.mxu0 %v1550
  %1866 = vmatpush.bf16.msra.mxu0 %v1509
  %1867 = vmatpush.bf16.msra.mxu0 %v1507
  %1868 = vmatmul.bf16.gmra.mxu0 %v1787
  %v1869 = vpop.f32.mrf.mxu0
  %v1870 = vadd.f32 %v1724, %v1869
  %v1871 = vpop.f32.mrf.mxu0
  %v1872 = vadd.f32 %v1728, %v1871
  %1873 = vmatmul.bf16.gmra.mxu0 %v1790
  %v1874 = vpop.f32.mrf.mxu0
  %v1875 = vadd.f32 %v1732, %v1874
  %v1876 = vpop.f32.mrf.mxu0
  %v1877 = vadd.f32 %v1736, %v1876
  %1878 = vdwg.mxu0
  %1879 = vmatpush.bf16.msra.mxu0 %v1687
  %1880 = vmatpush.bf16.msra.mxu0 %v1684
  %1881 = vmatpush.bf16.msra.mxu0 %v1663
  %1882 = vmatpush.bf16.msra.mxu0 %v1660
  %1883 = vmatpush.bf16.msra.mxu0 %v1640
  %1884 = vmatpush.bf16.msra.mxu0 %v1638
  %1885 = vmatpush.bf16.msra.mxu0 %v1618
  %1886 = vmatpush.bf16.msra.mxu0 %v1616
  %1887 = vmatmul.bf16.gmra.mxu0 %v1788
  %v1888 = vpop.f32.mrf.mxu0
  %v1889 = vadd.f32 %v1870, %v1888
  %v1890 = vpop.f32.mrf.mxu0
  %v1891 = vadd.f32 %v1872, %v1890
  %1892 = vmatmul.bf16.gmra.mxu0 %v1791
  %v1893 = vpop.f32.mrf.mxu0
  %v1894 = vadd.f32 %v1875, %v1893
  %v1895 = vpop.f32.mrf.mxu0
  %v1896 = vadd.f32 %v1877, %v1895
  %1897 = vdwg.mxu0
  %1898 = vmatpush.bf16.msra.mxu0 0
  %1899 = vmatpush.bf16.msra.mxu0 0
  %1900 = vmatpush.bf16.msra.mxu0 0
  %1901 = vmatpush.bf16.msra.mxu0 0
  %1902 = vmatpush.bf16.msra.mxu0 0
  %1903 = vmatpush.bf16.msra.mxu0 %v1130
  %1904 = vmatpush.bf16.msra.mxu0 %v1711
  %1905 = vmatpush.bf16.msra.mxu0 %v1708
  %1906 = vmatmul.bf16.gmra.mxu0 %v1798
  %v1907 = vpop.f32.mrf.mxu0
  %v1908 = vadd.f32 %v1889, %v1907
  %v1909 = vpop.f32.mrf.mxu0
  %v1910 = vadd.f32 %v1891, %v1909
  %1911 = vmatmul.bf16.gmra.mxu0 %v1801
  %v1912 = vpop.f32.mrf.mxu0
  %v1913 = vadd.f32 %v1894, %v1912
  %v1914 = vpop.f32.mrf.mxu0
  %v1915 = vadd.f32 %v1896, %v1914
  %1916 = vdwg.mxu0
  %1917 = vmatpush.bf16.msra.mxu0 %v1592
  %1918 = vmatpush.bf16.msra.mxu0 %v1586
  %1919 = vmatpush.bf16.msra.mxu0 %v1570
  %1920 = vmatpush.bf16.msra.mxu0 %v1564
  %1921 = vmatpush.bf16.msra.mxu0 %v1548
  %1922 = vmatpush.bf16.msra.mxu0 %v1542
  %1923 = vmatpush.bf16.msra.mxu0 %v1523
  %1924 = vmatpush.bf16.msra.mxu0 %v1520
  %1925 = vmatmul.bf16.gmra.mxu0 %v1787
  %v1926 = vpop.f32.mrf.mxu0
  %v1927 = vadd.f32 %v1724, %v1926
  %v1928 = vpop.f32.mrf.mxu0
  %v1929 = vadd.f32 %v1728, %v1928
  %1930 = vmatmul.bf16.gmra.mxu0 %v1790
  %v1931 = vpop.f32.mrf.mxu0
  %v1932 = vadd.f32 %v1732, %v1931
  %v1933 = vpop.f32.mrf.mxu0
  %v1934 = vadd.f32 %v1736, %v1933
  %1935 = vdwg.mxu0
  %1936 = vmatpush.bf16.msra.mxu0 %v1688
  %1937 = vmatpush.bf16.msra.mxu0 %v1685
  %1938 = vmatpush.bf16.msra.mxu0 %v1664
  %1939 = vmatpush.bf16.msra.mxu0 %v1661
  %1940 = vmatpush.bf16.msra.mxu0 %v1636
  %1941 = vmatpush.bf16.msra.mxu0 %v1630
  %1942 = vmatpush.bf16.msra.mxu0 %v1614
  %1943 = vmatpush.bf16.msra.mxu0 %v1608
  %1944 = vmatmul.bf16.gmra.mxu0 %v1788
  %v1945 = vpop.f32.mrf.mxu0
  %v1946 = vadd.f32 %v1927, %v1945
  %v1947 = vpop.f32.mrf.mxu0
  %v1948 = vadd.f32 %v1929, %v1947
  %1949 = vmatmul.bf16.gmra.mxu0 %v1791
  %v1950 = vpop.f32.mrf.mxu0
  %v1951 = vadd.f32 %v1932, %v1950
  %v1952 = vpop.f32.mrf.mxu0
  %v1953 = vadd.f32 %v1934, %v1952
  %1954 = vdwg.mxu0
  %1955 = vmatpush.bf16.msra.mxu0 0
  %1956 = vmatpush.bf16.msra.mxu0 0
  %1957 = vmatpush.bf16.msra.mxu0 0
  %1958 = vmatpush.bf16.msra.mxu0 0
  %1959 = vmatpush.bf16.msra.mxu0 0
  %1960 = vmatpush.bf16.msra.mxu0 %v1131
  %1961 = vmatpush.bf16.msra.mxu0 %v1712
  %1962 = vmatpush.bf16.msra.mxu0 %v1709
  %1963 = vmatmul.bf16.gmra.mxu0 %v1798
  %v1964 = vpop.f32.mrf.mxu0
  %v1965 = vadd.f32 %v1946, %v1964
  %v1966 = vpop.f32.mrf.mxu0
  %v1967 = vadd.f32 %v1948, %v1966
  %1968 = vmatmul.bf16.gmra.mxu0 %v1801
  %v1969 = vpop.f32.mrf.mxu0
  %v1970 = vadd.f32 %v1951, %v1969
  %v1971 = vpop.f32.mrf.mxu0
  %v1972 = vadd.f32 %v1953, %v1971
  %1973 = vdwg.mxu0
  %v1974 = vmax.f32 %v1851, 0.0
  %v1975 = vmax.f32 %v1908, 0.0
  %v1976 = vmax.f32 %v1965, 0.0
  %v1977 = vmax.f32 %v1853, 0.0
  %v1978 = vmax.f32 %v1910, 0.0
  %v1979 = vmax.f32 %v1967, 0.0
  %v1980 = vmax.f32 %v1856, 0.0
  %v1981 = vmax.f32 %v1913, 0.0
  %v1982 = vmax.f32 %v1970, 0.0
  %v1983 = vmax.f32 %v1858, 0.0
  %v1984 = vmax.f32 %v1915, 0.0
  %v1985 = vmax.f32 %v1972, 0.0
  %1998 = vrot.lane.b32.xlu0 %v1974, 127
  %v1999 = vpop.permute.xlu0 %1998
  %2000 = vrot.lane.b32.xlu0 %v1975, 127
  %v2001 = vpop.permute.xlu0 %2000
  %2002 = vrot.lane.b32.xlu0 %v1976, 127
  %v2003 = vpop.permute.xlu0 %2002
  %2004 = vrot.lane.b32.xlu0 %v1977, 127
  %v2005 = vpop.permute.xlu0 %2004
  %2006 = vrot.lane.b32.xlu0 %v1978, 127
  %v2007 = vpop.permute.xlu0 %2006
  %2008 = vrot.lane.b32.xlu0 %v1979, 127
  %v2009 = vpop.permute.xlu0 %2008
  %2010 = vrot.lane.b32.xlu0 %v1980, 127
  %v2011 = vpop.permute.xlu0 %2010
  %2012 = vrot.lane.b32.xlu0 %v1981, 127
  %v2013 = vpop.permute.xlu0 %2012
  %2014 = vrot.lane.b32.xlu0 %v1982, 127
  %v2015 = vpop.permute.xlu0 %2014
  %2016 = vrot.lane.b32.xlu0 %v1983, 127
  %v2017 = vpop.permute.xlu0 %2016
  %2018 = vrot.lane.b32.xlu0 %v1984, 127
  %v2019 = vpop.permute.xlu0 %2018
  %2020 = vrot.lane.b32.xlu0 %v1985, 127
  %v2021 = vpop.permute.xlu0 %2020
  %v2022 = vsel %vm73, %v1999, %v2001
  %v2023 = vsel %vm73, %v2001, %v2003
  %v2024 = vsel %vm73, %v2005, %v2007
  %v2025 = vsel %vm73, %v2007, %v2009
  %v2026 = vsel %vm73, %v2011, %v2013
  %v2027 = vsel %vm73, %v2013, %v2015
  %v2028 = vsel %vm73, %v2017, %v2019
  %v2029 = vsel %vm73, %v2019, %v2021
  %v2042 = vmax.f32 %v1974, %v2022
  %v2043 = vmax.f32 %v1975, %v2023
  %v2044 = vmax.f32 %v1976, %v2003
  %v2045 = vmax.f32 %v1977, %v2024
  %v2046 = vmax.f32 %v1978, %v2025
  %v2047 = vmax.f32 %v1979, %v2009
  %v2048 = vmax.f32 %v1980, %v2026
  %v2049 = vmax.f32 %v1981, %v2027
  %v2050 = vmax.f32 %v1982, %v2015
  %v2051 = vmax.f32 %v1983, %v2028
  %v2052 = vmax.f32 %v1984, %v2029
  %v2053 = vmax.f32 %v1985, %v2021
  %2066 = vrot.lane.b32.xlu0 %v2042, 110
  %v2067 = vpop.permute.xlu0 %2066
  %2068 = vrot.lane.b32.xlu0 %v2043, 110
  %v2069 = vpop.permute.xlu0 %2068
  %2070 = vrot.lane.b32.xlu0 %v2044, 110
  %v2071 = vpop.permute.xlu0 %2070
  %2072 = vrot.lane.b32.xlu0 %v2045, 110
  %v2073 = vpop.permute.xlu0 %2072
  %2074 = vrot.lane.b32.xlu0 %v2046, 110
  %v2075 = vpop.permute.xlu0 %2074
  %2076 = vrot.lane.b32.xlu0 %v2047, 110
  %v2077 = vpop.permute.xlu0 %2076
  %2078 = vrot.lane.b32.xlu0 %v2048, 110
  %v2079 = vpop.permute.xlu0 %2078
  %2080 = vrot.lane.b32.xlu0 %v2049, 110
  %v2081 = vpop.permute.xlu0 %2080
  %2082 = vrot.lane.b32.xlu0 %v2050, 110
  %v2083 = vpop.permute.xlu0 %2082
  %2084 = vrot.lane.b32.xlu0 %v2051, 110
  %v2085 = vpop.permute.xlu0 %2084
  %2086 = vrot.lane.b32.xlu0 %v2052, 110
  %v2087 = vpop.permute.xlu0 %2086
  %2088 = vrot.lane.b32.xlu0 %v2053, 110
  %v2089 = vpop.permute.xlu0 %2088
  %v2090 = vsel %vm123, %v2067, %v2069
  %v2091 = vsel %vm123, %v2069, %v2071
  %v2092 = vsel %vm123, %v2073, %v2075
  %v2093 = vsel %vm123, %v2075, %v2077
  %v2094 = vsel %vm123, %v2079, %v2081
  %v2095 = vsel %vm123, %v2081, %v2083
  %v2096 = vsel %vm123, %v2085, %v2087
  %v2097 = vsel %vm123, %v2087, %v2089
  %v2110 = vmax.f32 %v2042, %v2090
  %v2111 = vmax.f32 %v2043, %v2091
  %v2112 = vmax.f32 %v2044, %v2071
  %v2113 = vmax.f32 %v2045, %v2092
  %v2114 = vmax.f32 %v2046, %v2093
  %v2115 = vmax.f32 %v2047, %v2077
  %v2116 = vmax.f32 %v2048, %v2094
  %v2117 = vmax.f32 %v2049, %v2095
  %v2118 = vmax.f32 %v2050, %v2083
  %v2119 = vmax.f32 %v2051, %v2096
  %v2120 = vmax.f32 %v2052, %v2097
  %v2121 = vmax.f32 %v2053, %v2089
  %v2122 = vld [vmem:[%s4] sm:$0xff]
  %v2123 = vld [vmem:[%s4 + $0x8] sm:$0xff]
  %v2124 = vld [vmem:[%s4 + $0x10] sm:$0xff]
  %v2125 = vld [vmem:[%s4 + $0x18] sm:$0xff]
  %v2126 = vld [vmem:[%s4 + $0x20] sm:$0xff]
  %v2127 = vld [vmem:[%s4 + $0x28] sm:$0xff]
  %v2128 = vld [vmem:[%s4 + $0x30] sm:$0xff]
  %v2129 = vld [vmem:[%s4 + $0x38] sm:$0xff]
  %v2130 = vld [vmem:[%s4 + $0x40] sm:$0xff]
  %v2131 = vld [vmem:[%s4 + $0x48] sm:$0xff]
  %v2132 = vld [vmem:[%s4 + $0x50] sm:$0xff]
  %v2133 = vld [vmem:[%s4 + $0x58] sm:$0xff]
  %v2134 = vld [vmem:[%s4 + $0x60] sm:$0xff]
  %v2135 = vld [vmem:[%s4 + $0x68] sm:$0xff]
  %v2136 = vld [vmem:[%s4 + $0x70] sm:$0xff]
  %v2137 = vld [vmem:[%s4 + $0x78] sm:$0xff]
  %v2138 = vld [vmem:[%s4 + $0x80] sm:$0xff]
  %v2139 = vld [vmem:[%s4 + $0x88] sm:$0xff]
  %v2140 = vld [vmem:[%s4 + $0x90] sm:$0xff]
  %v2141 = vld [vmem:[%s4 + $0x98] sm:$0xff]
  %v2142 = vld [vmem:[%s4 + $0xa0] sm:$0xff]
  %v2143 = vld [vmem:[%s4 + $0xa8] sm:$0xff]
  %v2144 = vld [vmem:[%s4 + $0xb0] sm:$0xff]
  %v2145 = vld [vmem:[%s4 + $0xb8] sm:$0xff]
  %v2146 = vld [vmem:[%s4 + $0xc0] sm:$0xff]
  %v2147 = vld [vmem:[%s4 + $0xc8] sm:$0xff]
  %v2148 = vld [vmem:[%s4 + $0xd0] sm:$0xff]
  %v2149 = vld [vmem:[%s4 + $0xd8] sm:$0xff]
  %v2150 = vld [vmem:[%s4 + $0xe0] sm:$0xff]
  %v2151 = vld [vmem:[%s4 + $0xe8] sm:$0xff]
  %v2152 = vld [vmem:[%s4 + $0xf0] sm:$0xff]
  %v2153 = vld [vmem:[%s4 + $0xf8] sm:$0xff]
  %v2154 = vld [vmem:[%s4 + $0x100] sm:$0xff]
  %v2155 = vld [vmem:[%s4 + $0x108] sm:$0xff]
  %v2156 = vld [vmem:[%s4 + $0x110] sm:$0xff]
  %v2157 = vld [vmem:[%s4 + $0x118] sm:$0xff]
  %v2158 = vld [vmem:[%s4 + $0x120] sm:$0xff]
  %v2159 = vld [vmem:[%s4 + $0x128] sm:$0xff]
  %v2160 = vld [vmem:[%s4 + $0x130] sm:$0xff]
  %v2161 = vld [vmem:[%s4 + $0x138] sm:$0xff]
  %v2162 = vld [vmem:[%s4 + $0x140] sm:$0xff]
  %v2163 = vld [vmem:[%s4 + $0x148] sm:$0xff]
  %v2164 = vld [vmem:[%s4 + $0x150] sm:$0x1f]
  %v2166 = vsel %vm135, %v2112, 0
  %v2169 = vsel %vm135, %v2115, 0
  %v2172 = vsel %vm135, %v2118, 0
  %v2175 = vsel %vm135, %v2121, 0
  %vm2177 = vcmask 1044480
  %v2179 = vsel %vm2177, %v2164, 0
  %2181 = vmatpush.msra.mxu0 %v2137
  %2182 = vmatpush.msra.mxu0 %v2136
  %2183 = vmatpush.msra.mxu0 %v2135
  %2184 = vmatpush.msra.mxu0 %v2134
  %2185 = vmatpush.msra.mxu0 %v2133
  %2186 = vmatpush.msra.mxu0 %v2132
  %2187 = vmatpush.msra.mxu0 %v2131
  %2188 = vmatpush.msra.mxu0 %v2130
  %2189 = vmatpush.msra.mxu0 %v2129
  %2190 = vmatpush.msra.mxu0 %v2128
  %2191 = vmatpush.msra.mxu0 %v2127
  %2192 = vmatpush.msra.mxu0 %v2126
  %2193 = vmatpush.msra.mxu0 %v2125
  %2194 = vmatpush.msra.mxu0 %v2124
  %2195 = vmatpush.msra.mxu0 %v2123
  %2196 = vmatpush.msra.mxu0 %v2122
  %2197 = vmatmul.f32.gmra.mxu0 %v2110
  %v2198 = vpop.f32.mrf.mxu0
  %v2199 = vadd.f32 0.0, %v2198
  %2200 = vmatmul.f32.gmra.mxu0 %v2113
  %v2201 = vpop.f32.mrf.mxu0
  %v2202 = vadd.f32 0.0, %v2201
  %2203 = vmatmul.f32.gmra.mxu0 %v2116
  %v2204 = vpop.f32.mrf.mxu0
  %v2205 = vadd.f32 0.0, %v2204
  %2206 = vmatmul.f32.gmra.mxu0 %v2119
  %v2207 = vpop.f32.mrf.mxu0
  %v2208 = vadd.f32 0.0, %v2207
  %2209 = vdwg.mxu0
  %2210 = vmatpush.msra.mxu0 %v2153
  %2211 = vmatpush.msra.mxu0 %v2152
  %2212 = vmatpush.msra.mxu0 %v2151
  %2213 = vmatpush.msra.mxu0 %v2150
  %2214 = vmatpush.msra.mxu0 %v2149
  %2215 = vmatpush.msra.mxu0 %v2148
  %2216 = vmatpush.msra.mxu0 %v2147
  %2217 = vmatpush.msra.mxu0 %v2146
  %2218 = vmatpush.msra.mxu0 %v2145
  %2219 = vmatpush.msra.mxu0 %v2144
  %2220 = vmatpush.msra.mxu0 %v2143
  %2221 = vmatpush.msra.mxu0 %v2142
  %2222 = vmatpush.msra.mxu0 %v2141
  %2223 = vmatpush.msra.mxu0 %v2140
  %2224 = vmatpush.msra.mxu0 %v2139
  %2225 = vmatpush.msra.mxu0 %v2138
  %2226 = vmatmul.f32.gmra.mxu0 %v2111
  %v2227 = vpop.f32.mrf.mxu0
  %v2228 = vadd.f32 %v2199, %v2227
  %2229 = vmatmul.f32.gmra.mxu0 %v2114
  %v2230 = vpop.f32.mrf.mxu0
  %v2231 = vadd.f32 %v2202, %v2230
  %2232 = vmatmul.f32.gmra.mxu0 %v2117
  %v2233 = vpop.f32.mrf.mxu0
  %v2234 = vadd.f32 %v2205, %v2233
  %2235 = vmatmul.f32.gmra.mxu0 %v2120
  %v2236 = vpop.f32.mrf.mxu0
  %v2237 = vadd.f32 %v2208, %v2236
  %2238 = vdwg.mxu0
  %2239 = vmatpush.msra.mxu0 0.0
  %2240 = vmatpush.msra.mxu0 0.0
  %2241 = vmatpush.msra.mxu0 0.0
  %2242 = vmatpush.msra.mxu0 0.0
  %2243 = vmatpush.msra.mxu0 0.0
  %2244 = vmatpush.msra.mxu0 %v2179
  %2245 = vmatpush.msra.mxu0 %v2163
  %2246 = vmatpush.msra.mxu0 %v2162
  %2247 = vmatpush.msra.mxu0 %v2161
  %2248 = vmatpush.msra.mxu0 %v2160
  %2249 = vmatpush.msra.mxu0 %v2159
  %2250 = vmatpush.msra.mxu0 %v2158
  %2251 = vmatpush.msra.mxu0 %v2157
  %2252 = vmatpush.msra.mxu0 %v2156
  %2253 = vmatpush.msra.mxu0 %v2155
  %2254 = vmatpush.msra.mxu0 %v2154
  %2255 = vmatmul.f32.gmra.mxu0 %v2166
  %v2256 = vpop.f32.mrf.mxu0
  %v2257 = vadd.f32 %v2228, %v2256
  %2258 = vmatmul.f32.gmra.mxu0 %v2169
  %v2259 = vpop.f32.mrf.mxu0
  %v2260 = vadd.f32 %v2231, %v2259
  %2261 = vmatmul.f32.gmra.mxu0 %v2172
  %v2262 = vpop.f32.mrf.mxu0
  %v2263 = vadd.f32 %v2234, %v2262
  %2264 = vmatmul.f32.gmra.mxu0 %v2175
  %v2265 = vpop.f32.mrf.mxu0
  %v2266 = vadd.f32 %v2237, %v2265
  %2267 = vdwg.mxu0
  %2268 = vxpose.xlu0.b32.start [1/16] %v2257, 128
  %2269 = vxpose.xlu0.b32.cont [2/16] %v2260, 128
  %2270 = vxpose.xlu0.b32.cont [3/16] %v2263, 128
  %2271 = vxpose.xlu0.b32.cont [4/16] %v2266, 128
  %2272 = vxpose.xlu0.b32.cont [5/16] 0.0, 128
  %2273 = vxpose.xlu0.b32.cont [6/16] 0.0, 128
  %2274 = vxpose.xlu0.b32.cont [7/16] 0.0, 128
  %2275 = vxpose.xlu0.b32.cont [8/16] 0.0, 128
  %2276 = vxpose.xlu0.b32.cont [9/16] 0.0, 128
  %2277 = vxpose.xlu0.b32.cont [10/16] 0.0, 128
  %2278 = vxpose.xlu0.b32.cont [11/16] 0.0, 128
  %2279 = vxpose.xlu0.b32.cont [12/16] 0.0, 128
  %2280 = vxpose.xlu0.b32.cont [13/16] 0.0, 128
  %2281 = vxpose.xlu0.b32.cont [14/16] 0.0, 128
  %2282 = vxpose.xlu0.b32.cont [15/16] 0.0, 128
  %2283 = vxpose.xlu0.b32.end [16/16] 0.0, 128
  %v2284 = vpop.trf.xlu0
  %v2285 = vpop.trf.xlu0
  %v2286 = vpop.trf.xlu0
  %v2287 = vpop.trf.xlu0
  %v2288 = vpop.trf.xlu0
  %v2289 = vpop.trf.xlu0
  %v2290 = vpop.trf.xlu0
  %v2291 = vpop.trf.xlu0
  %v2292 = vpop.trf.xlu0
  %v2293 = vpop.trf.xlu0
  %v2294 = vpop.trf.xlu0
  %v2295 = vpop.trf.xlu0
  %v2296 = vpop.trf.xlu0
  %v2297 = vpop.trf.xlu0
  %v2298 = vpop.trf.xlu0
  %v2299 = vpop.trf.xlu0
  %vm2300 = vcmask 261120
  %v2301 = vsel %vm2300, 1.0, 0.0
  %v2302 = vsel %vm2300, 0.0, 1.0
  %v2304 = vrot.slane %v2302, 6
  %vm2306 = vcmask 1041408
  %v2307 = vsel %vm2306, %v2301, %v2304
  %v2308 = vld [vmem:[%s5] sm:$0xff]
  %v2309 = vld [vmem:[%s5 + $0x24] sm:$0xff]
  %v2310 = vld [vmem:[%s5 + $0x48] sm:$0xff]
  %v2311 = vld [vmem:[%s5 + $0x6c] sm:$0xff]
  %v2312 = vld [vmem:[%s5 + $0x8] sm:$0xf]
  %v2313 = vld [vmem:[%s5 + $0x2c] sm:$0xf]
  %v2314 = vld [vmem:[%s5 + $0x50] sm:$0xf]
  %v2315 = vld [vmem:[%s5 + $0x74] sm:$0xf]
  %v2316 = vld [vmem:[%s5 + $0x98] sm:$0xf]
  %v2317 = vld [vmem:[%s5 + $0xbc] sm:$0xf]
  %v2318 = vld [vmem:[%s5 + $0xe0] sm:$0xf]
  %v2319 = vld [vmem:[%s5 + $0x104] sm:$0xf]
  %v2320 = vld [vmem:[%s5 + $0xc] sm:$0xf]
  %v2321 = vld [vmem:[%s5 + $0x30] sm:$0xf]
  %v2322 = vld [vmem:[%s5 + $0x54] sm:$0xf]
  %v2323 = vld [vmem:[%s5 + $0x78] sm:$0xf]
  %v2324 = vld [vmem:[%s5 + $0x9c] sm:$0xf]
  %v2325 = vld [vmem:[%s5 + $0xc0] sm:$0xf]
  %v2326 = vld [vmem:[%s5 + $0xe4] sm:$0xf]
  %v2327 = vld [vmem:[%s5 + $0x108] sm:$0xf]
  %v2328 = vld [vmem:[%s6] ss:$4 sm:$0x3]
  %v2329 = vld [vmem:[%s6 + $0x2] sm:$0x1]
  %v2330 = vpack.c.bf16 %v2285, %v2284
  %v2332 = vperm.slane %v2328, 0
  %v2333 = vperm.slane %v2328, 1
  %v2340 = vunpack.c.l.b16 %v2308
  %v2341 = vunpack.c.h.b16 %v2308
  %v2342 = vunpack.c.l.b16 %v2309
  %v2343 = vunpack.c.h.b16 %v2309
  %v2344 = vunpack.c.l.b16 %v2310
  %v2345 = vunpack.c.h.b16 %v2310
  %v2346 = vunpack.c.l.b16 %v2311
  %v2347 = vunpack.c.h.b16 %v2311
  %v2348 = vpack.c.b16 %v2342, %v2340
  %v2349 = vpack.c.b16 %v2343, %v2341
  %v2350 = vpack.c.b16 %v2346, %v2344
  %v2351 = vpack.c.b16 %v2347, %v2345
  %v2357 = vsel %vm2300, %v2330, 0
  %2359 = vmatpush.bf16.msra.mxu0 0
  %2360 = vmatpush.bf16.msra.mxu0 0
  %2361 = vmatpush.bf16.msra.mxu0 0
  %2362 = vmatpush.bf16.msra.mxu0 0
  %2363 = vmatpush.bf16.msra.mxu0 0
  %2364 = vmatpush.bf16.msra.mxu0 0
  %2365 = vmatpush.bf16.msra.mxu0 %v2350
  %2366 = vmatpush.bf16.msra.mxu0 %v2348
  %2367 = vmatmul.bf16.gmra.mxu0 %v2357
  %v2368 = vpop.f32.mrf.mxu0
  %v2369 = vadd.f32 %v2332, %v2368
  %v2370 = vpop.f32.mrf.mxu0
  %v2371 = vadd.f32 %v2332, %v2370
  %2372 = vdwg.mxu0
  %2373 = vmatpush.bf16.msra.mxu0 0
  %2374 = vmatpush.bf16.msra.mxu0 0
  %2375 = vmatpush.bf16.msra.mxu0 0
  %2376 = vmatpush.bf16.msra.mxu0 0
  %2377 = vmatpush.bf16.msra.mxu0 0
  %2378 = vmatpush.bf16.msra.mxu0 0
  %2379 = vmatpush.bf16.msra.mxu0 %v2351
  %2380 = vmatpush.bf16.msra.mxu0 %v2349
  %2381 = vmatmul.bf16.gmra.mxu0 %v2357
  %v2382 = vpop.f32.mrf.mxu0
  %v2383 = vadd.f32 %v2333, %v2382
  %v2384 = vpop.f32.mrf.mxu0
  %v2385 = vadd.f32 %v2333, %v2384
  %2386 = vdwg.mxu0
  %v2388 = vrot.slane %v2385, 4
  %v2390 = vsel %vm2306, %v2369, %v2388
  %v2399 = vunpack.c.l.b16 %v2312
  %v2400 = vunpack.c.l.b16 %v2313
  %v2401 = vunpack.c.l.b16 %v2314
  %v2402 = vunpack.c.l.b16 %v2315
  %v2403 = vunpack.c.l.b16 %v2316
  %v2404 = vunpack.c.l.b16 %v2317
  %v2405 = vunpack.c.l.b16 %v2318
  %v2406 = vunpack.c.l.b16 %v2319
  %v2407 = vpack.c.b16 %v2400, %v2399
  %v2408 = vpack.c.b16 %v2402, %v2401
  %v2409 = vpack.c.b16 %v2404, %v2403
  %v2410 = vpack.c.b16 %v2406, %v2405
  %vm2415 = vcmask 523264
  %v2416 = vsel %vm2415, 0, 0
  %2418 = vmatpush.bf16.msra.mxu0 0
  %2419 = vmatpush.bf16.msra.mxu0 0
  %2420 = vmatpush.bf16.msra.mxu0 0
  %2421 = vmatpush.bf16.msra.mxu0 0
  %2422 = vmatpush.bf16.msra.mxu0 %v2410
  %2423 = vmatpush.bf16.msra.mxu0 %v2409
  %2424 = vmatpush.bf16.msra.mxu0 %v2408
  %2425 = vmatpush.bf16.msra.mxu0 %v2407
  %2426 = vmatmul.bf16.gmra.mxu0 %v2416
  %v2427 = vpop.f32.mrf.mxu0
  %v2428 = vadd.f32 0.0, %v2427
  %v2429 = vpop.f32.mrf.mxu0
  %2430 = vdwg.mxu0
  %v2431 = vadd.f32 %v2390, %v2428
  %v2432 = vxor.u32 %v2431, 2147483648
  %v2433 = vmul.f32 %v2432, 1.442695
  %v2434 = vpow.pop %v2433
  %v2435 = vadd.f32 %v2434, 1.0
  %v2436 = vrcp.pop %v2435
  %v2437 = vmul.f32 %v2435, %v2436
  %v2438 = vsub.f32 1.0, %v2437
  %v2439 = vmul.f32 %v2436, %v2438
  %v2440 = vadd.f32 %v2436, %v2439
  %vm2441 = vweird.f32 %v2435
  %vm2442 = vweird.f32 %v2436
  %vm2443 = vmor %vm2441, %vm2442
  %v2444 = vsel %vm2443, %v2436, %v2440
  %v2445 = vand.u32 2147483647, %v2435
  %vm2446 = vcmp.eq.f32.partialorder %v2445, 8.507059e+37
  %v2447 = vand.u32 %v2435, 2147483648
  %v2448 = vor.u32 1.1754944e-38, %v2447
  %v2449 = vsel %vm2446, %v2448, %v2444
  %v2450 = vmul.f32 1.0, %v2449
  %v2451 = vtanh.pop %v2431
  %v2452 = vmul.f32 %v2450, 0.0
  %2454 = vrot.lane.b32.xlu0 %v2451, 64
  %v2455 = vpop.permute.xlu0 %2454
  %v2457 = vmul.f32 %v2450, %v2455
  %2459 = vrot.lane.b32.xlu0 %v2457, 32
  %v2460 = vpop.permute.xlu0 %2459
  %v2462 = vadd.f32 %v2452, %v2460
  %v2463 = vtanh.pop %v2462
  %2465 = vrot.lane.b32.xlu0 %v2463, 64
  %v2466 = vpop.permute.xlu0 %2465
  %v2468 = vmul.f32 %v2450, %v2466
  %2470 = vrot.lane.b32.xlu0 %v2468, 32
  %v2471 = vpop.permute.xlu0 %2470
  %2473 = vrot.lane.b32.xlu0 %v2468, 64
  %v2474 = vpop.permute.xlu0 %2473
  %v2476 = vsel %vm2300, %v2471, %v2474
  %v2477 = vmul.f32 %v2476, %v2307
  %v2479 = vrot.slane %v2369, 2
  %v2481 = vrot.slane %v2385, 2
  %v2483 = vsel %vm2306, %v2479, %v2481
  %v2484 = vpack.c.bf16 %v2477, %v2477
  %v2486 = vsel %vm2415, %v2484, 0
  %2488 = vmatpush.bf16.msra.mxu0 0
  %2489 = vmatpush.bf16.msra.mxu0 0
  %2490 = vmatpush.bf16.msra.mxu0 0
  %2491 = vmatpush.bf16.msra.mxu0 0
  %2492 = vmatpush.bf16.msra.mxu0 %v2410
  %2493 = vmatpush.bf16.msra.mxu0 %v2409
  %2494 = vmatpush.bf16.msra.mxu0 %v2408
  %2495 = vmatpush.bf16.msra.mxu0 %v2407
  %2496 = vmatmul.bf16.gmra.mxu0 %v2486
  %v2497 = vpop.f32.mrf.mxu0
  %v2498 = vadd.f32 0.0, %v2497
  %v2499 = vpop.f32.mrf.mxu0
  %2500 = vdwg.mxu0
  %v2501 = vadd.f32 %v2483, %v2498
  %v2502 = vxor.u32 %v2501, 2147483648
  %v2503 = vmul.f32 %v2502, 1.442695
  %v2504 = vpow.pop %v2503
  %v2505 = vadd.f32 %v2504, 1.0
  %v2506 = vrcp.pop %v2505
  %v2507 = vmul.f32 %v2505, %v2506
  %v2508 = vsub.f32 1.0, %v2507
  %v2509 = vmul.f32 %v2506, %v2508
  %v2510 = vadd.f32 %v2506, %v2509
  %vm2511 = vweird.f32 %v2505
  %vm2512 = vweird.f32 %v2506
  %vm2513 = vmor %vm2511, %vm2512
  %v2514 = vsel %vm2513, %v2506, %v2510
  %v2515 = vand.u32 2147483647, %v2505
  %vm2516 = vcmp.eq.f32.partialorder %v2515, 8.507059e+37
  %v2517 = vand.u32 %v2505, 2147483648
  %v2518 = vor.u32 1.1754944e-38, %v2517
  %v2519 = vsel %vm2516, %v2518, %v2514
  %v2520 = vmul.f32 1.0, %v2519
  %v2521 = vtanh.pop %v2501
  %v2522 = vmul.f32 %v2520, %v2462
  %2524 = vrot.lane.b32.xlu0 %v2521, 64
  %v2525 = vpop.permute.xlu0 %2524
  %v2527 = vmul.f32 %v2520, %v2525
  %2529 = vrot.lane.b32.xlu0 %v2527, 32
  %v2530 = vpop.permute.xlu0 %2529
  %v2532 = vadd.f32 %v2522, %v2530
  %v2533 = vtanh.pop %v2532
  %2535 = vrot.lane.b32.xlu0 %v2533, 64
  %v2536 = vpop.permute.xlu0 %2535
  %v2538 = vmul.f32 %v2520, %v2536
  %2540 = vrot.lane.b32.xlu0 %v2538, 32
  %v2541 = vpop.permute.xlu0 %2540
  %2543 = vrot.lane.b32.xlu0 %v2538, 64
  %v2544 = vpop.permute.xlu0 %2543
  %v2546 = vsel %vm2300, %v2541, %v2544
  %v2547 = vmul.f32 %v2546, %v2307
  %v2548 = vrot.slane %v2369, 4
  %v2550 = vsel %vm2306, %v2548, %v2385
  %v2551 = vpack.c.bf16 %v2547, %v2547
  %v2553 = vsel %vm2415, %v2551, 0
  %2555 = vmatpush.bf16.msra.mxu0 0
  %2556 = vmatpush.bf16.msra.mxu0 0
  %2557 = vmatpush.bf16.msra.mxu0 0
  %2558 = vmatpush.bf16.msra.mxu0 0
  %2559 = vmatpush.bf16.msra.mxu0 %v2410
  %2560 = vmatpush.bf16.msra.mxu0 %v2409
  %2561 = vmatpush.bf16.msra.mxu0 %v2408
  %2562 = vmatpush.bf16.msra.mxu0 %v2407
  %2563 = vmatmul.bf16.gmra.mxu0 %v2553
  %v2564 = vpop.f32.mrf.mxu0
  %v2565 = vadd.f32 0.0, %v2564
  %v2566 = vpop.f32.mrf.mxu0
  %2567 = vdwg.mxu0
  %v2568 = vadd.f32 %v2550, %v2565
  %v2569 = vxor.u32 %v2568, 2147483648
  %v2570 = vmul.f32 %v2569, 1.442695
  %v2571 = vpow.pop %v2570
  %v2572 = vadd.f32 %v2571, 1.0
  %v2573 = vrcp.pop %v2572
  %v2574 = vmul.f32 %v2572, %v2573
  %v2575 = vsub.f32 1.0, %v2574
  %v2576 = vmul.f32 %v2573, %v2575
  %v2577 = vadd.f32 %v2573, %v2576
  %vm2578 = vweird.f32 %v2572
  %vm2579 = vweird.f32 %v2573
  %vm2580 = vmor %vm2578, %vm2579
  %v2581 = vsel %vm2580, %v2573, %v2577
  %v2582 = vand.u32 2147483647, %v2572
  %vm2583 = vcmp.eq.f32.partialorder %v2582, 8.507059e+37
  %v2584 = vand.u32 %v2572, 2147483648
  %v2585 = vor.u32 1.1754944e-38, %v2584
  %v2586 = vsel %vm2583, %v2585, %v2581
  %v2587 = vmul.f32 1.0, %v2586
  %v2588 = vtanh.pop %v2568
  %v2589 = vmul.f32 %v2587, %v2532
  %2591 = vrot.lane.b32.xlu0 %v2588, 64
  %v2592 = vpop.permute.xlu0 %2591
  %v2594 = vmul.f32 %v2587, %v2592
  %2596 = vrot.lane.b32.xlu0 %v2594, 32
  %v2597 = vpop.permute.xlu0 %2596
  %v2599 = vadd.f32 %v2589, %v2597
  %v2600 = vtanh.pop %v2599
  %2602 = vrot.lane.b32.xlu0 %v2600, 64
  %v2603 = vpop.permute.xlu0 %2602
  %v2605 = vmul.f32 %v2587, %v2603
  %2607 = vrot.lane.b32.xlu0 %v2605, 32
  %v2608 = vpop.permute.xlu0 %2607
  %2610 = vrot.lane.b32.xlu0 %v2605, 64
  %v2611 = vpop.permute.xlu0 %2610
  %v2613 = vsel %vm2300, %v2608, %v2611
  %v2614 = vmul.f32 %v2613, %v2307
  %v2615 = vrot.slane %v2369, 6
  %v2617 = vrot.slane %v2385, 6
  %v2619 = vsel %vm2306, %v2615, %v2617
  %v2620 = vpack.c.bf16 %v2614, %v2614
  %v2622 = vsel %vm2415, %v2620, 0
  %2624 = vmatpush.bf16.msra.mxu0 0
  %2625 = vmatpush.bf16.msra.mxu0 0
  %2626 = vmatpush.bf16.msra.mxu0 0
  %2627 = vmatpush.bf16.msra.mxu0 0
  %2628 = vmatpush.bf16.msra.mxu0 %v2410
  %2629 = vmatpush.bf16.msra.mxu0 %v2409
  %2630 = vmatpush.bf16.msra.mxu0 %v2408
  %2631 = vmatpush.bf16.msra.mxu0 %v2407
  %2632 = vmatmul.bf16.gmra.mxu0 %v2622
  %v2633 = vpop.f32.mrf.mxu0
  %v2634 = vadd.f32 0.0, %v2633
  %v2635 = vpop.f32.mrf.mxu0
  %2636 = vdwg.mxu0
  %v2637 = vadd.f32 %v2619, %v2634
  %v2638 = vxor.u32 %v2637, 2147483648
  %v2639 = vmul.f32 %v2638, 1.442695
  %v2640 = vpow.pop %v2639
  %v2641 = vadd.f32 %v2640, 1.0
  %v2642 = vrcp.pop %v2641
  %v2643 = vmul.f32 %v2641, %v2642
  %v2644 = vsub.f32 1.0, %v2643
  %v2645 = vmul.f32 %v2642, %v2644
  %v2646 = vadd.f32 %v2642, %v2645
  %vm2647 = vweird.f32 %v2641
  %vm2648 = vweird.f32 %v2642
  %vm2649 = vmor %vm2647, %vm2648
  %v2650 = vsel %vm2649, %v2642, %v2646
  %v2651 = vand.u32 2147483647, %v2641
  %vm2652 = vcmp.eq.f32.partialorder %v2651, 8.507059e+37
  %v2653 = vand.u32 %v2641, 2147483648
  %v2654 = vor.u32 1.1754944e-38, %v2653
  %v2655 = vsel %vm2652, %v2654, %v2650
  %v2656 = vmul.f32 1.0, %v2655
  %v2657 = vtanh.pop %v2637
  %v2658 = vmul.f32 %v2656, %v2599
  %2660 = vrot.lane.b32.xlu0 %v2657, 64
  %v2661 = vpop.permute.xlu0 %2660
  %v2663 = vmul.f32 %v2656, %v2661
  %2665 = vrot.lane.b32.xlu0 %v2663, 32
  %v2666 = vpop.permute.xlu0 %2665
  %v2668 = vadd.f32 %v2658, %v2666
  %v2669 = vtanh.pop %v2668
  %2671 = vrot.lane.b32.xlu0 %v2669, 64
  %v2672 = vpop.permute.xlu0 %2671
  %v2674 = vmul.f32 %v2656, %v2672
  %2676 = vrot.lane.b32.xlu0 %v2674, 32
  %v2677 = vpop.permute.xlu0 %2676
  %2679 = vrot.lane.b32.xlu0 %v2674, 64
  %v2680 = vpop.permute.xlu0 %2679
  %v2682 = vsel %vm2300, %v2677, %v2680
  %v2683 = vmul.f32 %v2682, %v2307
  %v2685 = vrot.slane %v2383, 4
  %v2687 = vsel %vm2306, %v2371, %v2685
  %v2688 = vpack.c.bf16 %v2683, %v2683
  %v2690 = vsel %vm2415, %v2688, 0
  %2692 = vmatpush.bf16.msra.mxu0 0
  %2693 = vmatpush.bf16.msra.mxu0 0
  %2694 = vmatpush.bf16.msra.mxu0 0
  %2695 = vmatpush.bf16.msra.mxu0 0
  %2696 = vmatpush.bf16.msra.mxu0 %v2410
  %2697 = vmatpush.bf16.msra.mxu0 %v2409
  %2698 = vmatpush.bf16.msra.mxu0 %v2408
  %2699 = vmatpush.bf16.msra.mxu0 %v2407
  %2700 = vmatmul.bf16.gmra.mxu0 %v2690
  %v2701 = vpop.f32.mrf.mxu0
  %v2702 = vadd.f32 0.0, %v2701
  %v2703 = vpop.f32.mrf.mxu0
  %2704 = vdwg.mxu0
  %v2705 = vadd.f32 %v2687, %v2702
  %v2706 = vxor.u32 %v2705, 2147483648
  %v2707 = vmul.f32 %v2706, 1.442695
  %v2708 = vpow.pop %v2707
  %v2709 = vadd.f32 %v2708, 1.0
  %v2710 = vrcp.pop %v2709
  %v2711 = vmul.f32 %v2709, %v2710
  %v2712 = vsub.f32 1.0, %v2711
  %v2713 = vmul.f32 %v2710, %v2712
  %v2714 = vadd.f32 %v2710, %v2713
  %vm2715 = vweird.f32 %v2709
  %vm2716 = vweird.f32 %v2710
  %vm2717 = vmor %vm2715, %vm2716
  %v2718 = vsel %vm2717, %v2710, %v2714
  %v2719 = vand.u32 2147483647, %v2709
  %vm2720 = vcmp.eq.f32.partialorder %v2719, 8.507059e+37
  %v2721 = vand.u32 %v2709, 2147483648
  %v2722 = vor.u32 1.1754944e-38, %v2721
  %v2723 = vsel %vm2720, %v2722, %v2718
  %v2724 = vmul.f32 1.0, %v2723
  %v2725 = vtanh.pop %v2705
  %v2726 = vmul.f32 %v2724, %v2668
  %2728 = vrot.lane.b32.xlu0 %v2725, 64
  %v2729 = vpop.permute.xlu0 %2728
  %v2731 = vmul.f32 %v2724, %v2729
  %2733 = vrot.lane.b32.xlu0 %v2731, 32
  %v2734 = vpop.permute.xlu0 %2733
  %v2736 = vadd.f32 %v2726, %v2734
  %v2737 = vtanh.pop %v2736
  %2739 = vrot.lane.b32.xlu0 %v2737, 64
  %v2740 = vpop.permute.xlu0 %2739
  %v2742 = vmul.f32 %v2724, %v2740
  %2744 = vrot.lane.b32.xlu0 %v2742, 32
  %v2745 = vpop.permute.xlu0 %2744
  %2747 = vrot.lane.b32.xlu0 %v2742, 64
  %v2748 = vpop.permute.xlu0 %2747
  %v2750 = vsel %vm2300, %v2745, %v2748
  %v2751 = vmul.f32 %v2750, %v2307
  %v2753 = vrot.slane %v2371, 2
  %v2755 = vrot.slane %v2383, 2
  %v2757 = vsel %vm2306, %v2753, %v2755
  %v2758 = vpack.c.bf16 %v2751, %v2751
  %v2760 = vsel %vm2415, %v2758, 0
  %2762 = vmatpush.bf16.msra.mxu0 0
  %2763 = vmatpush.bf16.msra.mxu0 0
  %2764 = vmatpush.bf16.msra.mxu0 0
  %2765 = vmatpush.bf16.msra.mxu0 0
  %2766 = vmatpush.bf16.msra.mxu0 %v2410
  %2767 = vmatpush.bf16.msra.mxu0 %v2409
  %2768 = vmatpush.bf16.msra.mxu0 %v2408
  %2769 = vmatpush.bf16.msra.mxu0 %v2407
  %2770 = vmatmul.bf16.gmra.mxu0 %v2760
  %v2771 = vpop.f32.mrf.mxu0
  %v2772 = vadd.f32 0.0, %v2771
  %v2773 = vpop.f32.mrf.mxu0
  %2774 = vdwg.mxu0
  %v2775 = vadd.f32 %v2757, %v2772
  %v2776 = vxor.u32 %v2775, 2147483648
  %v2777 = vmul.f32 %v2776, 1.442695
  %v2778 = vpow.pop %v2777
  %v2779 = vadd.f32 %v2778, 1.0
  %v2780 = vrcp.pop %v2779
  %v2781 = vmul.f32 %v2779, %v2780
  %v2782 = vsub.f32 1.0, %v2781
  %v2783 = vmul.f32 %v2780, %v2782
  %v2784 = vadd.f32 %v2780, %v2783
  %vm2785 = vweird.f32 %v2779
  %vm2786 = vweird.f32 %v2780
  %vm2787 = vmor %vm2785, %vm2786
  %v2788 = vsel %vm2787, %v2780, %v2784
  %v2789 = vand.u32 2147483647, %v2779
  %vm2790 = vcmp.eq.f32.partialorder %v2789, 8.507059e+37
  %v2791 = vand.u32 %v2779, 2147483648
  %v2792 = vor.u32 1.1754944e-38, %v2791
  %v2793 = vsel %vm2790, %v2792, %v2788
  %v2794 = vmul.f32 1.0, %v2793
  %v2795 = vtanh.pop %v2775
  %v2796 = vmul.f32 %v2794, %v2736
  %2798 = vrot.lane.b32.xlu0 %v2795, 64
  %v2799 = vpop.permute.xlu0 %2798
  %v2801 = vmul.f32 %v2794, %v2799
  %2803 = vrot.lane.b32.xlu0 %v2801, 32
  %v2804 = vpop.permute.xlu0 %2803
  %v2806 = vadd.f32 %v2796, %v2804
  %v2807 = vtanh.pop %v2806
  %2809 = vrot.lane.b32.xlu0 %v2807, 64
  %v2810 = vpop.permute.xlu0 %2809
  %v2812 = vmul.f32 %v2794, %v2810
  %2814 = vrot.lane.b32.xlu0 %v2812, 32
  %v2815 = vpop.permute.xlu0 %2814
  %2817 = vrot.lane.b32.xlu0 %v2812, 64
  %v2818 = vpop.permute.xlu0 %2817
  %v2820 = vsel %vm2300, %v2815, %v2818
  %v2821 = vmul.f32 %v2820, %v2307
  %v2822 = vrot.slane %v2371, 4
  %v2824 = vsel %vm2306, %v2822, %v2383
  %v2825 = vpack.c.bf16 %v2821, %v2821
  %v2827 = vsel %vm2415, %v2825, 0
  %2829 = vmatpush.bf16.msra.mxu0 0
  %2830 = vmatpush.bf16.msra.mxu0 0
  %2831 = vmatpush.bf16.msra.mxu0 0
  %2832 = vmatpush.bf16.msra.mxu0 0
  %2833 = vmatpush.bf16.msra.mxu0 %v2410
  %2834 = vmatpush.bf16.msra.mxu0 %v2409
  %2835 = vmatpush.bf16.msra.mxu0 %v2408
  %2836 = vmatpush.bf16.msra.mxu0 %v2407
  %2837 = vmatmul.bf16.gmra.mxu0 %v2827
  %v2838 = vpop.f32.mrf.mxu0
  %v2839 = vadd.f32 0.0, %v2838
  %v2840 = vpop.f32.mrf.mxu0
  %2841 = vdwg.mxu0
  %v2842 = vadd.f32 %v2824, %v2839
  %v2843 = vxor.u32 %v2842, 2147483648
  %v2844 = vmul.f32 %v2843, 1.442695
  %v2845 = vpow.pop %v2844
  %v2846 = vadd.f32 %v2845, 1.0
  %v2847 = vrcp.pop %v2846
  %v2848 = vmul.f32 %v2846, %v2847
  %v2849 = vsub.f32 1.0, %v2848
  %v2850 = vmul.f32 %v2847, %v2849
  %v2851 = vadd.f32 %v2847, %v2850
  %vm2852 = vweird.f32 %v2846
  %vm2853 = vweird.f32 %v2847
  %vm2854 = vmor %vm2852, %vm2853
  %v2855 = vsel %vm2854, %v2847, %v2851
  %v2856 = vand.u32 2147483647, %v2846
  %vm2857 = vcmp.eq.f32.partialorder %v2856, 8.507059e+37
  %v2858 = vand.u32 %v2846, 2147483648
  %v2859 = vor.u32 1.1754944e-38, %v2858
  %v2860 = vsel %vm2857, %v2859, %v2855
  %v2861 = vmul.f32 1.0, %v2860
  %v2862 = vtanh.pop %v2842
  %v2863 = vmul.f32 %v2861, %v2806
  %2865 = vrot.lane.b32.xlu0 %v2862, 64
  %v2866 = vpop.permute.xlu0 %2865
  %v2868 = vmul.f32 %v2861, %v2866
  %2870 = vrot.lane.b32.xlu0 %v2868, 32
  %v2871 = vpop.permute.xlu0 %2870
  %v2873 = vadd.f32 %v2863, %v2871
  %v2874 = vtanh.pop %v2873
  %2876 = vrot.lane.b32.xlu0 %v2874, 64
  %v2877 = vpop.permute.xlu0 %2876
  %v2879 = vmul.f32 %v2861, %v2877
  %2881 = vrot.lane.b32.xlu0 %v2879, 32
  %v2882 = vpop.permute.xlu0 %2881
  %2884 = vrot.lane.b32.xlu0 %v2879, 64
  %v2885 = vpop.permute.xlu0 %2884
  %v2887 = vsel %vm2300, %v2882, %v2885
  %v2888 = vmul.f32 %v2887, %v2307
  %v2889 = vrot.slane %v2371, 6
  %v2891 = vrot.slane %v2383, 6
  %v2893 = vsel %vm2306, %v2889, %v2891
  %v2894 = vpack.c.bf16 %v2888, %v2888
  %v2896 = vsel %vm2415, %v2894, 0
  %2898 = vmatpush.bf16.msra.mxu0 0
  %2899 = vmatpush.bf16.msra.mxu0 0
  %2900 = vmatpush.bf16.msra.mxu0 0
  %2901 = vmatpush.bf16.msra.mxu0 0
  %2902 = vmatpush.bf16.msra.mxu0 %v2410
  %2903 = vmatpush.bf16.msra.mxu0 %v2409
  %2904 = vmatpush.bf16.msra.mxu0 %v2408
  %2905 = vmatpush.bf16.msra.mxu0 %v2407
  %2906 = vmatmul.bf16.gmra.mxu0 %v2896
  %v2907 = vpop.f32.mrf.mxu0
  %v2908 = vadd.f32 0.0, %v2907
  %v2909 = vpop.f32.mrf.mxu0
  %2910 = vdwg.mxu0
  %v2911 = vadd.f32 %v2893, %v2908
  %v2912 = vxor.u32 %v2911, 2147483648
  %v2913 = vmul.f32 %v2912, 1.442695
  %v2914 = vpow.pop %v2913
  %v2915 = vadd.f32 %v2914, 1.0
  %v2916 = vrcp.pop %v2915
  %v2917 = vmul.f32 %v2915, %v2916
  %v2918 = vsub.f32 1.0, %v2917
  %v2919 = vmul.f32 %v2916, %v2918
  %v2920 = vadd.f32 %v2916, %v2919
  %vm2921 = vweird.f32 %v2915
  %vm2922 = vweird.f32 %v2916
  %vm2923 = vmor %vm2921, %vm2922
  %v2924 = vsel %vm2923, %v2916, %v2920
  %v2925 = vand.u32 2147483647, %v2915
  %vm2926 = vcmp.eq.f32.partialorder %v2925, 8.507059e+37
  %v2927 = vand.u32 %v2915, 2147483648
  %v2928 = vor.u32 1.1754944e-38, %v2927
  %v2929 = vsel %vm2926, %v2928, %v2924
  %v2930 = vmul.f32 1.0, %v2929
  %v2931 = vtanh.pop %v2911
  %v2932 = vmul.f32 %v2930, %v2873
  %2934 = vrot.lane.b32.xlu0 %v2931, 64
  %v2935 = vpop.permute.xlu0 %2934
  %v2937 = vmul.f32 %v2930, %v2935
  %2939 = vrot.lane.b32.xlu0 %v2937, 32
  %v2940 = vpop.permute.xlu0 %2939
  %v2942 = vadd.f32 %v2932, %v2940
  %v2943 = vtanh.pop %v2942
  %2945 = vrot.lane.b32.xlu0 %v2943, 64
  %v2946 = vpop.permute.xlu0 %2945
  %v2948 = vmul.f32 %v2930, %v2946
  %v2949 = vrot.slane %v2538, 6
  %v2951 = vrot.slane %v2605, 4
  %v2953 = vrot.slane %v2674, 2
  %v2955 = vrot.slane %v2812, 6
  %v2957 = vrot.slane %v2879, 4
  %v2960 = vrot.slane %v2948, 2
  %v2962 = vsel %vm2306, %v2468, %v2949
  %vm2963 = vcmask 1043456
  %v2964 = vsel %vm2963, %v2962, %v2951
  %vm2965 = vcmask 1045504
  %v2966 = vsel %vm2965, %v2964, %v2953
  %v2967 = vsel %vm2306, %v2742, %v2955
  %v2968 = vsel %vm2963, %v2967, %v2957
  %v2969 = vsel %vm2965, %v2968, %v2960
  %v2970 = vrot.slane %v2742, 4
  %v2972 = vrot.slane %v2468, 4
  %v2974 = vsel %vm2306, %v2960, %v2879
  %v2975 = vsel %vm2963, %v2974, %v2955
  %v2976 = vsel %vm2965, %v2975, %v2970
  %v2977 = vsel %vm2306, %v2953, %v2605
  %v2978 = vsel %vm2963, %v2977, %v2949
  %v2979 = vsel %vm2965, %v2978, %v2972
  %2982 = vrot.lane.b32.xlu0 %v2966, 32
  %v2983 = vpop.permute.xlu0 %2982
  %2984 = vrot.lane.b32.xlu0 %v2969, 32
  %v2985 = vpop.permute.xlu0 %2984
  %2990 = vrot.lane.b32.xlu0 %v2976, 64
  %v2991 = vpop.permute.xlu0 %2990
  %2992 = vrot.lane.b32.xlu0 %v2979, 64
  %v2993 = vpop.permute.xlu0 %2992
  %v2996 = vsel %vm2300, %v2983, %v2991
  %v2997 = vsel %vm2300, %v2985, %v2993
  %v2998 = vpack.c.bf16 %v2997, %v2996
  %v2999 = vperm.slane %v2329, 0
  %v3008 = vunpack.c.l.b16 %v2320
  %v3009 = vunpack.c.l.b16 %v2321
  %v3010 = vunpack.c.l.b16 %v2322
  %v3011 = vunpack.c.l.b16 %v2323
  %v3012 = vunpack.c.l.b16 %v2324
  %v3013 = vunpack.c.l.b16 %v2325
  %v3014 = vunpack.c.l.b16 %v2326
  %v3015 = vunpack.c.l.b16 %v2327
  %v3016 = vpack.c.b16 %v3009, %v3008
  %v3017 = vpack.c.b16 %v3011, %v3010
  %v3018 = vpack.c.b16 %v3013, %v3012
  %v3019 = vpack.c.b16 %v3015, %v3014
  %v3025 = vsel %vm2415, %v2998, 0
  %3027 = vmatpush.bf16.msra.mxu0 0
  %3028 = vmatpush.bf16.msra.mxu0 0
  %3029 = vmatpush.bf16.msra.mxu0 0
  %3030 = vmatpush.bf16.msra.mxu0 0
  %3031 = vmatpush.bf16.msra.mxu0 %v3019
  %3032 = vmatpush.bf16.msra.mxu0 %v3018
  %3033 = vmatpush.bf16.msra.mxu0 %v3017
  %3034 = vmatpush.bf16.msra.mxu0 %v3016
  %3035 = vmatmul.bf16.gmra.mxu0 %v3025
  %v3036 = vpop.f32.mrf.mxu0
  %v3037 = vadd.f32 %v2999, %v3036
  %v3038 = vpop.f32.mrf.mxu0
  %v3039 = vadd.f32 %v2999, %v3038
  %3040 = vdwg.mxu0
  %v3041 = vld [vmem:[%s5 + $0x10] sm:$0xff]
  %v3042 = vld [vmem:[%s5 + $0x34] sm:$0xff]
  %v3043 = vld [vmem:[%s5 + $0x58] sm:$0xff]
  %v3044 = vld [vmem:[%s5 + $0x7c] sm:$0xff]
  %v3045 = vld [vmem:[%s5 + $0x18] sm:$0xf]
  %v3046 = vld [vmem:[%s5 + $0x3c] sm:$0xf]
  %v3047 = vld [vmem:[%s5 + $0x60] sm:$0xf]
  %v3048 = vld [vmem:[%s5 + $0x84] sm:$0xf]
  %v3049 = vld [vmem:[%s5 + $0xa8] sm:$0xf]
  %v3050 = vld [vmem:[%s5 + $0xcc] sm:$0xf]
  %v3051 = vld [vmem:[%s5 + $0xf0] sm:$0xf]
  %v3052 = vld [vmem:[%s5 + $0x114] sm:$0xf]
  %v3053 = vld [vmem:[%s5 + $0x1c] sm:$0xf]
  %v3054 = vld [vmem:[%s5 + $0x40] sm:$0xf]
  %v3055 = vld [vmem:[%s5 + $0x64] sm:$0xf]
  %v3056 = vld [vmem:[%s5 + $0x88] sm:$0xf]
  %v3057 = vld [vmem:[%s5 + $0xac] sm:$0xf]
  %v3058 = vld [vmem:[%s5 + $0xd0] sm:$0xf]
  %v3059 = vld [vmem:[%s5 + $0xf4] sm:$0xf]
  %v3060 = vld [vmem:[%s5 + $0x118] sm:$0xf]
  %s3061 = scalar_lea.vmem %s6, 1
  %v3062 = vld [vmem:[%s3061] ss:$4 sm:$0x3]
  %v3063 = vpack.c.bf16 %v3039, %v3037
  %v3065 = vperm.slane %v3062, 0
  %v3066 = vperm.slane %v3062, 1
  %v3073 = vunpack.c.l.b16 %v3041
  %v3074 = vunpack.c.h.b16 %v3041
  %v3075 = vunpack.c.l.b16 %v3042
  %v3076 = vunpack.c.h.b16 %v3042
  %v3077 = vunpack.c.l.b16 %v3043
  %v3078 = vunpack.c.h.b16 %v3043
  %v3079 = vunpack.c.l.b16 %v3044
  %v3080 = vunpack.c.h.b16 %v3044
  %v3081 = vpack.c.b16 %v3075, %v3073
  %v3082 = vpack.c.b16 %v3076, %v3074
  %v3083 = vpack.c.b16 %v3079, %v3077
  %v3084 = vpack.c.b16 %v3080, %v3078
  %v3090 = vsel %vm2300, %v3063, 0
  %3092 = vmatpush.bf16.msra.mxu0 0
  %3093 = vmatpush.bf16.msra.mxu0 0
  %3094 = vmatpush.bf16.msra.mxu0 0
  %3095 = vmatpush.bf16.msra.mxu0 0
  %3096 = vmatpush.bf16.msra.mxu0 0
  %3097 = vmatpush.bf16.msra.mxu0 0
  %3098 = vmatpush.bf16.msra.mxu0 %v3083
  %3099 = vmatpush.bf16.msra.mxu0 %v3081
  %3100 = vmatmul.bf16.gmra.mxu0 %v3090
  %v3101 = vpop.f32.mrf.mxu0
  %v3102 = vadd.f32 %v3065, %v3101
  %v3103 = vpop.f32.mrf.mxu0
  %v3104 = vadd.f32 %v3065, %v3103
  %3105 = vdwg.mxu0
  %3106 = vmatpush.bf16.msra.mxu0 0
  %3107 = vmatpush.bf16.msra.mxu0 0
  %3108 = vmatpush.bf16.msra.mxu0 0
  %3109 = vmatpush.bf16.msra.mxu0 0
  %3110 = vmatpush.bf16.msra.mxu0 0
  %3111 = vmatpush.bf16.msra.mxu0 0
  %3112 = vmatpush.bf16.msra.mxu0 %v3084
  %3113 = vmatpush.bf16.msra.mxu0 %v3082
  %3114 = vmatmul.bf16.gmra.mxu0 %v3090
  %v3115 = vpop.f32.mrf.mxu0
  %v3116 = vadd.f32 %v3066, %v3115
  %v3117 = vpop.f32.mrf.mxu0
  %v3118 = vadd.f32 %v3066, %v3117
  %3119 = vdwg.mxu0
  %v3121 = vrot.slane %v3118, 4
  %v3123 = vsel %vm2306, %v3102, %v3121
  %v3132 = vunpack.c.l.b16 %v3045
  %v3133 = vunpack.c.l.b16 %v3046
  %v3134 = vunpack.c.l.b16 %v3047
  %v3135 = vunpack.c.l.b16 %v3048
  %v3136 = vunpack.c.l.b16 %v3049
  %v3137 = vunpack.c.l.b16 %v3050
  %v3138 = vunpack.c.l.b16 %v3051
  %v3139 = vunpack.c.l.b16 %v3052
  %v3140 = vpack.c.b16 %v3133, %v3132
  %v3141 = vpack.c.b16 %v3135, %v3134
  %v3142 = vpack.c.b16 %v3137, %v3136
  %v3143 = vpack.c.b16 %v3139, %v3138
  %3148 = vmatpush.bf16.msra.mxu0 0
  %3149 = vmatpush.bf16.msra.mxu0 0
  %3150 = vmatpush.bf16.msra.mxu0 0
  %3151 = vmatpush.bf16.msra.mxu0 0
  %3152 = vmatpush.bf16.msra.mxu0 %v3143
  %3153 = vmatpush.bf16.msra.mxu0 %v3142
  %3154 = vmatpush.bf16.msra.mxu0 %v3141
  %3155 = vmatpush.bf16.msra.mxu0 %v3140
  %3156 = vmatmul.bf16.gmra.mxu0 %v2416
  %v3157 = vpop.f32.mrf.mxu0
  %v3158 = vadd.f32 0.0, %v3157
  %v3159 = vpop.f32.mrf.mxu0
  %3160 = vdwg.mxu0
  %v3161 = vadd.f32 %v3123, %v3158
  %v3162 = vxor.u32 %v3161, 2147483648
  %v3163 = vmul.f32 %v3162, 1.442695
  %v3164 = vpow.pop %v3163
  %v3165 = vadd.f32 %v3164, 1.0
  %v3166 = vrcp.pop %v3165
  %v3167 = vmul.f32 %v3165, %v3166
  %v3168 = vsub.f32 1.0, %v3167
  %v3169 = vmul.f32 %v3166, %v3168
  %v3170 = vadd.f32 %v3166, %v3169
  %vm3171 = vweird.f32 %v3165
  %vm3172 = vweird.f32 %v3166
  %vm3173 = vmor %vm3171, %vm3172
  %v3174 = vsel %vm3173, %v3166, %v3170
  %v3175 = vand.u32 2147483647, %v3165
  %vm3176 = vcmp.eq.f32.partialorder %v3175, 8.507059e+37
  %v3177 = vand.u32 %v3165, 2147483648
  %v3178 = vor.u32 1.1754944e-38, %v3177
  %v3179 = vsel %vm3176, %v3178, %v3174
  %v3180 = vmul.f32 1.0, %v3179
  %v3181 = vtanh.pop %v3161
  %v3182 = vmul.f32 %v3180, 0.0
  %3184 = vrot.lane.b32.xlu0 %v3181, 64
  %v3185 = vpop.permute.xlu0 %3184
  %v3187 = vmul.f32 %v3180, %v3185
  %3189 = vrot.lane.b32.xlu0 %v3187, 32
  %v3190 = vpop.permute.xlu0 %3189
  %v3192 = vadd.f32 %v3182, %v3190
  %v3193 = vtanh.pop %v3192
  %3195 = vrot.lane.b32.xlu0 %v3193, 64
  %v3196 = vpop.permute.xlu0 %3195
  %v3198 = vmul.f32 %v3180, %v3196
  %3200 = vrot.lane.b32.xlu0 %v3198, 32
  %v3201 = vpop.permute.xlu0 %3200
  %3203 = vrot.lane.b32.xlu0 %v3198, 64
  %v3204 = vpop.permute.xlu0 %3203
  %v3206 = vsel %vm2300, %v3201, %v3204
  %v3207 = vmul.f32 %v3206, %v2307
  %v3209 = vrot.slane %v3102, 2
  %v3211 = vrot.slane %v3118, 2
  %v3213 = vsel %vm2306, %v3209, %v3211
  %v3214 = vpack.c.bf16 %v3207, %v3207
  %v3216 = vsel %vm2415, %v3214, 0
  %3218 = vmatpush.bf16.msra.mxu0 0
  %3219 = vmatpush.bf16.msra.mxu0 0
  %3220 = vmatpush.bf16.msra.mxu0 0
  %3221 = vmatpush.bf16.msra.mxu0 0
  %3222 = vmatpush.bf16.msra.mxu0 %v3143
  %3223 = vmatpush.bf16.msra.mxu0 %v3142
  %3224 = vmatpush.bf16.msra.mxu0 %v3141
  %3225 = vmatpush.bf16.msra.mxu0 %v3140
  %3226 = vmatmul.bf16.gmra.mxu0 %v3216
  %v3227 = vpop.f32.mrf.mxu0
  %v3228 = vadd.f32 0.0, %v3227
  %v3229 = vpop.f32.mrf.mxu0
  %3230 = vdwg.mxu0
  %v3231 = vadd.f32 %v3213, %v3228
  %v3232 = vxor.u32 %v3231, 2147483648
  %v3233 = vmul.f32 %v3232, 1.442695
  %v3234 = vpow.pop %v3233
  %v3235 = vadd.f32 %v3234, 1.0
  %v3236 = vrcp.pop %v3235
  %v3237 = vmul.f32 %v3235, %v3236
  %v3238 = vsub.f32 1.0, %v3237
  %v3239 = vmul.f32 %v3236, %v3238
  %v3240 = vadd.f32 %v3236, %v3239
  %vm3241 = vweird.f32 %v3235
  %vm3242 = vweird.f32 %v3236
  %vm3243 = vmor %vm3241, %vm3242
  %v3244 = vsel %vm3243, %v3236, %v3240
  %v3245 = vand.u32 2147483647, %v3235
  %vm3246 = vcmp.eq.f32.partialorder %v3245, 8.507059e+37
  %v3247 = vand.u32 %v3235, 2147483648
  %v3248 = vor.u32 1.1754944e-38, %v3247
  %v3249 = vsel %vm3246, %v3248, %v3244
  %v3250 = vmul.f32 1.0, %v3249
  %v3251 = vtanh.pop %v3231
  %v3252 = vmul.f32 %v3250, %v3192
  %3254 = vrot.lane.b32.xlu0 %v3251, 64
  %v3255 = vpop.permute.xlu0 %3254
  %v3257 = vmul.f32 %v3250, %v3255
  %3259 = vrot.lane.b32.xlu0 %v3257, 32
  %v3260 = vpop.permute.xlu0 %3259
  %v3262 = vadd.f32 %v3252, %v3260
  %v3263 = vtanh.pop %v3262
  %3265 = vrot.lane.b32.xlu0 %v3263, 64
  %v3266 = vpop.permute.xlu0 %3265
  %v3268 = vmul.f32 %v3250, %v3266
  %3270 = vrot.lane.b32.xlu0 %v3268, 32
  %v3271 = vpop.permute.xlu0 %3270
  %3273 = vrot.lane.b32.xlu0 %v3268, 64
  %v3274 = vpop.permute.xlu0 %3273
  %v3276 = vsel %vm2300, %v3271, %v3274
  %v3277 = vmul.f32 %v3276, %v2307
  %v3278 = vrot.slane %v3102, 4
  %v3280 = vsel %vm2306, %v3278, %v3118
  %v3281 = vpack.c.bf16 %v3277, %v3277
  %v3283 = vsel %vm2415, %v3281, 0
  %3285 = vmatpush.bf16.msra.mxu0 0
  %3286 = vmatpush.bf16.msra.mxu0 0
  %3287 = vmatpush.bf16.msra.mxu0 0
  %3288 = vmatpush.bf16.msra.mxu0 0
  %3289 = vmatpush.bf16.msra.mxu0 %v3143
  %3290 = vmatpush.bf16.msra.mxu0 %v3142
  %3291 = vmatpush.bf16.msra.mxu0 %v3141
  %3292 = vmatpush.bf16.msra.mxu0 %v3140
  %3293 = vmatmul.bf16.gmra.mxu0 %v3283
  %v3294 = vpop.f32.mrf.mxu0
  %v3295 = vadd.f32 0.0, %v3294
  %v3296 = vpop.f32.mrf.mxu0
  %3297 = vdwg.mxu0
  %v3298 = vadd.f32 %v3280, %v3295
  %v3299 = vxor.u32 %v3298, 2147483648
  %v3300 = vmul.f32 %v3299, 1.442695
  %v3301 = vpow.pop %v3300
  %v3302 = vadd.f32 %v3301, 1.0
  %v3303 = vrcp.pop %v3302
  %v3304 = vmul.f32 %v3302, %v3303
  %v3305 = vsub.f32 1.0, %v3304
  %v3306 = vmul.f32 %v3303, %v3305
  %v3307 = vadd.f32 %v3303, %v3306
  %vm3308 = vweird.f32 %v3302
  %vm3309 = vweird.f32 %v3303
  %vm3310 = vmor %vm3308, %vm3309
  %v3311 = vsel %vm3310, %v3303, %v3307
  %v3312 = vand.u32 2147483647, %v3302
  %vm3313 = vcmp.eq.f32.partialorder %v3312, 8.507059e+37
  %v3314 = vand.u32 %v3302, 2147483648
  %v3315 = vor.u32 1.1754944e-38, %v3314
  %v3316 = vsel %vm3313, %v3315, %v3311
  %v3317 = vmul.f32 1.0, %v3316
  %v3318 = vtanh.pop %v3298
  %v3319 = vmul.f32 %v3317, %v3262
  %3321 = vrot.lane.b32.xlu0 %v3318, 64
  %v3322 = vpop.permute.xlu0 %3321
  %v3324 = vmul.f32 %v3317, %v3322
  %3326 = vrot.lane.b32.xlu0 %v3324, 32
  %v3327 = vpop.permute.xlu0 %3326
  %v3329 = vadd.f32 %v3319, %v3327
  %v3330 = vtanh.pop %v3329
  %3332 = vrot.lane.b32.xlu0 %v3330, 64
  %v3333 = vpop.permute.xlu0 %3332
  %v3335 = vmul.f32 %v3317, %v3333
  %3337 = vrot.lane.b32.xlu0 %v3335, 32
  %v3338 = vpop.permute.xlu0 %3337
  %3340 = vrot.lane.b32.xlu0 %v3335, 64
  %v3341 = vpop.permute.xlu0 %3340
  %v3343 = vsel %vm2300, %v3338, %v3341
  %v3344 = vmul.f32 %v3343, %v2307
  %v3345 = vrot.slane %v3102, 6
  %v3347 = vrot.slane %v3118, 6
  %v3349 = vsel %vm2306, %v3345, %v3347
  %v3350 = vpack.c.bf16 %v3344, %v3344
  %v3352 = vsel %vm2415, %v3350, 0
  %3354 = vmatpush.bf16.msra.mxu0 0
  %3355 = vmatpush.bf16.msra.mxu0 0
  %3356 = vmatpush.bf16.msra.mxu0 0
  %3357 = vmatpush.bf16.msra.mxu0 0
  %3358 = vmatpush.bf16.msra.mxu0 %v3143
  %3359 = vmatpush.bf16.msra.mxu0 %v3142
  %3360 = vmatpush.bf16.msra.mxu0 %v3141
  %3361 = vmatpush.bf16.msra.mxu0 %v3140
  %3362 = vmatmul.bf16.gmra.mxu0 %v3352
  %v3363 = vpop.f32.mrf.mxu0
  %v3364 = vadd.f32 0.0, %v3363
  %v3365 = vpop.f32.mrf.mxu0
  %3366 = vdwg.mxu0
  %v3367 = vadd.f32 %v3349, %v3364
  %v3368 = vxor.u32 %v3367, 2147483648
  %v3369 = vmul.f32 %v3368, 1.442695
  %v3370 = vpow.pop %v3369
  %v3371 = vadd.f32 %v3370, 1.0
  %v3372 = vrcp.pop %v3371
  %v3373 = vmul.f32 %v3371, %v3372
  %v3374 = vsub.f32 1.0, %v3373
  %v3375 = vmul.f32 %v3372, %v3374
  %v3376 = vadd.f32 %v3372, %v3375
  %vm3377 = vweird.f32 %v3371
  %vm3378 = vweird.f32 %v3372
  %vm3379 = vmor %vm3377, %vm3378
  %v3380 = vsel %vm3379, %v3372, %v3376
  %v3381 = vand.u32 2147483647, %v3371
  %vm3382 = vcmp.eq.f32.partialorder %v3381, 8.507059e+37
  %v3383 = vand.u32 %v3371, 2147483648
  %v3384 = vor.u32 1.1754944e-38, %v3383
  %v3385 = vsel %vm3382, %v3384, %v3380
  %v3386 = vmul.f32 1.0, %v3385
  %v3387 = vtanh.pop %v3367
  %v3388 = vmul.f32 %v3386, %v3329
  %3390 = vrot.lane.b32.xlu0 %v3387, 64
  %v3391 = vpop.permute.xlu0 %3390
  %v3393 = vmul.f32 %v3386, %v3391
  %3395 = vrot.lane.b32.xlu0 %v3393, 32
  %v3396 = vpop.permute.xlu0 %3395
  %v3398 = vadd.f32 %v3388, %v3396
  %v3399 = vtanh.pop %v3398
  %3401 = vrot.lane.b32.xlu0 %v3399, 64
  %v3402 = vpop.permute.xlu0 %3401
  %v3404 = vmul.f32 %v3386, %v3402
  %3406 = vrot.lane.b32.xlu0 %v3404, 32
  %v3407 = vpop.permute.xlu0 %3406
  %3409 = vrot.lane.b32.xlu0 %v3404, 64
  %v3410 = vpop.permute.xlu0 %3409
  %v3412 = vsel %vm2300, %v3407, %v3410
  %v3413 = vmul.f32 %v3412, %v2307
  %v3415 = vrot.slane %v3116, 4
  %v3417 = vsel %vm2306, %v3104, %v3415
  %v3418 = vpack.c.bf16 %v3413, %v3413
  %v3420 = vsel %vm2415, %v3418, 0
  %3422 = vmatpush.bf16.msra.mxu0 0
  %3423 = vmatpush.bf16.msra.mxu0 0
  %3424 = vmatpush.bf16.msra.mxu0 0
  %3425 = vmatpush.bf16.msra.mxu0 0
  %3426 = vmatpush.bf16.msra.mxu0 %v3143
  %3427 = vmatpush.bf16.msra.mxu0 %v3142
  %3428 = vmatpush.bf16.msra.mxu0 %v3141
  %3429 = vmatpush.bf16.msra.mxu0 %v3140
  %3430 = vmatmul.bf16.gmra.mxu0 %v3420
  %v3431 = vpop.f32.mrf.mxu0
  %v3432 = vadd.f32 0.0, %v3431
  %v3433 = vpop.f32.mrf.mxu0
  %3434 = vdwg.mxu0
  %v3435 = vadd.f32 %v3417, %v3432
  %v3436 = vxor.u32 %v3435, 2147483648
  %v3437 = vmul.f32 %v3436, 1.442695
  %v3438 = vpow.pop %v3437
  %v3439 = vadd.f32 %v3438, 1.0
  %v3440 = vrcp.pop %v3439
  %v3441 = vmul.f32 %v3439, %v3440
  %v3442 = vsub.f32 1.0, %v3441
  %v3443 = vmul.f32 %v3440, %v3442
  %v3444 = vadd.f32 %v3440, %v3443
  %vm3445 = vweird.f32 %v3439
  %vm3446 = vweird.f32 %v3440
  %vm3447 = vmor %vm3445, %vm3446
  %v3448 = vsel %vm3447, %v3440, %v3444
  %v3449 = vand.u32 2147483647, %v3439
  %vm3450 = vcmp.eq.f32.partialorder %v3449, 8.507059e+37
  %v3451 = vand.u32 %v3439, 2147483648
  %v3452 = vor.u32 1.1754944e-38, %v3451
  %v3453 = vsel %vm3450, %v3452, %v3448
  %v3454 = vmul.f32 1.0, %v3453
  %v3455 = vtanh.pop %v3435
  %v3456 = vmul.f32 %v3454, %v3398
  %3458 = vrot.lane.b32.xlu0 %v3455, 64
  %v3459 = vpop.permute.xlu0 %3458
  %v3461 = vmul.f32 %v3454, %v3459
  %3463 = vrot.lane.b32.xlu0 %v3461, 32
  %v3464 = vpop.permute.xlu0 %3463
  %v3466 = vadd.f32 %v3456, %v3464
  %v3467 = vtanh.pop %v3466
  %3469 = vrot.lane.b32.xlu0 %v3467, 64
  %v3470 = vpop.permute.xlu0 %3469
  %v3472 = vmul.f32 %v3454, %v3470
  %3474 = vrot.lane.b32.xlu0 %v3472, 32
  %v3475 = vpop.permute.xlu0 %3474
  %3477 = vrot.lane.b32.xlu0 %v3472, 64
  %v3478 = vpop.permute.xlu0 %3477
  %v3480 = vsel %vm2300, %v3475, %v3478
  %v3481 = vmul.f32 %v3480, %v2307
  %v3483 = vrot.slane %v3104, 2
  %v3485 = vrot.slane %v3116, 2
  %v3487 = vsel %vm2306, %v3483, %v3485
  %v3488 = vpack.c.bf16 %v3481, %v3481
  %v3490 = vsel %vm2415, %v3488, 0
  %3492 = vmatpush.bf16.msra.mxu0 0
  %3493 = vmatpush.bf16.msra.mxu0 0
  %3494 = vmatpush.bf16.msra.mxu0 0
  %3495 = vmatpush.bf16.msra.mxu0 0
  %3496 = vmatpush.bf16.msra.mxu0 %v3143
  %3497 = vmatpush.bf16.msra.mxu0 %v3142
  %3498 = vmatpush.bf16.msra.mxu0 %v3141
  %3499 = vmatpush.bf16.msra.mxu0 %v3140
  %3500 = vmatmul.bf16.gmra.mxu0 %v3490
  %v3501 = vpop.f32.mrf.mxu0
  %v3502 = vadd.f32 0.0, %v3501
  %v3503 = vpop.f32.mrf.mxu0
  %3504 = vdwg.mxu0
  %v3505 = vadd.f32 %v3487, %v3502
  %v3506 = vxor.u32 %v3505, 2147483648
  %v3507 = vmul.f32 %v3506, 1.442695
  %v3508 = vpow.pop %v3507
  %v3509 = vadd.f32 %v3508, 1.0
  %v3510 = vrcp.pop %v3509
  %v3511 = vmul.f32 %v3509, %v3510
  %v3512 = vsub.f32 1.0, %v3511
  %v3513 = vmul.f32 %v3510, %v3512
  %v3514 = vadd.f32 %v3510, %v3513
  %vm3515 = vweird.f32 %v3509
  %vm3516 = vweird.f32 %v3510
  %vm3517 = vmor %vm3515, %vm3516
  %v3518 = vsel %vm3517, %v3510, %v3514
  %v3519 = vand.u32 2147483647, %v3509
  %vm3520 = vcmp.eq.f32.partialorder %v3519, 8.507059e+37
  %v3521 = vand.u32 %v3509, 2147483648
  %v3522 = vor.u32 1.1754944e-38, %v3521
  %v3523 = vsel %vm3520, %v3522, %v3518
  %v3524 = vmul.f32 1.0, %v3523
  %v3525 = vtanh.pop %v3505
  %v3526 = vmul.f32 %v3524, %v3466
  %3528 = vrot.lane.b32.xlu0 %v3525, 64
  %v3529 = vpop.permute.xlu0 %3528
  %v3531 = vmul.f32 %v3524, %v3529
  %3533 = vrot.lane.b32.xlu0 %v3531, 32
  %v3534 = vpop.permute.xlu0 %3533
  %v3536 = vadd.f32 %v3526, %v3534
  %v3537 = vtanh.pop %v3536
  %3539 = vrot.lane.b32.xlu0 %v3537, 64
  %v3540 = vpop.permute.xlu0 %3539
  %v3542 = vmul.f32 %v3524, %v3540
  %3544 = vrot.lane.b32.xlu0 %v3542, 32
  %v3545 = vpop.permute.xlu0 %3544
  %3547 = vrot.lane.b32.xlu0 %v3542, 64
  %v3548 = vpop.permute.xlu0 %3547
  %v3550 = vsel %vm2300, %v3545, %v3548
  %v3551 = vmul.f32 %v3550, %v2307
  %v3552 = vrot.slane %v3104, 4
  %v3554 = vsel %vm2306, %v3552, %v3116
  %v3555 = vpack.c.bf16 %v3551, %v3551
  %v3557 = vsel %vm2415, %v3555, 0
  %3559 = vmatpush.bf16.msra.mxu0 0
  %3560 = vmatpush.bf16.msra.mxu0 0
  %3561 = vmatpush.bf16.msra.mxu0 0
  %3562 = vmatpush.bf16.msra.mxu0 0
  %3563 = vmatpush.bf16.msra.mxu0 %v3143
  %3564 = vmatpush.bf16.msra.mxu0 %v3142
  %3565 = vmatpush.bf16.msra.mxu0 %v3141
  %3566 = vmatpush.bf16.msra.mxu0 %v3140
  %3567 = vmatmul.bf16.gmra.mxu0 %v3557
  %v3568 = vpop.f32.mrf.mxu0
  %v3569 = vadd.f32 0.0, %v3568
  %v3570 = vpop.f32.mrf.mxu0
  %3571 = vdwg.mxu0
  %v3572 = vadd.f32 %v3554, %v3569
  %v3573 = vxor.u32 %v3572, 2147483648
  %v3574 = vmul.f32 %v3573, 1.442695
  %v3575 = vpow.pop %v3574
  %v3576 = vadd.f32 %v3575, 1.0
  %v3577 = vrcp.pop %v3576
  %v3578 = vmul.f32 %v3576, %v3577
  %v3579 = vsub.f32 1.0, %v3578
  %v3580 = vmul.f32 %v3577, %v3579
  %v3581 = vadd.f32 %v3577, %v3580
  %vm3582 = vweird.f32 %v3576
  %vm3583 = vweird.f32 %v3577
  %vm3584 = vmor %vm3582, %vm3583
  %v3585 = vsel %vm3584, %v3577, %v3581
  %v3586 = vand.u32 2147483647, %v3576
  %vm3587 = vcmp.eq.f32.partialorder %v3586, 8.507059e+37
  %v3588 = vand.u32 %v3576, 2147483648
  %v3589 = vor.u32 1.1754944e-38, %v3588
  %v3590 = vsel %vm3587, %v3589, %v3585
  %v3591 = vmul.f32 1.0, %v3590
  %v3592 = vtanh.pop %v3572
  %v3593 = vmul.f32 %v3591, %v3536
  %3595 = vrot.lane.b32.xlu0 %v3592, 64
  %v3596 = vpop.permute.xlu0 %3595
  %v3598 = vmul.f32 %v3591, %v3596
  %3600 = vrot.lane.b32.xlu0 %v3598, 32
  %v3601 = vpop.permute.xlu0 %3600
  %v3603 = vadd.f32 %v3593, %v3601
  %v3604 = vtanh.pop %v3603
  %3606 = vrot.lane.b32.xlu0 %v3604, 64
  %v3607 = vpop.permute.xlu0 %3606
  %v3609 = vmul.f32 %v3591, %v3607
  %3611 = vrot.lane.b32.xlu0 %v3609, 32
  %v3612 = vpop.permute.xlu0 %3611
  %3614 = vrot.lane.b32.xlu0 %v3609, 64
  %v3615 = vpop.permute.xlu0 %3614
  %v3617 = vsel %vm2300, %v3612, %v3615
  %v3618 = vmul.f32 %v3617, %v2307
  %v3619 = vrot.slane %v3104, 6
  %v3621 = vrot.slane %v3116, 6
  %v3623 = vsel %vm2306, %v3619, %v3621
  %v3624 = vpack.c.bf16 %v3618, %v3618
  %v3626 = vsel %vm2415, %v3624, 0
  %3628 = vmatpush.bf16.msra.mxu0 0
  %3629 = vmatpush.bf16.msra.mxu0 0
  %3630 = vmatpush.bf16.msra.mxu0 0
  %3631 = vmatpush.bf16.msra.mxu0 0
  %3632 = vmatpush.bf16.msra.mxu0 %v3143
  %3633 = vmatpush.bf16.msra.mxu0 %v3142
  %3634 = vmatpush.bf16.msra.mxu0 %v3141
  %3635 = vmatpush.bf16.msra.mxu0 %v3140
  %3636 = vmatmul.bf16.gmra.mxu0 %v3626
  %v3637 = vpop.f32.mrf.mxu0
  %v3638 = vadd.f32 0.0, %v3637
  %v3639 = vpop.f32.mrf.mxu0
  %3640 = vdwg.mxu0
  %v3641 = vadd.f32 %v3623, %v3638
  %v3642 = vxor.u32 %v3641, 2147483648
  %v3643 = vmul.f32 %v3642, 1.442695
  %v3644 = vpow.pop %v3643
  %v3645 = vadd.f32 %v3644, 1.0
  %v3646 = vrcp.pop %v3645
  %v3647 = vmul.f32 %v3645, %v3646
  %v3648 = vsub.f32 1.0, %v3647
  %v3649 = vmul.f32 %v3646, %v3648
  %v3650 = vadd.f32 %v3646, %v3649
  %vm3651 = vweird.f32 %v3645
  %vm3652 = vweird.f32 %v3646
  %vm3653 = vmor %vm3651, %vm3652
  %v3654 = vsel %vm3653, %v3646, %v3650
  %v3655 = vand.u32 2147483647, %v3645
  %vm3656 = vcmp.eq.f32.partialorder %v3655, 8.507059e+37
  %v3657 = vand.u32 %v3645, 2147483648
  %v3658 = vor.u32 1.1754944e-38, %v3657
  %v3659 = vsel %vm3656, %v3658, %v3654
  %v3660 = vmul.f32 1.0, %v3659
  %v3661 = vtanh.pop %v3641
  %v3662 = vmul.f32 %v3660, %v3603
  %3664 = vrot.lane.b32.xlu0 %v3661, 64
  %v3665 = vpop.permute.xlu0 %3664
  %v3667 = vmul.f32 %v3660, %v3665
  %3669 = vrot.lane.b32.xlu0 %v3667, 32
  %v3670 = vpop.permute.xlu0 %3669
  %v3672 = vadd.f32 %v3662, %v3670
  %v3673 = vtanh.pop %v3672
  %3675 = vrot.lane.b32.xlu0 %v3673, 64
  %v3676 = vpop.permute.xlu0 %3675
  %v3678 = vmul.f32 %v3660, %v3676
  %v3679 = vrot.slane %v3268, 6
  %v3681 = vrot.slane %v3335, 4
  %v3683 = vrot.slane %v3404, 2
  %v3685 = vrot.slane %v3542, 6
  %v3687 = vrot.slane %v3609, 4
  %v3690 = vrot.slane %v3678, 2
  %v3692 = vsel %vm2306, %v3198, %v3679
  %v3693 = vsel %vm2963, %v3692, %v3681
  %v3694 = vsel %vm2965, %v3693, %v3683
  %v3695 = vsel %vm2306, %v3472, %v3685
  %v3696 = vsel %vm2963, %v3695, %v3687
  %v3697 = vsel %vm2965, %v3696, %v3690
  %v3698 = vrot.slane %v3472, 4
  %v3700 = vrot.slane %v3198, 4
  %v3702 = vsel %vm2306, %v3690, %v3609
  %v3703 = vsel %vm2963, %v3702, %v3685
  %v3704 = vsel %vm2965, %v3703, %v3698
  %v3705 = vsel %vm2306, %v3683, %v3335
  %v3706 = vsel %vm2963, %v3705, %v3679
  %v3707 = vsel %vm2965, %v3706, %v3700
  %3710 = vrot.lane.b32.xlu0 %v3694, 32
  %v3711 = vpop.permute.xlu0 %3710
  %3712 = vrot.lane.b32.xlu0 %v3697, 32
  %v3713 = vpop.permute.xlu0 %3712
  %3718 = vrot.lane.b32.xlu0 %v3704, 64
  %v3719 = vpop.permute.xlu0 %3718
  %3720 = vrot.lane.b32.xlu0 %v3707, 64
  %v3721 = vpop.permute.xlu0 %3720
  %v3724 = vsel %vm2300, %v3711, %v3719
  %v3725 = vsel %vm2300, %v3713, %v3721
  %v3726 = vpack.c.bf16 %v3725, %v3724
  %v3735 = vunpack.c.l.b16 %v3053
  %v3736 = vunpack.c.l.b16 %v3054
  %v3737 = vunpack.c.l.b16 %v3055
  %v3738 = vunpack.c.l.b16 %v3056
  %v3739 = vunpack.c.l.b16 %v3057
  %v3740 = vunpack.c.l.b16 %v3058
  %v3741 = vunpack.c.l.b16 %v3059
  %v3742 = vunpack.c.l.b16 %v3060
  %v3743 = vpack.c.b16 %v3736, %v3735
  %v3744 = vpack.c.b16 %v3738, %v3737
  %v3745 = vpack.c.b16 %v3740, %v3739
  %v3746 = vpack.c.b16 %v3742, %v3741
  %3752 = vrot.lane.b32.xlu0 %v2999, 96
  %v3753 = vpop.permute.xlu0 %3752
  %v3756 = vsel %vm2415, %v3726, 0
  %3758 = vmatpush.bf16.msra.mxu0 0
  %3759 = vmatpush.bf16.msra.mxu0 0
  %3760 = vmatpush.bf16.msra.mxu0 0
  %3761 = vmatpush.bf16.msra.mxu0 0
  %3762 = vmatpush.bf16.msra.mxu0 %v3746
  %3763 = vmatpush.bf16.msra.mxu0 %v3745
  %3764 = vmatpush.bf16.msra.mxu0 %v3744
  %3765 = vmatpush.bf16.msra.mxu0 %v3743
  %3766 = vmatmul.bf16.gmra.mxu0 %v3756
  %v3767 = vpop.f32.mrf.mxu0
  %v3768 = vadd.f32 %v3753, %v3767
  %v3769 = vpop.f32.mrf.mxu0
  %v3770 = vadd.f32 %v3753, %v3769
  %3771 = vdwg.mxu0
  %v3772 = vld [vmem:[%s5 + $0x20] sm:$0xf]
  %v3773 = vld [vmem:[%s5 + $0x44] sm:$0xf]
  %v3774 = vld [vmem:[%s5 + $0x68] sm:$0xf]
  %v3775 = vld [vmem:[%s5 + $0x8c] sm:$0xf]
  %v3776 = vld [vmem:[%s6 + $0x3] sm:$0x1]
  %v3777 = vpack.c.bf16 %v3770, %v3768
  %v3778 = vperm.slane %v3776, 0
  %v3783 = vunpack.c.l.b16 %v3772
  %v3784 = vunpack.c.l.b16 %v3773
  %v3785 = vunpack.c.l.b16 %v3774
  %v3786 = vunpack.c.l.b16 %v3775
  %v3787 = vpack.c.b16 %v3784, %v3783
  %v3788 = vpack.c.b16 %v3786, %v3785
  %v3792 = vsel %vm2300, %v3777, 0
  %3794 = vmatpush.bf16.msra.mxu0 0
  %3795 = vmatpush.bf16.msra.mxu0 0
  %3796 = vmatpush.bf16.msra.mxu0 0
  %3797 = vmatpush.bf16.msra.mxu0 0
  %3798 = vmatpush.bf16.msra.mxu0 0
  %3799 = vmatpush.bf16.msra.mxu0 0
  %3800 = vmatpush.bf16.msra.mxu0 %v3788
  %3801 = vmatpush.bf16.msra.mxu0 %v3787
  %3802 = vmatmul.bf16.gmra.mxu0 %v3792
  %v3803 = vpop.f32.mrf.mxu0
  %v3804 = vadd.f32 %v3778, %v3803
  %v3805 = vpop.f32.mrf.mxu0
  %v3806 = vadd.f32 %v3778, %v3805
  %3807 = vdwg.mxu0
  %3808 = vst [vmem:[%s7] sm:$0xff] %v3804
  %3809 = vst [vmem:[%s7 + $0x8] sm:$0xff] %v3806
  // Predicated region
  $region30: #{model_forward.1} parent=0 // pred_check
    _
  $region31: #{model_forward.1} parent=0 // pred_check_branch
    %3811 = sbr.rel (0) target = $region33
  $region32: #{model_forward.1} parent=0 // pred_region
    _
  $region33: #{model_forward.1} parent=0 // pred_fallthru
    _
  // Predicated region
  $region34: #{model_forward.1} parent=0 // pred_check
    _
  $region35: #{model_forward.1} parent=0 // pred_check_branch
    %3813 = sbr.rel (0) target = $region37
  $region36: #{model_forward.1} parent=0 // pred_region
    _
  $region37: #{model_forward.1} parent=0 // pred_fallthru
    _

</llo_original>
